<compile_context>
chip_gen: v6e
topology: v6e:2x2x1
jax: 0.10.0
libtpu: 0.0.40
codegen_flags: <defaults>
</compile_context>

<pallas_src>
import jax
import jax.numpy as jnp
from jax import lax
from jax.experimental import pallas as pl
from jax.experimental.pallas import tpu as pltpu
import numpy as np

EXPANSION = 4
BN_EPS = 1e-5


def _bottleneck_kernel(x_ref, w1_ref, b1_ref, w2_ref, b2_ref, w3_ref, b3_ref,
                       o_ref):
    """One batch element per grid step (NHWC, bf16 matmuls, f32 accumulate).

    x_ref  : (1, H, W, Cin)        f32
    w1_ref : (Cin, width)          bf16  (BN1 scale folded in)
    b1_ref : (1, width)            f32
    w2_ref : (3, 3*width, width)   bf16  (BN2 scale folded; rows = kx*width+cin)
    b2_ref : (1, width)            f32
    w3_ref : (width, Cout)         bf16  (BN3 scale folded in)
    b3_ref : (1, Cout)             f32
    o_ref  : (1, H, W, Cout)       f32
    """
    _, H, W, Cin = x_ref.shape
    width = w1_ref.shape[1]
    Cout = w3_ref.shape[1]

    x2d = x_ref[0].reshape(H * W, Cin)                      # f32 (residual)

    # ---- conv1 (1x1) + bn1 + relu ------------------------------------------
    t = jnp.dot(x2d.astype(jnp.bfloat16), w1_ref[...],
                preferred_element_type=jnp.float32)
    t = jnp.maximum(t + b1_ref[...], 0.0)                   # (H*W, width) f32

    # ---- conv2 (3x3, stride 1, pad 1, groups=1) + bn2 + relu ---------------
    # Pad along H only: leading-dim concat, no relayout, no scratch sweep.
    t3 = t.reshape(H, W, width)
    zrow = jnp.zeros((1, W, width), jnp.float32)
    padv = jnp.concatenate([zrow, t3, zrow], axis=0)        # (H+2, W, width)

    # kx taps: shift along W with a sublane roll of the row-major flattened
    # activation, then zero the wrapped border column.  Row-boundary
    # wrap-around lands exactly on the masked columns, so it is harmless.
    M = (H + 2) * W
    flat = padv.reshape(M, width)
    left = pltpu.roll(flat, 1, 0).reshape(H + 2, W, width)       # value at x-1
    right = pltpu.roll(flat, M - 1, 0).reshape(H + 2, W, width)  # value at x+1
    col = lax.broadcasted_iota(jnp.int32, padv.shape, 1)
    zero = jnp.zeros_like(padv)
    left = jnp.where(col == 0, zero, left)
    right = jnp.where(col == W - 1, zero, right)

    # Fold the three kx taps into one K = 3*width contraction per ky; the ky
    # shift is a free leading-dim slice of the H-padded activation.
    big = jnp.concatenate([left, padv, right], axis=-1)     # (H+2, W, 3*width)
    big = big.astype(jnp.bfloat16)

    acc = jnp.zeros((H * W, width), jnp.float32)
    for ky in range(3):
        win = big[ky:ky + H].reshape(H * W, 3 * width)
        acc = acc + jnp.dot(win, w2_ref[ky],
                            preferred_element_type=jnp.float32)
    t = jnp.maximum(acc + b2_ref[...], 0.0)                 # (H*W, width) f32

    # ---- conv3 (1x1) + bn3 + residual add + relu ---------------------------
    z = jnp.dot(t.astype(jnp.bfloat16), w3_ref[...],
                preferred_element_type=jnp.float32)
    z = jnp.maximum(z + b3_ref[...] + x2d, 0.0)
    o_ref[0] = z.reshape(H, W, Cout)


def bottleneck_forward(x_nchw, kparams):
    """x_nchw: (N, Cin, H, W) float32; returns (N, Cout, H, W) float32."""
    x = jnp.transpose(x_nchw, (0, 2, 3, 1)).astype(jnp.float32)   # NHWC
    N, H, W, Cin = x.shape
    w1, b1, w2, b2, w3, b3 = kparams
    Cout = w3.shape[1]
    assert Cin == Cout, "residual add requires in_channel == out_channel*4"

    def full(a):
        nd = a.ndim
        return pl.BlockSpec(a.shape, lambda n, _nd=nd: (0,) * _nd)

    out = pl.pallas_call(
        _bottleneck_kernel,
        out_shape=jax.ShapeDtypeStruct((N, H, W, Cout), jnp.float32),
        grid_spec=pltpu.PrefetchScalarGridSpec(
            num_scalar_prefetch=0,
            grid=(N,),
            in_specs=[
                pl.BlockSpec((1, H, W, Cin), lambda n: (n, 0, 0, 0)),
                full(w1), full(b1), full(w2), full(b2), full(w3), full(b3),
            ],
            out_specs=pl.BlockSpec((1, H, W, Cout), lambda n: (n, 0, 0, 0)),
        ),
        compiler_params=pltpu.CompilerParams(
            dimension_semantics=("parallel",),      # batch shards across TCs
            vmem_limit_bytes=32 * 1024 * 1024,
        ),
    )(x, w1, b1, w2, b2, w3, b3)
    return jnp.transpose(out, (0, 3, 1, 2))                 # back to NCHW


def make_raw_params(key, in_channel, out_channel, groups=1, width_per_group=64):
    """Random parameters mirroring the PyTorch module (conv weights + BN)."""
    width = int(out_channel * (width_per_group / 64.0)) * groups
    cout = out_channel * EXPANSION
    ks = jax.random.split(key, 15)
    w1 = 0.1 * jax.random.normal(ks[0], (in_channel, width), jnp.float32)   # 1x1
    w2 = 0.1 * jax.random.normal(ks[1], (3, 3, width, width), jnp.float32)  # HWIO
    w3 = 0.1 * jax.random.normal(ks[2], (width, cout), jnp.float32)         # 1x1

    def bn(kg, kb, km, kv, c):
        gamma = 1.0 + 0.1 * jax.random.normal(kg, (c,), jnp.float32)
        beta = 0.1 * jax.random.normal(kb, (c,), jnp.float32)
        mean = 0.1 * jax.random.normal(km, (c,), jnp.float32)
        var = jax.nn.softplus(jax.random.normal(kv, (c,), jnp.float32)) + 0.5
        return gamma, beta, mean, var

    return dict(w1=w1, w2=w2, w3=w3,
                bn1=bn(ks[3], ks[4], ks[5], ks[6], width),
                bn2=bn(ks[7], ks[8], ks[9], ks[10], width),
                bn3=bn(ks[11], ks[12], ks[13], ks[14], cout))


def _fold_bn(gamma, beta, mean, var):
    scale = gamma / jnp.sqrt(var + BN_EPS)
    bias = beta - mean * scale
    return scale, bias


def prepare_kernel_params(raw):
    """Fold eval-mode BN scale into the conv weights and cast matmul operands
    to bf16 (the kernel accumulates in f32); biases stay f32."""
    s1, b1 = _fold_bn(*raw["bn1"])
    s2, b2 = _fold_bn(*raw["bn2"])
    s3, b3 = _fold_bn(*raw["bn3"])
    width = raw["w1"].shape[1]
    w1 = (raw["w1"] * s1[None, :]).astype(jnp.bfloat16)
    w2 = (raw["w2"] * s2[None, None, None, :]).astype(jnp.bfloat16)
    w3 = (raw["w3"] * s3[None, :]).astype(jnp.bfloat16)
    # (ky, kx, cin, cout) -> (ky, kx*width + cin, cout): row order matches the
    # in-kernel channel concat [kx=0 | kx=1 | kx=2].
    w2r = w2.reshape(3, 3 * width, width)
    return (w1, b1.reshape(1, -1), w2r, b2.reshape(1, -1), w3, b3.reshape(1, -1))


def reference_forward_f32(x_nchw, raw):
    """Pure-f32 JAX reference matching the PyTorch module (eval-mode BN,
    stride=1, groups=1, downsample=None)."""
    x = jnp.transpose(x_nchw, (0, 2, 3, 1)).astype(jnp.float32)
    s1, b1 = _fold_bn(*raw["bn1"])
    s2, b2 = _fold_bn(*raw["bn2"])
    s3, b3 = _fold_bn(*raw["bn3"])
    t = jnp.maximum(jnp.einsum('nhwc,cd->nhwd', x, raw["w1"]) * s1 + b1, 0.0)
    t = lax.conv_general_dilated(t, raw["w2"], (1, 1), 'SAME',
                                 dimension_numbers=('NHWC', 'HWIO', 'NHWC'))
    t = jnp.maximum(t * s2 + b2, 0.0)
    t = jnp.einsum('nhwc,cd->nhwd', t, raw["w3"]) * s3 + b3
    t = jnp.maximum(t + x, 0.0)
    return jnp.transpose(t, (0, 3, 1, 2))


def reference_forward_bf16(x_nchw, kparams):
    """Reference at the kernel's precision (bf16 operands, f32 accumulation)."""
    x = jnp.transpose(x_nchw, (0, 2, 3, 1)).astype(jnp.float32)
    w1, b1, w2r, b2, w3, b3 = kparams
    width = w1.shape[1]
    w2 = w2r.reshape(3, 3, width, width)
    t = jnp.einsum('nhwc,cd->nhwd', x.astype(jnp.bfloat16), w1,
                   preferred_element_type=jnp.float32)
    t = jnp.maximum(t + b1[0], 0.0)
    t = lax.conv_general_dilated(t.astype(jnp.bfloat16), w2, (1, 1), 'SAME',
                                 dimension_numbers=('NHWC', 'HWIO', 'NHWC'),
                                 preferred_element_type=jnp.float32)
    t = jnp.maximum(t + b2[0], 0.0)
    t = jnp.einsum('nhwc,cd->nhwd', t.astype(jnp.bfloat16), w3,
                   preferred_element_type=jnp.float32)
    t = jnp.maximum(t + b3[0] + x, 0.0)
    return jnp.transpose(t, (0, 3, 1, 2))


def _rel_fro(a, b):
    a = np.asarray(a, np.float64)
    b = np.asarray(b, np.float64)
    return float(np.linalg.norm(a - b) / (np.linalg.norm(b) + 1e-30))


if __name__ == "__main__":
    # Residual path (downsample=None) requires in_channel == out_channel * 4.
    # out_channel=128 -> width=128, Cin=Cout=512: small overall (a few MB), but
    # every lane dim is a multiple of 128 (lane-dense stores, aligned concat,
    # well-filled MXU).
    N, out_channel, H, W = 2, 128, 16, 16
    in_channel = out_channel * EXPANSION

    key = jax.random.PRNGKey(0)
    kx, kp = jax.random.split(key)
    x = jax.random.normal(kx, (N, in_channel, H, W), jnp.float32)
    raw = make_raw_params(kp, in_channel, out_channel)
    kparams = prepare_kernel_params(raw)

    out = jax.block_until_ready(bottleneck_forward(x, kparams))

    # Check vs. a reference at the kernel's precision (bf16 operands, f32
    # accumulation).  Tolerances cover isolated 1-ULP bf16 rounding flips of
    # intermediate activations (different f32 accumulation order between the
    # kernel's matmuls and XLA's conv): such flips produce rare, small,
    # pixel-local differences (observed max |diff| ~= 0.016).
    ref_bf16 = jax.block_until_ready(reference_forward_bf16(x, kparams))
    np.testing.assert_allclose(np.asarray(out), np.asarray(ref_bf16),
                               rtol=1e-1, atol=1e-1)
    assert _rel_fro(out, ref_bf16) < 5e-3, _rel_fro(out, ref_bf16)

    # Robust norm check against the pure-f32 PyTorch-equivalent reference (the
    # only gap is bf16 rounding of the matmul operands, ~0.5% relative).
    ref_f32 = jax.block_until_ready(reference_forward_f32(x, raw))
    assert _rel_fro(out, ref_f32) < 3e-2, _rel_fro(out, ref_f32)

    print("KERNEL_OK")
</pallas_src>

<mosaic_0001>
module attributes {stable_mosaic.version = 11 : i64} {
  func.func @_bottleneck_kernel(%arg0: i32, %arg1: memref<1x16x16x512xf32, #tpu.memory_space<vmem>>, %arg2: memref<512x128xbf16, #tpu.memory_space<vmem>>, %arg3: memref<1x128xf32, #tpu.memory_space<vmem>>, %arg4: memref<3x384x128xbf16, #tpu.memory_space<vmem>>, %arg5: memref<1x128xf32, #tpu.memory_space<vmem>>, %arg6: memref<128x512xbf16, #tpu.memory_space<vmem>>, %arg7: memref<1x512xf32, #tpu.memory_space<vmem>>, %arg8: memref<1x16x16x512xf32, #tpu.memory_space<vmem>>) attributes {dimension_semantics = [#tpu.dimension_semantics<parallel>], iteration_bounds = array<i64: 2>, scalar_prefetch = 0 : i64, scratch_operands = 0 : i64, tpu.core_type = #tpu.core_type<tc>, window_params = [{transform_indices = @transform_0, window_bounds = array<i64: 1, 16, 16, 512>}, {pipeline_mode = #tpu.pipeline_mode<synchronous>, transform_indices = @transform_1, window_bounds = array<i64: 512, 128>}, {pipeline_mode = #tpu.pipeline_mode<synchronous>, transform_indices = @transform_2, window_bounds = array<i64: 1, 128>}, {pipeline_mode = #tpu.pipeline_mode<synchronous>, transform_indices = @transform_3, window_bounds = array<i64: 3, 384, 128>}, {pipeline_mode = #tpu.pipeline_mode<synchronous>, transform_indices = @transform_4, window_bounds = array<i64: 1, 128>}, {pipeline_mode = #tpu.pipeline_mode<synchronous>, transform_indices = @transform_5, window_bounds = array<i64: 128, 512>}, {pipeline_mode = #tpu.pipeline_mode<synchronous>, transform_indices = @transform_6, window_bounds = array<i64: 1, 512>}, {transform_indices = @transform_7, window_bounds = array<i64: 1, 16, 16, 512>}]} {
    %c0 = arith.constant 0 : index
    %c0_0 = arith.constant 0 : index
    %c0_1 = arith.constant 0 : index
    %c0_2 = arith.constant 0 : index
    %0 = vector.load %arg1[%c0, %c0_0, %c0_1, %c0_2] : memref<1x16x16x512xf32, #tpu.memory_space<vmem>>, vector<1x16x16x512xf32>
    %1 = vector.shape_cast %0 : vector<1x16x16x512xf32> to vector<16x16x512xf32>
    %2 = vector.shape_cast %1 : vector<16x16x512xf32> to vector<256x512xf32>
    %3 = arith.truncf %2 : vector<256x512xf32> to vector<256x512xbf16>
    %c0_3 = arith.constant 0 : index
    %c0_4 = arith.constant 0 : index
    %4 = vector.load %arg2[%c0_3, %c0_4] : memref<512x128xbf16, #tpu.memory_space<vmem>>, vector<512x128xbf16>
    %cst = arith.constant dense<0.000000e+00> : vector<256x128xf32>
    %5 = tpu.matmul %3, %4, %cst {dimension_numbers = #tpu.dot_dimension_numbers<[1], [0], [0], [1], [0, 0, 1, 1], [], []>} : vector<256x512xbf16>, vector<512x128xbf16>, vector<256x128xf32> -> vector<256x128xf32>
    %c0_5 = arith.constant 0 : index
    %c0_6 = arith.constant 0 : index
    %6 = vector.load %arg3[%c0_5, %c0_6] : memref<1x128xf32, #tpu.memory_space<vmem>>, vector<1x128xf32>
    %7 = vector.broadcast %6 : vector<1x128xf32> to vector<256x128xf32>
    %8 = arith.addf %5, %7 : vector<256x128xf32>
    %cst_7 = arith.constant 0.000000e+00 : f32
    %9 = vector.broadcast %cst_7 : f32 to vector<256x128xf32>
    %10 = arith.maximumf %8, %9 : vector<256x128xf32>
    %11 = vector.shape_cast %10 : vector<256x128xf32> to vector<16x16x128xf32>
    %cst_8 = arith.constant 0.000000e+00 : f32
    %12 = vector.broadcast %cst_8 : f32 to vector<1x16x128xf32>
    %13 = tpu.concatenate %12, %11, %12 in 0 : vector<1x16x128xf32>, vector<16x16x128xf32>, vector<1x16x128xf32> -> vector<18x16x128xf32>
    %14 = vector.shape_cast %13 : vector<18x16x128xf32> to vector<288x128xf32>
    %c1_i32 = arith.constant 1 : i32
    %15 = tpu.dynamic_rotate %14 by %c1_i32 dim 0 : vector<288x128xf32>, i32 -> vector<288x128xf32>
    %16 = vector.shape_cast %15 : vector<288x128xf32> to vector<18x16x128xf32>
    %c287_i32 = arith.constant 287 : i32
    %17 = tpu.dynamic_rotate %14 by %c287_i32 dim 0 : vector<288x128xf32>, i32 -> vector<288x128xf32>
    %18 = vector.shape_cast %17 : vector<288x128xf32> to vector<18x16x128xf32>
    %19 = tpu.iota {dimensions = array<i32: 1>} : vector<18x16x128xi32>
    %cst_9 = arith.constant 0.000000e+00 : f32
    %20 = vector.broadcast %cst_9 : f32 to vector<18x16x128xf32>
    %c0_i32 = arith.constant 0 : i32
    %21 = vector.broadcast %c0_i32 : i32 to vector<18x16x128xi32>
    %22 = arith.cmpi eq, %19, %21 : vector<18x16x128xi32>
    %23 = arith.select %22, %20, %16 : vector<18x16x128xi1>, vector<18x16x128xf32>
    %c15_i32 = arith.constant 15 : i32
    %24 = vector.broadcast %c15_i32 : i32 to vector<18x16x128xi32>
    %25 = arith.cmpi eq, %19, %24 : vector<18x16x128xi32>
    %26 = arith.select %25, %20, %18 : vector<18x16x128xi1>, vector<18x16x128xf32>
    %27 = tpu.concatenate %23, %13, %26 in 2 : vector<18x16x128xf32>, vector<18x16x128xf32>, vector<18x16x128xf32> -> vector<18x16x384xf32>
    %28 = arith.truncf %27 : vector<18x16x384xf32> to vector<18x16x384xbf16>
    %cst_10 = arith.constant 0.000000e+00 : f32
    %29 = vector.broadcast %cst_10 : f32 to vector<256x128xf32>
    %30 = vector.extract_strided_slice %28 {offsets = [0, 0, 0], sizes = [16, 16, 384], strides = [1, 1, 1]} : vector<18x16x384xbf16> to vector<16x16x384xbf16>
    %31 = vector.shape_cast %30 : vector<16x16x384xbf16> to vector<256x384xbf16>
    %c0_11 = arith.constant 0 : index
    %c0_12 = arith.constant 0 : index
    %c0_13 = arith.constant 0 : index
    %32 = vector.load %arg4[%c0_11, %c0_12, %c0_13] : memref<3x384x128xbf16, #tpu.memory_space<vmem>>, vector<1x384x128xbf16>
    %33 = vector.shape_cast %32 : vector<1x384x128xbf16> to vector<384x128xbf16>
    %cst_14 = arith.constant dense<0.000000e+00> : vector<256x128xf32>
    %34 = tpu.matmul %31, %33, %cst_14 {dimension_numbers = #tpu.dot_dimension_numbers<[1], [0], [0], [1], [0, 0, 1, 1], [], []>} : vector<256x384xbf16>, vector<384x128xbf16>, vector<256x128xf32> -> vector<256x128xf32>
    %35 = arith.addf %29, %34 : vector<256x128xf32>
    %36 = vector.extract_strided_slice %28 {offsets = [1, 0, 0], sizes = [16, 16, 384], strides = [1, 1, 1]} : vector<18x16x384xbf16> to vector<16x16x384xbf16>
    %37 = vector.shape_cast %36 : vector<16x16x384xbf16> to vector<256x384xbf16>
    %c1 = arith.constant 1 : index
    %c0_15 = arith.constant 0 : index
    %c0_16 = arith.constant 0 : index
    %38 = vector.load %arg4[%c1, %c0_15, %c0_16] : memref<3x384x128xbf16, #tpu.memory_space<vmem>>, vector<1x384x128xbf16>
    %39 = vector.shape_cast %38 : vector<1x384x128xbf16> to vector<384x128xbf16>
    %cst_17 = arith.constant dense<0.000000e+00> : vector<256x128xf32>
    %40 = tpu.matmul %37, %39, %cst_17 {dimension_numbers = #tpu.dot_dimension_numbers<[1], [0], [0], [1], [0, 0, 1, 1], [], []>} : vector<256x384xbf16>, vector<384x128xbf16>, vector<256x128xf32> -> vector<256x128xf32>
    %41 = arith.addf %35, %40 : vector<256x128xf32>
    %42 = vector.extract_strided_slice %28 {offsets = [2, 0, 0], sizes = [16, 16, 384], strides = [1, 1, 1]} : vector<18x16x384xbf16> to vector<16x16x384xbf16>
    %43 = vector.shape_cast %42 : vector<16x16x384xbf16> to vector<256x384xbf16>
    %c2 = arith.constant 2 : index
    %c0_18 = arith.constant 0 : index
    %c0_19 = arith.constant 0 : index
    %44 = vector.load %arg4[%c2, %c0_18, %c0_19] : memref<3x384x128xbf16, #tpu.memory_space<vmem>>, vector<1x384x128xbf16>
    %45 = vector.shape_cast %44 : vector<1x384x128xbf16> to vector<384x128xbf16>
    %cst_20 = arith.constant dense<0.000000e+00> : vector<256x128xf32>
    %46 = tpu.matmul %43, %45, %cst_20 {dimension_numbers = #tpu.dot_dimension_numbers<[1], [0], [0], [1], [0, 0, 1, 1], [], []>} : vector<256x384xbf16>, vector<384x128xbf16>, vector<256x128xf32> -> vector<256x128xf32>
    %47 = arith.addf %41, %46 : vector<256x128xf32>
    %c0_21 = arith.constant 0 : index
    %c0_22 = arith.constant 0 : index
    %48 = vector.load %arg5[%c0_21, %c0_22] : memref<1x128xf32, #tpu.memory_space<vmem>>, vector<1x128xf32>
    %49 = vector.broadcast %48 : vector<1x128xf32> to vector<256x128xf32>
    %50 = arith.addf %47, %49 : vector<256x128xf32>
    %cst_23 = arith.constant 0.000000e+00 : f32
    %51 = vector.broadcast %cst_23 : f32 to vector<256x128xf32>
    %52 = arith.maximumf %50, %51 : vector<256x128xf32>
    %53 = arith.truncf %52 : vector<256x128xf32> to vector<256x128xbf16>
    %c0_24 = arith.constant 0 : index
    %c0_25 = arith.constant 0 : index
    %54 = vector.load %arg6[%c0_24, %c0_25] : memref<128x512xbf16, #tpu.memory_space<vmem>>, vector<128x512xbf16>
    %cst_26 = arith.constant dense<0.000000e+00> : vector<256x512xf32>
    %55 = tpu.matmul %53, %54, %cst_26 {dimension_numbers = #tpu.dot_dimension_numbers<[1], [0], [0], [1], [0, 0, 1, 1], [], []>} : vector<256x128xbf16>, vector<128x512xbf16>, vector<256x512xf32> -> vector<256x512xf32>
    %c0_27 = arith.constant 0 : index
    %c0_28 = arith.constant 0 : index
    %56 = vector.load %arg7[%c0_27, %c0_28] : memref<1x512xf32, #tpu.memory_space<vmem>>, vector<1x512xf32>
    %57 = vector.broadcast %56 : vector<1x512xf32> to vector<256x512xf32>
    %58 = arith.addf %55, %57 : vector<256x512xf32>
    %59 = arith.addf %58, %2 : vector<256x512xf32>
    %cst_29 = arith.constant 0.000000e+00 : f32
    %60 = vector.broadcast %cst_29 : f32 to vector<256x512xf32>
    %61 = arith.maximumf %59, %60 : vector<256x512xf32>
    %62 = vector.shape_cast %61 : vector<256x512xf32> to vector<16x16x512xf32>
    %c0_30 = arith.constant 0 : index
    %c0_31 = arith.constant 0 : index
    %c0_32 = arith.constant 0 : index
    %c0_33 = arith.constant 0 : index
    %63 = vector.load %arg8[%c0_30, %c0_31, %c0_32, %c0_33] : memref<1x16x16x512xf32, #tpu.memory_space<vmem>>, vector<1x16x16x512xf32>
    %64 = vector.shape_cast %63 : vector<1x16x16x512xf32> to vector<16x16x512xf32>
    %65 = vector.shape_cast %62 : vector<16x16x512xf32> to vector<1x16x16x512xf32>
    tpu.vector_store %arg8[%c0_30, %c0_31, %c0_32, %c0_33], %65 {strides = array<i32>} : memref<1x16x16x512xf32, #tpu.memory_space<vmem>>, vector<1x16x16x512xf32>,
    return
  }
  func.func @transform_0(%arg0: i32) -> (i32, i32, i32, i32) {
    %c0_i32 = arith.constant 0 : i32
    %c0_i32_0 = arith.constant 0 : i32
    %c0_i32_1 = arith.constant 0 : i32
    %c0_i32_2 = arith.constant 0 : i32
    return %arg0, %c0_i32, %c0_i32_0, %c0_i32_1 : i32, i32, i32, i32
  }
  func.func @transform_1(%arg0: i32) -> (i32, i32) {
    %c0_i32 = arith.constant 0 : i32
    %c0_i32_0 = arith.constant 0 : i32
    %c0_i32_1 = arith.constant 0 : i32
    return %c0_i32, %c0_i32_0 : i32, i32
  }
  func.func @transform_2(%arg0: i32) -> (i32, i32) {
    %c0_i32 = arith.constant 0 : i32
    %c0_i32_0 = arith.constant 0 : i32
    %c0_i32_1 = arith.constant 0 : i32
    return %c0_i32, %c0_i32_0 : i32, i32
  }
  func.func @transform_3(%arg0: i32) -> (i32, i32, i32) {
    %c0_i32 = arith.constant 0 : i32
    %c0_i32_0 = arith.constant 0 : i32
    %c0_i32_1 = arith.constant 0 : i32
    %c0_i32_2 = arith.constant 0 : i32
    return %c0_i32, %c0_i32_0, %c0_i32_1 : i32, i32, i32
  }
  func.func @transform_4(%arg0: i32) -> (i32, i32) {
    %c0_i32 = arith.constant 0 : i32
    %c0_i32_0 = arith.constant 0 : i32
    %c0_i32_1 = arith.constant 0 : i32
    return %c0_i32, %c0_i32_0 : i32, i32
  }
  func.func @transform_5(%arg0: i32) -> (i32, i32) {
    %c0_i32 = arith.constant 0 : i32
    %c0_i32_0 = arith.constant 0 : i32
    %c0_i32_1 = arith.constant 0 : i32
    return %c0_i32, %c0_i32_0 : i32, i32
  }
  func.func @transform_6(%arg0: i32) -> (i32, i32) {
    %c0_i32 = arith.constant 0 : i32
    %c0_i32_0 = arith.constant 0 : i32
    %c0_i32_1 = arith.constant 0 : i32
    return %c0_i32, %c0_i32_0 : i32, i32
  }
  func.func @transform_7(%arg0: i32) -> (i32, i32, i32, i32) {
    %c0_i32 = arith.constant 0 : i32
    %c0_i32_0 = arith.constant 0 : i32
    %c0_i32_1 = arith.constant 0 : i32
    %c0_i32_2 = arith.constant 0 : i32
    return %arg0, %c0_i32, %c0_i32_0, %c0_i32_1 : i32, i32, i32, i32
  }
}

</mosaic_0001>

<llo_original>
// kernel: tpu_custom_call.1
$region0: #{tpu_custom_call.1}
  #allocation0 [shape = 'u32[]', space=smem, size = 0x4, offset = 0x4, fixed_abs, tag = 'smem constant byte address 0x4 - core index']
  #allocation1 [shape = 'u32[144,128]{1,0:T(1,128)}', space=vmem, size = 0x12000, scoped, tag = 'internal scratch']
  %s0 = inlined_call_operand.hbm [shape: f32[2,16,16,512], index: 0, kind: input, shape index: {}]
  %s1 = inlined_call_operand.hbm [shape: bf16[512,128], index: 1, kind: input, shape index: {}]
  %s2 = inlined_call_operand.vmem [shape: f32[1,128], index: 2, kind: input, shape index: {}]
  %s3 = inlined_call_operand.hbm [shape: bf16[3,384,128], index: 3, kind: input, shape index: {}]
  %s4 = inlined_call_operand.vmem [shape: f32[1,128], index: 4, kind: input, shape index: {}]
  %s5 = inlined_call_operand.hbm [shape: bf16[128,512], index: 5, kind: input, shape index: {}]
  %s6 = inlined_call_operand.vmem [shape: f32[1,512], index: 6, kind: input, shape index: {}]
  %s7 = inlined_call_operand.hbm [shape: f32[2,16,16,512], index: 7, kind: output, shape index: {}]
  %s8 = sld [smem:[#allocation0]]
  $region77: #{tpu_custom_call.1} parent=0
    _
  %s10 = ssub.s32 1, %s8
  %s11 = scalar_select 0, %s10, %s8
  $region1: #{tpu_custom_call.1} parent=0
    #allocation2 [shape = 'u8[1048576]{0}', space=vmem, size = 0x100000, scoped, tag = 'input window, operand 0']
    #allocation3 [shape = 's32[2]{0}', space=sflag, size = 0x8, scoped, tag = 'scoped memory for tpu_custom_call.1']
    #allocation4 [shape = 's32[2]{0}', space=sflag, size = 0x8, scoped, tag = 'scoped memory for tpu_custom_call.1']
    #allocation5 [shape = 'u8[131072]{0}', space=vmem, size = 0x20000, scoped, tag = 'input window, operand 1, single buffered']
    #allocation6 [shape = 's32[1]{0}', space=sflag, size = 0x4, scoped, tag = 'scoped memory for tpu_custom_call.1']
    #allocation7 [shape = 'u8[294912]{0}', space=vmem, size = 0x48000, scoped, tag = 'input window, operand 3, single buffered']
    #allocation8 [shape = 'u8[131072]{0}', space=vmem, size = 0x20000, scoped, tag = 'input window, operand 5, single buffered']
    #allocation9 [shape = 's32[1]{0}', space=sflag, size = 0x4, scoped, tag = 'scoped memory for tpu_custom_call.1']
    #allocation10 [shape = 'u8[1048576]{0}', space=vmem, size = 0x100000, scoped, tag = 'output window, operand 0']
    %12 = vsyncpa [#allocation3], 0
    %s13 = scalar_lea.sflag [#allocation3], 1
    %14 = vsyncpa %s13, 0
    %15 = vsyncpa [#allocation6], 0
    %16 = vsyncpa [#allocation9], 0
    %17 = vsyncpa [#allocation4], 0
    %s18 = scalar_lea.sflag [#allocation4], 1
    %19 = vsyncpa %s18, 0
    loop: start=0, step=1, limit=4
    $region2: #{tpu_custom_call.1} parent=1 // loop_pre_header
      _
    $region3: #{tpu_custom_call.1} parent=1 // loop_header
      %s21 = sphi 0, %s25
      %p22 = scmp.ge.s32.totalorder %s21, 4
      %s31 = sphi 0, %s33
      %s34 = sphi 0, %s31
      %s35 = sphi 0, %s34
      %s51 = sphi 0, %s35
      %s55 = sphi 0, %s55
      %s57 = sphi 0, %s55
      %s58 = sphi 0, %s57
      %s72 = sphi 0, %s58
      %s76 = sphi 0, %s76
      %s78 = sphi 0, %s76
      %s79 = sphi 0, %s78
      %s93 = sphi 0, %s79
      %s97 = sphi 0, %s97
      %s99 = sphi 0, %s97
      %s100 = sphi 0, %s99
      %s114 = sphi 0, %s100
      %s118 = sphi 0, %s118
      %s120 = sphi 0, %s118
      %s121 = sphi 0, %s120
      %s135 = sphi 0, %s121
      %s139 = sphi 0, %s139
      %s141 = sphi 0, %s139
      %s142 = sphi 0, %s141
      %s156 = sphi 0, %s142
      %s160 = sphi 0, %s160
      %s162 = sphi 0, %s160
      %s163 = sphi 0, %s162
      %s177 = sphi 0, %s163
      %s183 = sphi 0, %s185
      %s186 = sphi 0, %s183
      %s187 = sphi 0, %s186
      %s203 = sphi 0, %s187
    $region4: #{tpu_custom_call.1} parent=1 // loop_header_branch
      %24 = sbr.rel (%p22) target = $region8
    $region5: #{tpu_custom_call.1} parent=1 // loop_body
      %s26 = ssub.s32 %s21, 1
      %s27 = ssub.s32 %s21, 2
      %s28 = sadd.s32 %s21, 1
      %s29 = ssub.s32 %s21, %s28
      %p30 = scmp.eq.s32.totalorder %s29, 0
      %s32 = sadd.s32 %s31, 1
      %s33 = scalar_select %p30, %s31, %s32
      %p36 = pneg %p30
      %p37 = scmp.eq.s32.totalorder %s21, 1
      %p38 = por %p36, %p37
      %p39 = scmp.ne.s32.totalorder %s31, %s34
      %p40 = scmp.eq.s32.totalorder %s21, 0
      %p41 = por %p39, %p40
      %p42 = scmp.ne.s32.totalorder %s31, %s34
      %p43 = scmp.eq.s32.totalorder %s26, 1
      %p44 = por %p42, %p43
      %p45 = scmp.ne.s32.totalorder %s34, %s35
      %p46 = scmp.eq.s32.totalorder %s26, 0
      %p47 = por %p45, %p46
      %p48 = scmp.ne.s32.totalorder %s34, %s35
      %p49 = scmp.eq.s32.totalorder %s27, 1
      %p50 = por %p48, %p49
      %p52 = scmp.ne.s32.totalorder %s35, %s51
      %p53 = scmp.eq.s32.totalorder %s27, 0
      %p54 = por %p52, %p53
      %s56 = sadd.s32 %s55, 1
      %p59 = scmp.eq.s32.totalorder %s21, 1
      %p60 = scmp.ne.s32.totalorder %s55, %s57
      %p61 = scmp.eq.s32.totalorder %s21, 0
      %p62 = por %p60, %p61
      %p63 = scmp.ne.s32.totalorder %s55, %s57
      %p64 = scmp.eq.s32.totalorder %s26, 1
      %p65 = por %p63, %p64
      %p66 = scmp.ne.s32.totalorder %s57, %s58
      %p67 = scmp.eq.s32.totalorder %s26, 0
      %p68 = por %p66, %p67
      %p69 = scmp.ne.s32.totalorder %s57, %s58
      %p70 = scmp.eq.s32.totalorder %s27, 1
      %p71 = por %p69, %p70
      %p73 = scmp.ne.s32.totalorder %s58, %s72
      %p74 = scmp.eq.s32.totalorder %s27, 0
      %p75 = por %p73, %p74
      %s77 = sadd.s32 %s76, 1
      %p80 = scmp.eq.s32.totalorder %s21, 1
      %p81 = scmp.ne.s32.totalorder %s76, %s78
      %p82 = scmp.eq.s32.totalorder %s21, 0
      %p83 = por %p81, %p82
      %p84 = scmp.ne.s32.totalorder %s76, %s78
      %p85 = scmp.eq.s32.totalorder %s26, 1
      %p86 = por %p84, %p85
      %p87 = scmp.ne.s32.totalorder %s78, %s79
      %p88 = scmp.eq.s32.totalorder %s26, 0
      %p89 = por %p87, %p88
      %p90 = scmp.ne.s32.totalorder %s78, %s79
      %p91 = scmp.eq.s32.totalorder %s27, 1
      %p92 = por %p90, %p91
      %p94 = scmp.ne.s32.totalorder %s79, %s93
      %p95 = scmp.eq.s32.totalorder %s27, 0
      %p96 = por %p94, %p95
      %s98 = sadd.s32 %s97, 1
      %p101 = scmp.eq.s32.totalorder %s21, 1
      %p102 = scmp.ne.s32.totalorder %s97, %s99
      %p103 = scmp.eq.s32.totalorder %s21, 0
      %p104 = por %p102, %p103
      %p105 = scmp.ne.s32.totalorder %s97, %s99
      %p106 = scmp.eq.s32.totalorder %s26, 1
      %p107 = por %p105, %p106
      %p108 = scmp.ne.s32.totalorder %s99, %s100
      %p109 = scmp.eq.s32.totalorder %s26, 0
      %p110 = por %p108, %p109
      %p111 = scmp.ne.s32.totalorder %s99, %s100
      %p112 = scmp.eq.s32.totalorder %s27, 1
      %p113 = por %p111, %p112
      %p115 = scmp.ne.s32.totalorder %s100, %s114
      %p116 = scmp.eq.s32.totalorder %s27, 0
      %p117 = por %p115, %p116
      %s119 = sadd.s32 %s118, 1
      %p122 = scmp.eq.s32.totalorder %s21, 1
      %p123 = scmp.ne.s32.totalorder %s118, %s120
      %p124 = scmp.eq.s32.totalorder %s21, 0
      %p125 = por %p123, %p124
      %p126 = scmp.ne.s32.totalorder %s118, %s120
      %p127 = scmp.eq.s32.totalorder %s26, 1
      %p128 = por %p126, %p127
      %p129 = scmp.ne.s32.totalorder %s120, %s121
      %p130 = scmp.eq.s32.totalorder %s26, 0
      %p131 = por %p129, %p130
      %p132 = scmp.ne.s32.totalorder %s120, %s121
      %p133 = scmp.eq.s32.totalorder %s27, 1
      %p134 = por %p132, %p133
      %p136 = scmp.ne.s32.totalorder %s121, %s135
      %p137 = scmp.eq.s32.totalorder %s27, 0
      %p138 = por %p136, %p137
      %s140 = sadd.s32 %s139, 1
      %p143 = scmp.eq.s32.totalorder %s21, 1
      %p144 = scmp.ne.s32.totalorder %s139, %s141
      %p145 = scmp.eq.s32.totalorder %s21, 0
      %p146 = por %p144, %p145
      %p147 = scmp.ne.s32.totalorder %s139, %s141
      %p148 = scmp.eq.s32.totalorder %s26, 1
      %p149 = por %p147, %p148
      %p150 = scmp.ne.s32.totalorder %s141, %s142
      %p151 = scmp.eq.s32.totalorder %s26, 0
      %p152 = por %p150, %p151
      %p153 = scmp.ne.s32.totalorder %s141, %s142
      %p154 = scmp.eq.s32.totalorder %s27, 1
      %p155 = por %p153, %p154
      %p157 = scmp.ne.s32.totalorder %s142, %s156
      %p158 = scmp.eq.s32.totalorder %s27, 0
      %p159 = por %p157, %p158
      %s161 = sadd.s32 %s160, 1
      %p164 = scmp.eq.s32.totalorder %s21, 1
      %p165 = scmp.ne.s32.totalorder %s160, %s162
      %p166 = scmp.eq.s32.totalorder %s21, 0
      %p167 = por %p165, %p166
      %p168 = scmp.ne.s32.totalorder %s160, %s162
      %p169 = scmp.eq.s32.totalorder %s26, 1
      %p170 = por %p168, %p169
      %p171 = scmp.ne.s32.totalorder %s162, %s163
      %p172 = scmp.eq.s32.totalorder %s26, 0
      %p173 = por %p171, %p172
      %p174 = scmp.ne.s32.totalorder %s162, %s163
      %p175 = scmp.eq.s32.totalorder %s27, 1
      %p176 = por %p174, %p175
      %p178 = scmp.ne.s32.totalorder %s163, %s177
      %p179 = scmp.eq.s32.totalorder %s27, 0
      %p180 = por %p178, %p179
      %s181 = ssub.s32 %s21, %s28
      %p182 = scmp.eq.s32.totalorder %s181, 0
      %s184 = sadd.s32 %s183, 1
      %s185 = scalar_select %p182, %s183, %s184
      %p188 = pneg %p182
      %p189 = scmp.eq.s32.totalorder %s21, 1
      %p190 = por %p188, %p189
      %p191 = scmp.ne.s32.totalorder %s183, %s186
      %p192 = scmp.eq.s32.totalorder %s21, 0
      %p193 = por %p191, %p192
      %p194 = scmp.ne.s32.totalorder %s183, %s186
      %p195 = scmp.eq.s32.totalorder %s26, 1
      %p196 = por %p194, %p195
      %p197 = scmp.ne.s32.totalorder %s186, %s187
      %p198 = scmp.eq.s32.totalorder %s26, 0
      %p199 = por %p197, %p198
      %p200 = scmp.ne.s32.totalorder %s186, %s187
      %p201 = scmp.eq.s32.totalorder %s27, 1
      %p202 = por %p200, %p201
      %p204 = scmp.ne.s32.totalorder %s187, %s203
      %p205 = scmp.eq.s32.totalorder %s27, 0
      %p206 = por %p204, %p205
      %p207 = scmp.le.s32.totalorder 1, %s21
      %p208 = scmp.lt.s32.totalorder %s21, 3
      %p209 = pnand %p207, %p208
      %p210 = pneg %p209
      // Predicated region
      $region9: #{tpu_custom_call.1} parent=5 // pred_check
        _
      $region10: #{tpu_custom_call.1} parent=5 // pred_check_branch
        %212 = sbr.rel (%p209) target = $region12
      $region11: #{tpu_custom_call.1} parent=5 // pred_region
        %s213 = ssub.s32 %s21, 1
        // Predicated region
        $region13: #{tpu_custom_call.1} parent=11 // pred_check
          %p214 = pneg %p68
        $region14: #{tpu_custom_call.1} parent=11 // pred_check_branch
          %216 = sbr.rel (%p214) target = $region16
        $region15: #{tpu_custom_call.1} parent=11 // pred_region
          %s218 = ssub.s32 4096, 4096
          %219 = vsyncadd [#allocation6], %s218
          %s220 = sshll.u32 [#allocation5], 4
          %s221 = int_to_ptr.vmem [resolvable:$true] %s220
          %226 = dma.hbm_to_vmem [thread:$0]  %s1, 4096, %s221, [#allocation6], 64, 64, 4
        $region16: #{tpu_custom_call.1} parent=11 // pred_fallthru
          _
        // Predicated region
        $region17: #{tpu_custom_call.1} parent=11 // pred_check
          %p227 = pneg %p89
        $region18: #{tpu_custom_call.1} parent=11 // pred_check_branch
          %229 = sbr.rel (%p227) target = $region20
        $region19: #{tpu_custom_call.1} parent=11 // pred_region
          _
        $region20: #{tpu_custom_call.1} parent=11 // pred_fallthru
          _
        // Predicated region
        $region21: #{tpu_custom_call.1} parent=11 // pred_check
          %p230 = pneg %p110
        $region22: #{tpu_custom_call.1} parent=11 // pred_check_branch
          %232 = sbr.rel (%p230) target = $region24
        $region23: #{tpu_custom_call.1} parent=11 // pred_region
          %s234 = ssub.s32 9216, 9216
          %235 = vsyncadd [#allocation6], %s234
          %s236 = sshll.u32 [#allocation7], 4
          %s237 = int_to_ptr.vmem [resolvable:$true] %s236
          %242 = dma.hbm_to_vmem [thread:$0]  %s3, 9216, %s237, [#allocation6], 64, 64, 4
        $region24: #{tpu_custom_call.1} parent=11 // pred_fallthru
          _
        // Predicated region
        $region25: #{tpu_custom_call.1} parent=11 // pred_check
          %p243 = pneg %p131
        $region26: #{tpu_custom_call.1} parent=11 // pred_check_branch
          %245 = sbr.rel (%p243) target = $region28
        $region27: #{tpu_custom_call.1} parent=11 // pred_region
          _
        $region28: #{tpu_custom_call.1} parent=11 // pred_fallthru
          _
        // Predicated region
        $region29: #{tpu_custom_call.1} parent=11 // pred_check
          %p246 = pneg %p152
        $region30: #{tpu_custom_call.1} parent=11 // pred_check_branch
          %248 = sbr.rel (%p246) target = $region32
        $region31: #{tpu_custom_call.1} parent=11 // pred_region
          %s250 = ssub.s32 4096, 4096
          %251 = vsyncadd [#allocation9], %s250
          %s252 = sshll.u32 [#allocation8], 4
          %s253 = int_to_ptr.vmem [resolvable:$true] %s252
          %258 = dma.hbm_to_vmem [thread:$0]  %s5, 4096, %s253, [#allocation9], 256, 256, 16
        $region32: #{tpu_custom_call.1} parent=11 // pred_fallthru
          _
        // Predicated region
        $region33: #{tpu_custom_call.1} parent=11 // pred_check
          %p259 = pneg %p173
        $region34: #{tpu_custom_call.1} parent=11 // pred_check_branch
          %261 = sbr.rel (%p259) target = $region36
        $region35: #{tpu_custom_call.1} parent=11 // pred_region
          _
        $region36: #{tpu_custom_call.1} parent=11 // pred_fallthru
          _
      $region12: #{tpu_custom_call.1} parent=5 // pred_fallthru
        _
      %p262 = scmp.lt.s32.totalorder %s21, 2
      // Predicated region
      $region37: #{tpu_custom_call.1} parent=5 // pred_check
        %p263 = pneg %p262
      $region38: #{tpu_custom_call.1} parent=5 // pred_check_branch
        %265 = sbr.rel (%p263) target = $region40
      $region39: #{tpu_custom_call.1} parent=5 // pred_region
        // Predicated region
        $region41: #{tpu_custom_call.1} parent=39 // pred_check
          %p266 = pneg %p41
        $region42: #{tpu_custom_call.1} parent=39 // pred_check_branch
          %268 = sbr.rel (%p266) target = $region44
        $region43: #{tpu_custom_call.1} parent=39 // pred_region
          %s269 = sand.u32 %s31, 1
          %s270 = scalar_lea.sflag [#allocation3], %s269
          %s271 = sand.u32 %s31, 1
          %s272 = smul.addr %s271, 1024
          %s273 = scalar_lea.vmem [#allocation2], %s272
          %s275 = ssub.s32 16384, 16384
          %276 = vsyncadd %s270, %s275
          %s277 = smul.addr %s21, 128
          %s278 = smul.addr %s277, 128
          %s279 = scalar_lea.hbm %s0, %s278
          %s280 = sshll.u32 %s273, 4
          %s281 = int_to_ptr.vmem [resolvable:$true] %s280
          %286 = dma.hbm_to_vmem [thread:$0]  %s279, 16384, %s281, %s270, 512, 512, 32
        $region44: #{tpu_custom_call.1} parent=39 // pred_fallthru
          _
      $region40: #{tpu_custom_call.1} parent=5 // pred_fallthru
        _
      %p287 = scmp.le.s32.totalorder 1, %s21
      %p288 = scmp.lt.s32.totalorder %s21, 3
      %p289 = pnand %p287, %p288
      %p290 = pneg %p289
      // Predicated region
      $region45: #{tpu_custom_call.1} parent=5 // pred_check
        _
      $region46: #{tpu_custom_call.1} parent=5 // pred_check_branch
        %292 = sbr.rel (%p289) target = $region48
      $region47: #{tpu_custom_call.1} parent=5 // pred_region
        %s293 = ssub.s32 %s21, 1
        %s294 = sand.u32 %s34, 1
        %s295 = scalar_lea.sflag [#allocation3], %s294
        %s296 = sand.u32 %s34, 1
        %s297 = smul.addr %s296, 1024
        %s298 = scalar_lea.vmem [#allocation2], %s297
        // Predicated region
        $region49: #{tpu_custom_call.1} parent=47 // pred_check
          %p299 = pneg %p47
        $region50: #{tpu_custom_call.1} parent=47 // pred_check_branch
          %301 = sbr.rel (%p299) target = $region52
        $region51: #{tpu_custom_call.1} parent=47 // pred_region
          %302 = dma.done %s295, 16384
        $region52: #{tpu_custom_call.1} parent=47 // pred_fallthru
          _
        // Predicated region
        $region53: #{tpu_custom_call.1} parent=47 // pred_check
          %p303 = pneg %p68
        $region54: #{tpu_custom_call.1} parent=47 // pred_check_branch
          %305 = sbr.rel (%p303) target = $region56
        $region55: #{tpu_custom_call.1} parent=47 // pred_region
          %306 = dma.done [#allocation6], 4096
        $region56: #{tpu_custom_call.1} parent=47 // pred_fallthru
          _
        // Predicated region
        $region57: #{tpu_custom_call.1} parent=47 // pred_check
          %p307 = pneg %p110
        $region58: #{tpu_custom_call.1} parent=47 // pred_check_branch
          %309 = sbr.rel (%p307) target = $region60
        $region59: #{tpu_custom_call.1} parent=47 // pred_region
          %310 = dma.done [#allocation6], 9216
        $region60: #{tpu_custom_call.1} parent=47 // pred_fallthru
          _
        // Predicated region
        $region61: #{tpu_custom_call.1} parent=47 // pred_check
          %p311 = pneg %p152
        $region62: #{tpu_custom_call.1} parent=47 // pred_check_branch
          %313 = sbr.rel (%p311) target = $region64
        $region63: #{tpu_custom_call.1} parent=47 // pred_region
          %314 = dma.done [#allocation9], 4096
        $region64: #{tpu_custom_call.1} parent=47 // pred_fallthru
          _
        %s315 = sand.u32 %s34, 1
        %s316 = scalar_lea.sflag [#allocation3], %s315
        %s317 = sand.u32 %s34, 1
        %s318 = smul.addr %s317, 1024
        %s319 = scalar_lea.vmem [#allocation2], %s318
        %p320 = pneg %p47
        %p321 = pneg %p44
        %p322 = pneg %p68
        %p323 = pneg %p65
        %p324 = pneg %p89
        %p325 = pneg %p86
        %p326 = pneg %p110
        %p327 = pneg %p107
        %p328 = pneg %p131
        %p329 = pneg %p128
        %p330 = pneg %p152
        %p331 = pneg %p149
        %p332 = pneg %p173
        %p333 = pneg %p170
        %p334 = pneg %p199
        %p335 = pneg %p196
        %s336 = sand.u32 %s186, 1
        %s337 = scalar_lea.sflag [#allocation4], %s336
        %s338 = sand.u32 %s186, 1
        %s339 = smul.addr %s338, 1024
        %s340 = scalar_lea.vmem [#allocation10], %s339
        %v342 = vld [vmem:[%s298] sm:$0xff]
        %v343 = vld [vmem:[%s298 + $0x8] sm:$0xff]
        %v344 = vld [vmem:[%s298 + $0x10] sm:$0xff]
        %v345 = vld [vmem:[%s298 + $0x18] sm:$0xff]
        %v346 = vld [vmem:[%s298 + $0x20] sm:$0xff]
        %v347 = vld [vmem:[%s298 + $0x28] sm:$0xff]
        %v348 = vld [vmem:[%s298 + $0x30] sm:$0xff]
        %v349 = vld [vmem:[%s298 + $0x38] sm:$0xff]
        %v350 = vld [vmem:[%s298 + $0x40] sm:$0xff]
        %v351 = vld [vmem:[%s298 + $0x48] sm:$0xff]
        %v352 = vld [vmem:[%s298 + $0x50] sm:$0xff]
        %v353 = vld [vmem:[%s298 + $0x58] sm:$0xff]
        %v354 = vld [vmem:[%s298 + $0x60] sm:$0xff]
        %v355 = vld [vmem:[%s298 + $0x68] sm:$0xff]
        %v356 = vld [vmem:[%s298 + $0x70] sm:$0xff]
        %v357 = vld [vmem:[%s298 + $0x78] sm:$0xff]
        %v358 = vld [vmem:[%s298 + $0x80] sm:$0xff]
        %v359 = vld [vmem:[%s298 + $0x88] sm:$0xff]
        %v360 = vld [vmem:[%s298 + $0x90] sm:$0xff]
        %v361 = vld [vmem:[%s298 + $0x98] sm:$0xff]
        %v362 = vld [vmem:[%s298 + $0xa0] sm:$0xff]
        %v363 = vld [vmem:[%s298 + $0xa8] sm:$0xff]
        %v364 = vld [vmem:[%s298 + $0xb0] sm:$0xff]
        %v365 = vld [vmem:[%s298 + $0xb8] sm:$0xff]
        %v366 = vld [vmem:[%s298 + $0xc0] sm:$0xff]
        %v367 = vld [vmem:[%s298 + $0xc8] sm:$0xff]
        %v368 = vld [vmem:[%s298 + $0xd0] sm:$0xff]
        %v369 = vld [vmem:[%s298 + $0xd8] sm:$0xff]
        %v370 = vld [vmem:[%s298 + $0xe0] sm:$0xff]
        %v371 = vld [vmem:[%s298 + $0xe8] sm:$0xff]
        %v372 = vld [vmem:[%s298 + $0xf0] sm:$0xff]
        %v373 = vld [vmem:[%s298 + $0xf8] sm:$0xff]
        %v374 = vld [vmem:[%s298 + $0x100] sm:$0xff]
        %v375 = vld [vmem:[%s298 + $0x108] sm:$0xff]
        %v376 = vld [vmem:[%s298 + $0x110] sm:$0xff]
        %v377 = vld [vmem:[%s298 + $0x118] sm:$0xff]
        %v378 = vld [vmem:[%s298 + $0x120] sm:$0xff]
        %v379 = vld [vmem:[%s298 + $0x128] sm:$0xff]
        %v380 = vld [vmem:[%s298 + $0x130] sm:$0xff]
        %v381 = vld [vmem:[%s298 + $0x138] sm:$0xff]
        %v382 = vld [vmem:[%s298 + $0x140] sm:$0xff]
        %v383 = vld [vmem:[%s298 + $0x148] sm:$0xff]
        %v384 = vld [vmem:[%s298 + $0x150] sm:$0xff]
        %v385 = vld [vmem:[%s298 + $0x158] sm:$0xff]
        %v386 = vld [vmem:[%s298 + $0x160] sm:$0xff]
        %v387 = vld [vmem:[%s298 + $0x168] sm:$0xff]
        %v388 = vld [vmem:[%s298 + $0x170] sm:$0xff]
        %v389 = vld [vmem:[%s298 + $0x178] sm:$0xff]
        %v390 = vld [vmem:[%s298 + $0x180] sm:$0xff]
        %v391 = vld [vmem:[%s298 + $0x188] sm:$0xff]
        %v392 = vld [vmem:[%s298 + $0x190] sm:$0xff]
        %v393 = vld [vmem:[%s298 + $0x198] sm:$0xff]
        %v394 = vld [vmem:[%s298 + $0x1a0] sm:$0xff]
        %v395 = vld [vmem:[%s298 + $0x1a8] sm:$0xff]
        %v396 = vld [vmem:[%s298 + $0x1b0] sm:$0xff]
        %v397 = vld [vmem:[%s298 + $0x1b8] sm:$0xff]
        %v398 = vld [vmem:[%s298 + $0x1c0] sm:$0xff]
        %v399 = vld [vmem:[%s298 + $0x1c8] sm:$0xff]
        %v400 = vld [vmem:[%s298 + $0x1d0] sm:$0xff]
        %v401 = vld [vmem:[%s298 + $0x1d8] sm:$0xff]
        %v402 = vld [vmem:[%s298 + $0x1e0] sm:$0xff]
        %v403 = vld [vmem:[%s298 + $0x1e8] sm:$0xff]
        %v404 = vld [vmem:[%s298 + $0x1f0] sm:$0xff]
        %v405 = vld [vmem:[%s298 + $0x1f8] sm:$0xff]
        %v406 = vld [vmem:[%s298 + $0x200] sm:$0xff]
        %v407 = vld [vmem:[%s298 + $0x208] sm:$0xff]
        %v408 = vld [vmem:[%s298 + $0x210] sm:$0xff]
        %v409 = vld [vmem:[%s298 + $0x218] sm:$0xff]
        %v410 = vld [vmem:[%s298 + $0x220] sm:$0xff]
        %v411 = vld [vmem:[%s298 + $0x228] sm:$0xff]
        %v412 = vld [vmem:[%s298 + $0x230] sm:$0xff]
        %v413 = vld [vmem:[%s298 + $0x238] sm:$0xff]
        %v414 = vld [vmem:[%s298 + $0x240] sm:$0xff]
        %v415 = vld [vmem:[%s298 + $0x248] sm:$0xff]
        %v416 = vld [vmem:[%s298 + $0x250] sm:$0xff]
        %v417 = vld [vmem:[%s298 + $0x258] sm:$0xff]
        %v418 = vld [vmem:[%s298 + $0x260] sm:$0xff]
        %v419 = vld [vmem:[%s298 + $0x268] sm:$0xff]
        %v420 = vld [vmem:[%s298 + $0x270] sm:$0xff]
        %v421 = vld [vmem:[%s298 + $0x278] sm:$0xff]
        %v422 = vld [vmem:[%s298 + $0x280] sm:$0xff]
        %v423 = vld [vmem:[%s298 + $0x288] sm:$0xff]
        %v424 = vld [vmem:[%s298 + $0x290] sm:$0xff]
        %v425 = vld [vmem:[%s298 + $0x298] sm:$0xff]
        %v426 = vld [vmem:[%s298 + $0x2a0] sm:$0xff]
        %v427 = vld [vmem:[%s298 + $0x2a8] sm:$0xff]
        %v428 = vld [vmem:[%s298 + $0x2b0] sm:$0xff]
        %v429 = vld [vmem:[%s298 + $0x2b8] sm:$0xff]
        %v430 = vld [vmem:[%s298 + $0x2c0] sm:$0xff]
        %v431 = vld [vmem:[%s298 + $0x2c8] sm:$0xff]
        %v432 = vld [vmem:[%s298 + $0x2d0] sm:$0xff]
        %v433 = vld [vmem:[%s298 + $0x2d8] sm:$0xff]
        %v434 = vld [vmem:[%s298 + $0x2e0] sm:$0xff]
        %v435 = vld [vmem:[%s298 + $0x2e8] sm:$0xff]
        %v436 = vld [vmem:[%s298 + $0x2f0] sm:$0xff]
        %v437 = vld [vmem:[%s298 + $0x2f8] sm:$0xff]
        %v438 = vld [vmem:[%s298 + $0x300] sm:$0xff]
        %v439 = vld [vmem:[%s298 + $0x308] sm:$0xff]
        %v440 = vld [vmem:[%s298 + $0x310] sm:$0xff]
        %v441 = vld [vmem:[%s298 + $0x318] sm:$0xff]
        %v442 = vld [vmem:[%s298 + $0x320] sm:$0xff]
        %v443 = vld [vmem:[%s298 + $0x328] sm:$0xff]
        %v444 = vld [vmem:[%s298 + $0x330] sm:$0xff]
        %v445 = vld [vmem:[%s298 + $0x338] sm:$0xff]
        %v446 = vld [vmem:[%s298 + $0x340] sm:$0xff]
        %v447 = vld [vmem:[%s298 + $0x348] sm:$0xff]
        %v448 = vld [vmem:[%s298 + $0x350] sm:$0xff]
        %v449 = vld [vmem:[%s298 + $0x358] sm:$0xff]
        %v450 = vld [vmem:[%s298 + $0x360] sm:$0xff]
        %v451 = vld [vmem:[%s298 + $0x368] sm:$0xff]
        %v452 = vld [vmem:[%s298 + $0x370] sm:$0xff]
        %v453 = vld [vmem:[%s298 + $0x378] sm:$0xff]
        %v454 = vld [vmem:[%s298 + $0x380] sm:$0xff]
        %v455 = vld [vmem:[%s298 + $0x388] sm:$0xff]
        %v456 = vld [vmem:[%s298 + $0x390] sm:$0xff]
        %v457 = vld [vmem:[%s298 + $0x398] sm:$0xff]
        %v458 = vld [vmem:[%s298 + $0x3a0] sm:$0xff]
        %v459 = vld [vmem:[%s298 + $0x3a8] sm:$0xff]
        %v460 = vld [vmem:[%s298 + $0x3b0] sm:$0xff]
        %v461 = vld [vmem:[%s298 + $0x3b8] sm:$0xff]
        %v462 = vld [vmem:[%s298 + $0x3c0] sm:$0xff]
        %v463 = vld [vmem:[%s298 + $0x3c8] sm:$0xff]
        %v464 = vld [vmem:[%s298 + $0x3d0] sm:$0xff]
        %v465 = vld [vmem:[%s298 + $0x3d8] sm:$0xff]
        %v466 = vld [vmem:[%s298 + $0x3e0] sm:$0xff]
        %v467 = vld [vmem:[%s298 + $0x3e8] sm:$0xff]
        %v468 = vld [vmem:[%s298 + $0x3f0] sm:$0xff]
        %v469 = vld [vmem:[%s298 + $0x3f8] sm:$0xff]
        %v470 = vpack.c.bf16 %v346, %v342
        %v471 = vpack.c.bf16 %v347, %v343
        %v472 = vpack.c.bf16 %v348, %v344
        %v473 = vpack.c.bf16 %v349, %v345
        %v474 = vpack.c.bf16 %v354, %v350
        %v475 = vpack.c.bf16 %v355, %v351
        %v476 = vpack.c.bf16 %v356, %v352
        %v477 = vpack.c.bf16 %v357, %v353
        %v478 = vpack.c.bf16 %v362, %v358
        %v479 = vpack.c.bf16 %v363, %v359
        %v480 = vpack.c.bf16 %v364, %v360
        %v481 = vpack.c.bf16 %v365, %v361
        %v482 = vpack.c.bf16 %v370, %v366
        %v483 = vpack.c.bf16 %v371, %v367
        %v484 = vpack.c.bf16 %v372, %v368
        %v485 = vpack.c.bf16 %v373, %v369
        %v486 = vpack.c.bf16 %v378, %v374
        %v487 = vpack.c.bf16 %v379, %v375
        %v488 = vpack.c.bf16 %v380, %v376
        %v489 = vpack.c.bf16 %v381, %v377
        %v490 = vpack.c.bf16 %v386, %v382
        %v491 = vpack.c.bf16 %v387, %v383
        %v492 = vpack.c.bf16 %v388, %v384
        %v493 = vpack.c.bf16 %v389, %v385
        %v494 = vpack.c.bf16 %v394, %v390
        %v495 = vpack.c.bf16 %v395, %v391
        %v496 = vpack.c.bf16 %v396, %v392
        %v497 = vpack.c.bf16 %v397, %v393
        %v498 = vpack.c.bf16 %v402, %v398
        %v499 = vpack.c.bf16 %v403, %v399
        %v500 = vpack.c.bf16 %v404, %v400
        %v501 = vpack.c.bf16 %v405, %v401
        %v502 = vpack.c.bf16 %v410, %v406
        %v503 = vpack.c.bf16 %v411, %v407
        %v504 = vpack.c.bf16 %v412, %v408
        %v505 = vpack.c.bf16 %v413, %v409
        %v506 = vpack.c.bf16 %v418, %v414
        %v507 = vpack.c.bf16 %v419, %v415
        %v508 = vpack.c.bf16 %v420, %v416
        %v509 = vpack.c.bf16 %v421, %v417
        %v510 = vpack.c.bf16 %v426, %v422
        %v511 = vpack.c.bf16 %v427, %v423
        %v512 = vpack.c.bf16 %v428, %v424
        %v513 = vpack.c.bf16 %v429, %v425
        %v514 = vpack.c.bf16 %v434, %v430
        %v515 = vpack.c.bf16 %v435, %v431
        %v516 = vpack.c.bf16 %v436, %v432
        %v517 = vpack.c.bf16 %v437, %v433
        %v518 = vpack.c.bf16 %v442, %v438
        %v519 = vpack.c.bf16 %v443, %v439
        %v520 = vpack.c.bf16 %v444, %v440
        %v521 = vpack.c.bf16 %v445, %v441
        %v522 = vpack.c.bf16 %v450, %v446
        %v523 = vpack.c.bf16 %v451, %v447
        %v524 = vpack.c.bf16 %v452, %v448
        %v525 = vpack.c.bf16 %v453, %v449
        %v526 = vpack.c.bf16 %v458, %v454
        %v527 = vpack.c.bf16 %v459, %v455
        %v528 = vpack.c.bf16 %v460, %v456
        %v529 = vpack.c.bf16 %v461, %v457
        %v530 = vpack.c.bf16 %v466, %v462
        %v531 = vpack.c.bf16 %v467, %v463
        %v532 = vpack.c.bf16 %v468, %v464
        %v533 = vpack.c.bf16 %v469, %v465
        %v534 = vld [vmem:[#allocation5] sm:$0xf]
        %v535 = vld [vmem:[#allocation5 + $0x4] sm:$0xf]
        %v536 = vld [vmem:[#allocation5 + $0x8] sm:$0xf]
        %v537 = vld [vmem:[#allocation5 + $0xc] sm:$0xf]
        %v538 = vld [vmem:[#allocation5 + $0x10] sm:$0xf]
        %v539 = vld [vmem:[#allocation5 + $0x14] sm:$0xf]
        %v540 = vld [vmem:[#allocation5 + $0x18] sm:$0xf]
        %v541 = vld [vmem:[#allocation5 + $0x1c] sm:$0xf]
        %v542 = vld [vmem:[#allocation5 + $0x20] sm:$0xf]
        %v543 = vld [vmem:[#allocation5 + $0x24] sm:$0xf]
        %v544 = vld [vmem:[#allocation5 + $0x28] sm:$0xf]
        %v545 = vld [vmem:[#allocation5 + $0x2c] sm:$0xf]
        %v546 = vld [vmem:[#allocation5 + $0x30] sm:$0xf]
        %v547 = vld [vmem:[#allocation5 + $0x34] sm:$0xf]
        %v548 = vld [vmem:[#allocation5 + $0x38] sm:$0xf]
        %v549 = vld [vmem:[#allocation5 + $0x3c] sm:$0xf]
        %v550 = vld [vmem:[#allocation5 + $0x40] sm:$0xf]
        %v551 = vld [vmem:[#allocation5 + $0x44] sm:$0xf]
        %v552 = vld [vmem:[#allocation5 + $0x48] sm:$0xf]
        %v553 = vld [vmem:[#allocation5 + $0x4c] sm:$0xf]
        %v554 = vld [vmem:[#allocation5 + $0x50] sm:$0xf]
        %v555 = vld [vmem:[#allocation5 + $0x54] sm:$0xf]
        %v556 = vld [vmem:[#allocation5 + $0x58] sm:$0xf]
        %v557 = vld [vmem:[#allocation5 + $0x5c] sm:$0xf]
        %v558 = vld [vmem:[#allocation5 + $0x60] sm:$0xf]
        %v559 = vld [vmem:[#allocation5 + $0x64] sm:$0xf]
        %v560 = vld [vmem:[#allocation5 + $0x68] sm:$0xf]
        %v561 = vld [vmem:[#allocation5 + $0x6c] sm:$0xf]
        %v562 = vld [vmem:[#allocation5 + $0x70] sm:$0xf]
        %v563 = vld [vmem:[#allocation5 + $0x74] sm:$0xf]
        %v564 = vld [vmem:[#allocation5 + $0x78] sm:$0xf]
        %v565 = vld [vmem:[#allocation5 + $0x7c] sm:$0xf]
        %v566 = vld [vmem:[#allocation5 + $0x80] sm:$0xf]
        %v567 = vld [vmem:[#allocation5 + $0x84] sm:$0xf]
        %v568 = vld [vmem:[#allocation5 + $0x88] sm:$0xf]
        %v569 = vld [vmem:[#allocation5 + $0x8c] sm:$0xf]
        %v570 = vld [vmem:[#allocation5 + $0x90] sm:$0xf]
        %v571 = vld [vmem:[#allocation5 + $0x94] sm:$0xf]
        %v572 = vld [vmem:[#allocation5 + $0x98] sm:$0xf]
        %v573 = vld [vmem:[#allocation5 + $0x9c] sm:$0xf]
        %v574 = vld [vmem:[#allocation5 + $0xa0] sm:$0xf]
        %v575 = vld [vmem:[#allocation5 + $0xa4] sm:$0xf]
        %v576 = vld [vmem:[#allocation5 + $0xa8] sm:$0xf]
        %v577 = vld [vmem:[#allocation5 + $0xac] sm:$0xf]
        %v578 = vld [vmem:[#allocation5 + $0xb0] sm:$0xf]
        %v579 = vld [vmem:[#allocation5 + $0xb4] sm:$0xf]
        %v580 = vld [vmem:[#allocation5 + $0xb8] sm:$0xf]
        %v581 = vld [vmem:[#allocation5 + $0xbc] sm:$0xf]
        %v582 = vld [vmem:[#allocation5 + $0xc0] sm:$0xf]
        %v583 = vld [vmem:[#allocation5 + $0xc4] sm:$0xf]
        %v584 = vld [vmem:[#allocation5 + $0xc8] sm:$0xf]
        %v585 = vld [vmem:[#allocation5 + $0xcc] sm:$0xf]
        %v586 = vld [vmem:[#allocation5 + $0xd0] sm:$0xf]
        %v587 = vld [vmem:[#allocation5 + $0xd4] sm:$0xf]
        %v588 = vld [vmem:[#allocation5 + $0xd8] sm:$0xf]
        %v589 = vld [vmem:[#allocation5 + $0xdc] sm:$0xf]
        %v590 = vld [vmem:[#allocation5 + $0xe0] sm:$0xf]
        %v591 = vld [vmem:[#allocation5 + $0xe4] sm:$0xf]
        %v592 = vld [vmem:[#allocation5 + $0xe8] sm:$0xf]
        %v593 = vld [vmem:[#allocation5 + $0xec] sm:$0xf]
        %v594 = vld [vmem:[#allocation5 + $0xf0] sm:$0xf]
        %v595 = vld [vmem:[#allocation5 + $0xf4] sm:$0xf]
        %v596 = vld [vmem:[#allocation5 + $0xf8] sm:$0xf]
        %v597 = vld [vmem:[#allocation5 + $0xfc] sm:$0xf]
        %v598 = vld [vmem:[%s2] sm:$0x1]
        %v600 = vlaneseq
        %v601 = vshrl.u32 %v600, 7
        %v602 = vsub.s32 0, %v601
        %v603 = vrot.slane %v598, %v602
        %v669 = vunpack.c.l.b16 %v534
        %v670 = vunpack.c.l.b16 %v535
        %v671 = vunpack.c.l.b16 %v536
        %v672 = vunpack.c.l.b16 %v537
        %v673 = vunpack.c.l.b16 %v538
        %v674 = vunpack.c.l.b16 %v539
        %v675 = vunpack.c.l.b16 %v540
        %v676 = vunpack.c.l.b16 %v541
        %v677 = vunpack.c.l.b16 %v542
        %v678 = vunpack.c.l.b16 %v543
        %v679 = vunpack.c.l.b16 %v544
        %v680 = vunpack.c.l.b16 %v545
        %v681 = vunpack.c.l.b16 %v546
        %v682 = vunpack.c.l.b16 %v547
        %v683 = vunpack.c.l.b16 %v548
        %v684 = vunpack.c.l.b16 %v549
        %v685 = vunpack.c.l.b16 %v550
        %v686 = vunpack.c.l.b16 %v551
        %v687 = vunpack.c.l.b16 %v552
        %v688 = vunpack.c.l.b16 %v553
        %v689 = vunpack.c.l.b16 %v554
        %v690 = vunpack.c.l.b16 %v555
        %v691 = vunpack.c.l.b16 %v556
        %v692 = vunpack.c.l.b16 %v557
        %v693 = vunpack.c.l.b16 %v558
        %v694 = vunpack.c.l.b16 %v559
        %v695 = vunpack.c.l.b16 %v560
        %v696 = vunpack.c.l.b16 %v561
        %v697 = vunpack.c.l.b16 %v562
        %v698 = vunpack.c.l.b16 %v563
        %v699 = vunpack.c.l.b16 %v564
        %v700 = vunpack.c.l.b16 %v565
        %v701 = vunpack.c.l.b16 %v566
        %v702 = vunpack.c.l.b16 %v567
        %v703 = vunpack.c.l.b16 %v568
        %v704 = vunpack.c.l.b16 %v569
        %v705 = vunpack.c.l.b16 %v570
        %v706 = vunpack.c.l.b16 %v571
        %v707 = vunpack.c.l.b16 %v572
        %v708 = vunpack.c.l.b16 %v573
        %v709 = vunpack.c.l.b16 %v574
        %v710 = vunpack.c.l.b16 %v575
        %v711 = vunpack.c.l.b16 %v576
        %v712 = vunpack.c.l.b16 %v577
        %v713 = vunpack.c.l.b16 %v578
        %v714 = vunpack.c.l.b16 %v579
        %v715 = vunpack.c.l.b16 %v580
        %v716 = vunpack.c.l.b16 %v581
        %v717 = vunpack.c.l.b16 %v582
        %v718 = vunpack.c.l.b16 %v583
        %v719 = vunpack.c.l.b16 %v584
        %v720 = vunpack.c.l.b16 %v585
        %v721 = vunpack.c.l.b16 %v586
        %v722 = vunpack.c.l.b16 %v587
        %v723 = vunpack.c.l.b16 %v588
        %v724 = vunpack.c.l.b16 %v589
        %v725 = vunpack.c.l.b16 %v590
        %v726 = vunpack.c.l.b16 %v591
        %v727 = vunpack.c.l.b16 %v592
        %v728 = vunpack.c.l.b16 %v593
        %v729 = vunpack.c.l.b16 %v594
        %v730 = vunpack.c.l.b16 %v595
        %v731 = vunpack.c.l.b16 %v596
        %v732 = vunpack.c.l.b16 %v597
        %v733 = vpack.c.b16 %v670, %v669
        %v734 = vpack.c.b16 %v672, %v671
        %v735 = vpack.c.b16 %v674, %v673
        %v736 = vpack.c.b16 %v676, %v675
        %v737 = vpack.c.b16 %v678, %v677
        %v738 = vpack.c.b16 %v680, %v679
        %v739 = vpack.c.b16 %v682, %v681
        %v740 = vpack.c.b16 %v684, %v683
        %v741 = vpack.c.b16 %v686, %v685
        %v742 = vpack.c.b16 %v688, %v687
        %v743 = vpack.c.b16 %v690, %v689
        %v744 = vpack.c.b16 %v692, %v691
        %v745 = vpack.c.b16 %v694, %v693
        %v746 = vpack.c.b16 %v696, %v695
        %v747 = vpack.c.b16 %v698, %v697
        %v748 = vpack.c.b16 %v700, %v699
        %v749 = vpack.c.b16 %v702, %v701
        %v750 = vpack.c.b16 %v704, %v703
        %v751 = vpack.c.b16 %v706, %v705
        %v752 = vpack.c.b16 %v708, %v707
        %v753 = vpack.c.b16 %v710, %v709
        %v754 = vpack.c.b16 %v712, %v711
        %v755 = vpack.c.b16 %v714, %v713
        %v756 = vpack.c.b16 %v716, %v715
        %v757 = vpack.c.b16 %v718, %v717
        %v758 = vpack.c.b16 %v720, %v719
        %v759 = vpack.c.b16 %v722, %v721
        %v760 = vpack.c.b16 %v724, %v723
        %v761 = vpack.c.b16 %v726, %v725
        %v762 = vpack.c.b16 %v728, %v727
        %v763 = vpack.c.b16 %v730, %v729
        %v764 = vpack.c.b16 %v732, %v731
        %797 = vmatprep.subr.bf16.mxu0 0
        %798 = vmatpush1.bf16.msra.mxu0 %v740
        %799 = vmatprep.subr.bf16.mxu0 0
        %800 = vmatpush1.bf16.msra.mxu0 %v739
        %801 = vmatprep.subr.bf16.mxu0 0
        %802 = vmatpush1.bf16.msra.mxu0 %v738
        %803 = vmatprep.subr.bf16.mxu0 0
        %804 = vmatpush1.bf16.msra.mxu0 %v737
        %805 = vmatprep.subr.bf16.mxu0 0
        %806 = vmatpush1.bf16.msra.mxu0 %v736
        %807 = vmatprep.subr.bf16.mxu0 0
        %808 = vmatpush1.bf16.msra.mxu0 %v735
        %809 = vmatprep.subr.bf16.mxu0 0
        %810 = vmatpush1.bf16.msra.mxu0 %v734
        %811 = vmatprep.subr.bf16.mxu0 0
        %812 = vmatpush1.bf16.msra.mxu0 %v733
        %813 = vmatprep.subr.bf16.mxu0 0
        %814 = vmatpush2.bf16.msra.mxu0 %v748
        %815 = vmatprep.subr.bf16.mxu0 0
        %816 = vmatpush2.bf16.msra.mxu0 %v747
        %817 = vmatprep.subr.bf16.mxu0 0
        %818 = vmatpush2.bf16.msra.mxu0 %v746
        %819 = vmatprep.subr.bf16.mxu0 0
        %820 = vmatpush2.bf16.msra.mxu0 %v745
        %821 = vmatprep.subr.bf16.mxu0 0
        %822 = vmatpush2.bf16.msra.mxu0 %v744
        %823 = vmatprep.subr.bf16.mxu0 0
        %824 = vmatpush2.bf16.msra.mxu0 %v743
        %825 = vmatprep.subr.bf16.mxu0 0
        %826 = vmatpush2.bf16.msra.mxu0 %v742
        %827 = vmatprep.subr.bf16.mxu0 0
        %828 = vmatpush2.bf16.msra.mxu0 %v741
        %829 = vmatprep.mubr.bf16.mxu0 %v471
        %830 = vmatmul.mubr.bf16.gmra.mxu0 %v470
        %v831 = vpop.f32.mrf.mxu0
        %v832 = vadd.f32 %v603, %v831
        %v833 = vpop.f32.mrf.mxu0
        %v834 = vpop.f32.mrf.mxu0
        %v835 = vadd.f32 %v603, %v834
        %v836 = vpop.f32.mrf.mxu0
        %837 = vmatprep.mubr.bf16.mxu0 %v475
        %838 = vmatmul.mubr.bf16.gmra.mxu0 %v474
        %v839 = vpop.f32.mrf.mxu0
        %v840 = vadd.f32 %v603, %v839
        %v841 = vpop.f32.mrf.mxu0
        %v842 = vpop.f32.mrf.mxu0
        %v843 = vadd.f32 %v603, %v842
        %v844 = vpop.f32.mrf.mxu0
        %845 = vmatprep.mubr.bf16.mxu0 %v479
        %846 = vmatmul.mubr.bf16.gmra.mxu0 %v478
        %v847 = vpop.f32.mrf.mxu0
        %v848 = vadd.f32 %v603, %v847
        %v849 = vpop.f32.mrf.mxu0
        %v850 = vpop.f32.mrf.mxu0
        %v851 = vadd.f32 %v603, %v850
        %v852 = vpop.f32.mrf.mxu0
        %853 = vmatprep.mubr.bf16.mxu0 %v483
        %854 = vmatmul.mubr.bf16.gmra.mxu0 %v482
        %v855 = vpop.f32.mrf.mxu0
        %v856 = vadd.f32 %v603, %v855
        %v857 = vpop.f32.mrf.mxu0
        %v858 = vpop.f32.mrf.mxu0
        %v859 = vadd.f32 %v603, %v858
        %v860 = vpop.f32.mrf.mxu0
        %861 = vmatprep.mubr.bf16.mxu0 %v487
        %862 = vmatmul.mubr.bf16.gmra.mxu0 %v486
        %v863 = vpop.f32.mrf.mxu0
        %v864 = vadd.f32 %v603, %v863
        %v865 = vpop.f32.mrf.mxu0
        %v866 = vpop.f32.mrf.mxu0
        %v867 = vadd.f32 %v603, %v866
        %v868 = vpop.f32.mrf.mxu0
        %869 = vmatprep.mubr.bf16.mxu0 %v491
        %870 = vmatmul.mubr.bf16.gmra.mxu0 %v490
        %v871 = vpop.f32.mrf.mxu0
        %v872 = vadd.f32 %v603, %v871
        %v873 = vpop.f32.mrf.mxu0
        %v874 = vpop.f32.mrf.mxu0
        %v875 = vadd.f32 %v603, %v874
        %v876 = vpop.f32.mrf.mxu0
        %877 = vmatprep.mubr.bf16.mxu0 %v495
        %878 = vmatmul.mubr.bf16.gmra.mxu0 %v494
        %v879 = vpop.f32.mrf.mxu0
        %v880 = vadd.f32 %v603, %v879
        %v881 = vpop.f32.mrf.mxu0
        %v882 = vpop.f32.mrf.mxu0
        %v883 = vadd.f32 %v603, %v882
        %v884 = vpop.f32.mrf.mxu0
        %885 = vmatprep.mubr.bf16.mxu0 %v499
        %886 = vmatmul.mubr.bf16.gmra.mxu0 %v498
        %v887 = vpop.f32.mrf.mxu0
        %v888 = vadd.f32 %v603, %v887
        %v889 = vpop.f32.mrf.mxu0
        %v890 = vpop.f32.mrf.mxu0
        %v891 = vadd.f32 %v603, %v890
        %v892 = vpop.f32.mrf.mxu0
        %893 = vmatprep.mubr.bf16.mxu0 %v503
        %894 = vmatmul.mubr.bf16.gmra.mxu0 %v502
        %v895 = vpop.f32.mrf.mxu0
        %v896 = vadd.f32 %v603, %v895
        %v897 = vpop.f32.mrf.mxu0
        %v898 = vpop.f32.mrf.mxu0
        %v899 = vadd.f32 %v603, %v898
        %v900 = vpop.f32.mrf.mxu0
        %901 = vmatprep.mubr.bf16.mxu0 %v507
        %902 = vmatmul.mubr.bf16.gmra.mxu0 %v506
        %v903 = vpop.f32.mrf.mxu0
        %v904 = vadd.f32 %v603, %v903
        %v905 = vpop.f32.mrf.mxu0
        %v906 = vpop.f32.mrf.mxu0
        %v907 = vadd.f32 %v603, %v906
        %v908 = vpop.f32.mrf.mxu0
        %909 = vmatprep.mubr.bf16.mxu0 %v511
        %910 = vmatmul.mubr.bf16.gmra.mxu0 %v510
        %v911 = vpop.f32.mrf.mxu0
        %v912 = vadd.f32 %v603, %v911
        %v913 = vpop.f32.mrf.mxu0
        %v914 = vpop.f32.mrf.mxu0
        %v915 = vadd.f32 %v603, %v914
        %v916 = vpop.f32.mrf.mxu0
        %917 = vmatprep.mubr.bf16.mxu0 %v515
        %918 = vmatmul.mubr.bf16.gmra.mxu0 %v514
        %v919 = vpop.f32.mrf.mxu0
        %v920 = vadd.f32 %v603, %v919
        %v921 = vpop.f32.mrf.mxu0
        %v922 = vpop.f32.mrf.mxu0
        %v923 = vadd.f32 %v603, %v922
        %v924 = vpop.f32.mrf.mxu0
        %925 = vmatprep.mubr.bf16.mxu0 %v519
        %926 = vmatmul.mubr.bf16.gmra.mxu0 %v518
        %v927 = vpop.f32.mrf.mxu0
        %v928 = vadd.f32 %v603, %v927
        %v929 = vpop.f32.mrf.mxu0
        %v930 = vpop.f32.mrf.mxu0
        %v931 = vadd.f32 %v603, %v930
        %v932 = vpop.f32.mrf.mxu0
        %933 = vmatprep.mubr.bf16.mxu0 %v523
        %934 = vmatmul.mubr.bf16.gmra.mxu0 %v522
        %v935 = vpop.f32.mrf.mxu0
        %v936 = vadd.f32 %v603, %v935
        %v937 = vpop.f32.mrf.mxu0
        %v938 = vpop.f32.mrf.mxu0
        %v939 = vadd.f32 %v603, %v938
        %v940 = vpop.f32.mrf.mxu0
        %941 = vmatprep.mubr.bf16.mxu0 %v527
        %942 = vmatmul.mubr.bf16.gmra.mxu0 %v526
        %v943 = vpop.f32.mrf.mxu0
        %v944 = vadd.f32 %v603, %v943
        %v945 = vpop.f32.mrf.mxu0
        %v946 = vpop.f32.mrf.mxu0
        %v947 = vadd.f32 %v603, %v946
        %v948 = vpop.f32.mrf.mxu0
        %949 = vmatprep.mubr.bf16.mxu0 %v531
        %950 = vmatmul.mubr.bf16.gmra.mxu0 %v530
        %v951 = vpop.f32.mrf.mxu0
        %v952 = vadd.f32 %v603, %v951
        %v953 = vpop.f32.mrf.mxu0
        %v954 = vpop.f32.mrf.mxu0
        %v955 = vadd.f32 %v603, %v954
        %v956 = vpop.f32.mrf.mxu0
        %957 = vdwg.mxu0
        %958 = vmatprep.subr.bf16.mxu0 0
        %959 = vmatpush1.bf16.msra.mxu0 %v756
        %960 = vmatprep.subr.bf16.mxu0 0
        %961 = vmatpush1.bf16.msra.mxu0 %v755
        %962 = vmatprep.subr.bf16.mxu0 0
        %963 = vmatpush1.bf16.msra.mxu0 %v754
        %964 = vmatprep.subr.bf16.mxu0 0
        %965 = vmatpush1.bf16.msra.mxu0 %v753
        %966 = vmatprep.subr.bf16.mxu0 0
        %967 = vmatpush1.bf16.msra.mxu0 %v752
        %968 = vmatprep.subr.bf16.mxu0 0
        %969 = vmatpush1.bf16.msra.mxu0 %v751
        %970 = vmatprep.subr.bf16.mxu0 0
        %971 = vmatpush1.bf16.msra.mxu0 %v750
        %972 = vmatprep.subr.bf16.mxu0 0
        %973 = vmatpush1.bf16.msra.mxu0 %v749
        %974 = vmatprep.subr.bf16.mxu0 0
        %975 = vmatpush2.bf16.msra.mxu0 %v764
        %976 = vmatprep.subr.bf16.mxu0 0
        %977 = vmatpush2.bf16.msra.mxu0 %v763
        %978 = vmatprep.subr.bf16.mxu0 0
        %979 = vmatpush2.bf16.msra.mxu0 %v762
        %980 = vmatprep.subr.bf16.mxu0 0
        %981 = vmatpush2.bf16.msra.mxu0 %v761
        %982 = vmatprep.subr.bf16.mxu0 0
        %983 = vmatpush2.bf16.msra.mxu0 %v760
        %984 = vmatprep.subr.bf16.mxu0 0
        %985 = vmatpush2.bf16.msra.mxu0 %v759
        %986 = vmatprep.subr.bf16.mxu0 0
        %987 = vmatpush2.bf16.msra.mxu0 %v758
        %988 = vmatprep.subr.bf16.mxu0 0
        %989 = vmatpush2.bf16.msra.mxu0 %v757
        %990 = vmatprep.mubr.bf16.mxu0 %v473
        %991 = vmatmul.mubr.bf16.gmra.mxu0 %v472
        %v992 = vpop.f32.mrf.mxu0
        %v993 = vadd.f32 %v832, %v992
        %v994 = vpop.f32.mrf.mxu0
        %v995 = vpop.f32.mrf.mxu0
        %v996 = vadd.f32 %v835, %v995
        %v997 = vpop.f32.mrf.mxu0
        %998 = vmatprep.mubr.bf16.mxu0 %v477
        %999 = vmatmul.mubr.bf16.gmra.mxu0 %v476
        %v1000 = vpop.f32.mrf.mxu0
        %v1001 = vadd.f32 %v840, %v1000
        %v1002 = vpop.f32.mrf.mxu0
        %v1003 = vpop.f32.mrf.mxu0
        %v1004 = vadd.f32 %v843, %v1003
        %v1005 = vpop.f32.mrf.mxu0
        %1006 = vmatprep.mubr.bf16.mxu0 %v481
        %1007 = vmatmul.mubr.bf16.gmra.mxu0 %v480
        %v1008 = vpop.f32.mrf.mxu0
        %v1009 = vadd.f32 %v848, %v1008
        %v1010 = vpop.f32.mrf.mxu0
        %v1011 = vpop.f32.mrf.mxu0
        %v1012 = vadd.f32 %v851, %v1011
        %v1013 = vpop.f32.mrf.mxu0
        %1014 = vmatprep.mubr.bf16.mxu0 %v485
        %1015 = vmatmul.mubr.bf16.gmra.mxu0 %v484
        %v1016 = vpop.f32.mrf.mxu0
        %v1017 = vadd.f32 %v856, %v1016
        %v1018 = vpop.f32.mrf.mxu0
        %v1019 = vpop.f32.mrf.mxu0
        %v1020 = vadd.f32 %v859, %v1019
        %v1021 = vpop.f32.mrf.mxu0
        %1022 = vmatprep.mubr.bf16.mxu0 %v489
        %1023 = vmatmul.mubr.bf16.gmra.mxu0 %v488
        %v1024 = vpop.f32.mrf.mxu0
        %v1025 = vadd.f32 %v864, %v1024
        %v1026 = vpop.f32.mrf.mxu0
        %v1027 = vpop.f32.mrf.mxu0
        %v1028 = vadd.f32 %v867, %v1027
        %v1029 = vpop.f32.mrf.mxu0
        %1030 = vmatprep.mubr.bf16.mxu0 %v493
        %1031 = vmatmul.mubr.bf16.gmra.mxu0 %v492
        %v1032 = vpop.f32.mrf.mxu0
        %v1033 = vadd.f32 %v872, %v1032
        %v1034 = vpop.f32.mrf.mxu0
        %v1035 = vpop.f32.mrf.mxu0
        %v1036 = vadd.f32 %v875, %v1035
        %v1037 = vpop.f32.mrf.mxu0
        %1038 = vmatprep.mubr.bf16.mxu0 %v497
        %1039 = vmatmul.mubr.bf16.gmra.mxu0 %v496
        %v1040 = vpop.f32.mrf.mxu0
        %v1041 = vadd.f32 %v880, %v1040
        %v1042 = vpop.f32.mrf.mxu0
        %v1043 = vpop.f32.mrf.mxu0
        %v1044 = vadd.f32 %v883, %v1043
        %v1045 = vpop.f32.mrf.mxu0
        %1046 = vmatprep.mubr.bf16.mxu0 %v501
        %1047 = vmatmul.mubr.bf16.gmra.mxu0 %v500
        %v1048 = vpop.f32.mrf.mxu0
        %v1049 = vadd.f32 %v888, %v1048
        %v1050 = vpop.f32.mrf.mxu0
        %v1051 = vpop.f32.mrf.mxu0
        %v1052 = vadd.f32 %v891, %v1051
        %v1053 = vpop.f32.mrf.mxu0
        %1054 = vmatprep.mubr.bf16.mxu0 %v505
        %1055 = vmatmul.mubr.bf16.gmra.mxu0 %v504
        %v1056 = vpop.f32.mrf.mxu0
        %v1057 = vadd.f32 %v896, %v1056
        %v1058 = vpop.f32.mrf.mxu0
        %v1059 = vpop.f32.mrf.mxu0
        %v1060 = vadd.f32 %v899, %v1059
        %v1061 = vpop.f32.mrf.mxu0
        %1062 = vmatprep.mubr.bf16.mxu0 %v509
        %1063 = vmatmul.mubr.bf16.gmra.mxu0 %v508
        %v1064 = vpop.f32.mrf.mxu0
        %v1065 = vadd.f32 %v904, %v1064
        %v1066 = vpop.f32.mrf.mxu0
        %v1067 = vpop.f32.mrf.mxu0
        %v1068 = vadd.f32 %v907, %v1067
        %v1069 = vpop.f32.mrf.mxu0
        %1070 = vmatprep.mubr.bf16.mxu0 %v513
        %1071 = vmatmul.mubr.bf16.gmra.mxu0 %v512
        %v1072 = vpop.f32.mrf.mxu0
        %v1073 = vadd.f32 %v912, %v1072
        %v1074 = vpop.f32.mrf.mxu0
        %v1075 = vpop.f32.mrf.mxu0
        %v1076 = vadd.f32 %v915, %v1075
        %v1077 = vpop.f32.mrf.mxu0
        %1078 = vmatprep.mubr.bf16.mxu0 %v517
        %1079 = vmatmul.mubr.bf16.gmra.mxu0 %v516
        %v1080 = vpop.f32.mrf.mxu0
        %v1081 = vadd.f32 %v920, %v1080
        %v1082 = vpop.f32.mrf.mxu0
        %v1083 = vpop.f32.mrf.mxu0
        %v1084 = vadd.f32 %v923, %v1083
        %v1085 = vpop.f32.mrf.mxu0
        %1086 = vmatprep.mubr.bf16.mxu0 %v521
        %1087 = vmatmul.mubr.bf16.gmra.mxu0 %v520
        %v1088 = vpop.f32.mrf.mxu0
        %v1089 = vadd.f32 %v928, %v1088
        %v1090 = vpop.f32.mrf.mxu0
        %v1091 = vpop.f32.mrf.mxu0
        %v1092 = vadd.f32 %v931, %v1091
        %v1093 = vpop.f32.mrf.mxu0
        %1094 = vmatprep.mubr.bf16.mxu0 %v525
        %1095 = vmatmul.mubr.bf16.gmra.mxu0 %v524
        %v1096 = vpop.f32.mrf.mxu0
        %v1097 = vadd.f32 %v936, %v1096
        %v1098 = vpop.f32.mrf.mxu0
        %v1099 = vpop.f32.mrf.mxu0
        %v1100 = vadd.f32 %v939, %v1099
        %v1101 = vpop.f32.mrf.mxu0
        %1102 = vmatprep.mubr.bf16.mxu0 %v529
        %1103 = vmatmul.mubr.bf16.gmra.mxu0 %v528
        %v1104 = vpop.f32.mrf.mxu0
        %v1105 = vadd.f32 %v944, %v1104
        %v1106 = vpop.f32.mrf.mxu0
        %v1107 = vpop.f32.mrf.mxu0
        %v1108 = vadd.f32 %v947, %v1107
        %v1109 = vpop.f32.mrf.mxu0
        %1110 = vmatprep.mubr.bf16.mxu0 %v533
        %1111 = vmatmul.mubr.bf16.gmra.mxu0 %v532
        %v1112 = vpop.f32.mrf.mxu0
        %v1113 = vadd.f32 %v952, %v1112
        %v1114 = vpop.f32.mrf.mxu0
        %v1115 = vpop.f32.mrf.mxu0
        %v1116 = vadd.f32 %v955, %v1115
        %v1117 = vpop.f32.mrf.mxu0
        %1118 = vdwg.mxu0
        %v1119 = vmax.f32 %v993, 0.0
        %v1120 = vmax.f32 %v996, 0.0
        %v1121 = vmax.f32 %v1001, 0.0
        %v1122 = vmax.f32 %v1004, 0.0
        %v1123 = vmax.f32 %v1009, 0.0
        %v1124 = vmax.f32 %v1012, 0.0
        %v1125 = vmax.f32 %v1017, 0.0
        %v1126 = vmax.f32 %v1020, 0.0
        %v1127 = vmax.f32 %v1025, 0.0
        %v1128 = vmax.f32 %v1028, 0.0
        %v1129 = vmax.f32 %v1033, 0.0
        %v1130 = vmax.f32 %v1036, 0.0
        %v1131 = vmax.f32 %v1041, 0.0
        %v1132 = vmax.f32 %v1044, 0.0
        %v1133 = vmax.f32 %v1049, 0.0
        %v1134 = vmax.f32 %v1052, 0.0
        %v1135 = vmax.f32 %v1057, 0.0
        %v1136 = vmax.f32 %v1060, 0.0
        %v1137 = vmax.f32 %v1065, 0.0
        %v1138 = vmax.f32 %v1068, 0.0
        %v1139 = vmax.f32 %v1073, 0.0
        %v1140 = vmax.f32 %v1076, 0.0
        %v1141 = vmax.f32 %v1081, 0.0
        %v1142 = vmax.f32 %v1084, 0.0
        %v1143 = vmax.f32 %v1089, 0.0
        %v1144 = vmax.f32 %v1092, 0.0
        %v1145 = vmax.f32 %v1097, 0.0
        %v1146 = vmax.f32 %v1100, 0.0
        %v1147 = vmax.f32 %v1105, 0.0
        %v1148 = vmax.f32 %v1108, 0.0
        %v1149 = vmax.f32 %v1113, 0.0
        %v1150 = vmax.f32 %v1116, 0.0
        %v1151 = vrot.slane %v1119, 7
        %v1152 = vrot.slane %v1120, 7
        %v1153 = vrot.slane %v1121, 7
        %v1154 = vrot.slane %v1122, 7
        %v1155 = vrot.slane %v1123, 7
        %v1156 = vrot.slane %v1124, 7
        %v1157 = vrot.slane %v1125, 7
        %v1158 = vrot.slane %v1126, 7
        %v1159 = vrot.slane %v1127, 7
        %v1160 = vrot.slane %v1128, 7
        %v1161 = vrot.slane %v1129, 7
        %v1162 = vrot.slane %v1130, 7
        %v1163 = vrot.slane %v1131, 7
        %v1164 = vrot.slane %v1132, 7
        %v1165 = vrot.slane %v1133, 7
        %v1166 = vrot.slane %v1134, 7
        %v1167 = vrot.slane %v1135, 7
        %v1168 = vrot.slane %v1136, 7
        %v1169 = vrot.slane %v1137, 7
        %v1170 = vrot.slane %v1138, 7
        %v1171 = vrot.slane %v1139, 7
        %v1172 = vrot.slane %v1140, 7
        %v1173 = vrot.slane %v1141, 7
        %v1174 = vrot.slane %v1142, 7
        %v1175 = vrot.slane %v1143, 7
        %v1176 = vrot.slane %v1144, 7
        %v1177 = vrot.slane %v1145, 7
        %v1178 = vrot.slane %v1146, 7
        %v1179 = vrot.slane %v1147, 7
        %v1180 = vrot.slane %v1148, 7
        %v1181 = vrot.slane %v1149, 7
        %v1182 = vrot.slane %v1150, 7
        %v1183 = vlaneseq
        %v1184 = vshrl.u32 %v1183, 7
        %vm1185 = vcmp.lt.s32.totalorder %v1184, 1
        %v1186 = vsel %vm1185, %v1182, 0.0
        %v1187 = vsel %vm1185, %v1181, %v1182
        %v1188 = vsel %vm1185, %v1180, %v1181
        %v1189 = vsel %vm1185, %v1179, %v1180
        %v1190 = vsel %vm1185, %v1178, %v1179
        %v1191 = vsel %vm1185, %v1177, %v1178
        %v1192 = vsel %vm1185, %v1176, %v1177
        %v1193 = vsel %vm1185, %v1175, %v1176
        %v1194 = vsel %vm1185, %v1174, %v1175
        %v1195 = vsel %vm1185, %v1173, %v1174
        %v1196 = vsel %vm1185, %v1172, %v1173
        %v1197 = vsel %vm1185, %v1171, %v1172
        %v1198 = vsel %vm1185, %v1170, %v1171
        %v1199 = vsel %vm1185, %v1169, %v1170
        %v1200 = vsel %vm1185, %v1168, %v1169
        %v1201 = vsel %vm1185, %v1167, %v1168
        %v1202 = vsel %vm1185, %v1166, %v1167
        %v1203 = vsel %vm1185, %v1165, %v1166
        %v1204 = vsel %vm1185, %v1164, %v1165
        %v1205 = vsel %vm1185, %v1163, %v1164
        %v1206 = vsel %vm1185, %v1162, %v1163
        %v1207 = vsel %vm1185, %v1161, %v1162
        %v1208 = vsel %vm1185, %v1160, %v1161
        %v1209 = vsel %vm1185, %v1159, %v1160
        %v1210 = vsel %vm1185, %v1158, %v1159
        %v1211 = vsel %vm1185, %v1157, %v1158
        %v1212 = vsel %vm1185, %v1156, %v1157
        %v1213 = vsel %vm1185, %v1155, %v1156
        %v1214 = vsel %vm1185, %v1154, %v1155
        %v1215 = vsel %vm1185, %v1153, %v1154
        %v1216 = vsel %vm1185, %v1152, %v1153
        %v1217 = vsel %vm1185, %v1151, %v1152
        %v1218 = vsel %vm1185, 0.0, %v1151
        %v1219 = vrot.slane %v1119, 1
        %v1220 = vrot.slane %v1120, 1
        %v1221 = vrot.slane %v1121, 1
        %v1222 = vrot.slane %v1122, 1
        %v1223 = vrot.slane %v1123, 1
        %v1224 = vrot.slane %v1124, 1
        %v1225 = vrot.slane %v1125, 1
        %v1226 = vrot.slane %v1126, 1
        %v1227 = vrot.slane %v1127, 1
        %v1228 = vrot.slane %v1128, 1
        %v1229 = vrot.slane %v1129, 1
        %v1230 = vrot.slane %v1130, 1
        %v1231 = vrot.slane %v1131, 1
        %v1232 = vrot.slane %v1132, 1
        %v1233 = vrot.slane %v1133, 1
        %v1234 = vrot.slane %v1134, 1
        %v1235 = vrot.slane %v1135, 1
        %v1236 = vrot.slane %v1136, 1
        %v1237 = vrot.slane %v1137, 1
        %v1238 = vrot.slane %v1138, 1
        %v1239 = vrot.slane %v1139, 1
        %v1240 = vrot.slane %v1140, 1
        %v1241 = vrot.slane %v1141, 1
        %v1242 = vrot.slane %v1142, 1
        %v1243 = vrot.slane %v1143, 1
        %v1244 = vrot.slane %v1144, 1
        %v1245 = vrot.slane %v1145, 1
        %v1246 = vrot.slane %v1146, 1
        %v1247 = vrot.slane %v1147, 1
        %v1248 = vrot.slane %v1148, 1
        %v1249 = vrot.slane %v1149, 1
        %v1250 = vrot.slane %v1150, 1
        %vm1251 = vcmp.lt.s32.totalorder %v1184, 7
        %v1252 = vsel %vm1251, %v1250, 0.0
        %v1253 = vsel %vm1251, %v1249, %v1250
        %v1254 = vsel %vm1251, %v1248, %v1249
        %v1255 = vsel %vm1251, %v1247, %v1248
        %v1256 = vsel %vm1251, %v1246, %v1247
        %v1257 = vsel %vm1251, %v1245, %v1246
        %v1258 = vsel %vm1251, %v1244, %v1245
        %v1259 = vsel %vm1251, %v1243, %v1244
        %v1260 = vsel %vm1251, %v1242, %v1243
        %v1261 = vsel %vm1251, %v1241, %v1242
        %v1262 = vsel %vm1251, %v1240, %v1241
        %v1263 = vsel %vm1251, %v1239, %v1240
        %v1264 = vsel %vm1251, %v1238, %v1239
        %v1265 = vsel %vm1251, %v1237, %v1238
        %v1266 = vsel %vm1251, %v1236, %v1237
        %v1267 = vsel %vm1251, %v1235, %v1236
        %v1268 = vsel %vm1251, %v1234, %v1235
        %v1269 = vsel %vm1251, %v1233, %v1234
        %v1270 = vsel %vm1251, %v1232, %v1233
        %v1271 = vsel %vm1251, %v1231, %v1232
        %v1272 = vsel %vm1251, %v1230, %v1231
        %v1273 = vsel %vm1251, %v1229, %v1230
        %v1274 = vsel %vm1251, %v1228, %v1229
        %v1275 = vsel %vm1251, %v1227, %v1228
        %v1276 = vsel %vm1251, %v1226, %v1227
        %v1277 = vsel %vm1251, %v1225, %v1226
        %v1278 = vsel %vm1251, %v1224, %v1225
        %v1279 = vsel %vm1251, %v1223, %v1224
        %v1280 = vsel %vm1251, %v1222, %v1223
        %v1281 = vsel %vm1251, %v1221, %v1222
        %v1282 = vsel %vm1251, %v1220, %v1221
        %v1283 = vsel %vm1251, %v1219, %v1220
        %v1284 = vsel %vm1251, 0.0, %v1219
        %v1285 = vadd.s32 %v1184, 8
        %vm1286 = vcmp.eq.s32.totalorder %v1184, 0
        %vm1287 = vcmp.eq.s32.totalorder %v1285, 0
        %v1288 = vsel %vm1286, 0.0, 0.0
        %v1289 = vsel %vm1287, 0.0, 0.0
        %v1290 = vsel %vm1286, 0.0, %v1218
        %v1291 = vsel %vm1287, 0.0, %v1217
        %v1292 = vsel %vm1286, 0.0, %v1216
        %v1293 = vsel %vm1287, 0.0, %v1215
        %v1294 = vsel %vm1286, 0.0, %v1214
        %v1295 = vsel %vm1287, 0.0, %v1213
        %v1296 = vsel %vm1286, 0.0, %v1212
        %v1297 = vsel %vm1287, 0.0, %v1211
        %v1298 = vsel %vm1286, 0.0, %v1210
        %v1299 = vsel %vm1287, 0.0, %v1209
        %v1300 = vsel %vm1286, 0.0, %v1208
        %v1301 = vsel %vm1287, 0.0, %v1207
        %v1302 = vsel %vm1286, 0.0, %v1206
        %v1303 = vsel %vm1287, 0.0, %v1205
        %v1304 = vsel %vm1286, 0.0, %v1204
        %v1305 = vsel %vm1287, 0.0, %v1203
        %v1306 = vsel %vm1286, 0.0, %v1202
        %v1307 = vsel %vm1287, 0.0, %v1201
        %v1308 = vsel %vm1286, 0.0, %v1200
        %v1309 = vsel %vm1287, 0.0, %v1199
        %v1310 = vsel %vm1286, 0.0, %v1198
        %v1311 = vsel %vm1287, 0.0, %v1197
        %v1312 = vsel %vm1286, 0.0, %v1196
        %v1313 = vsel %vm1287, 0.0, %v1195
        %v1314 = vsel %vm1286, 0.0, %v1194
        %v1315 = vsel %vm1287, 0.0, %v1193
        %v1316 = vsel %vm1286, 0.0, %v1192
        %v1317 = vsel %vm1287, 0.0, %v1191
        %v1318 = vsel %vm1286, 0.0, %v1190
        %v1319 = vsel %vm1287, 0.0, %v1189
        %v1320 = vsel %vm1286, 0.0, %v1188
        %v1321 = vsel %vm1287, 0.0, %v1187
        %v1322 = vsel %vm1286, 0.0, %v1186
        %vm1323 = vcmp.eq.s32.totalorder %v1184, 15
        %vm1324 = vcmp.eq.s32.totalorder %v1285, 15
        %v1325 = vsel %vm1323, 0.0, 0.0
        %v1326 = vsel %vm1324, 0.0, %v1284
        %v1327 = vsel %vm1323, 0.0, %v1283
        %v1328 = vsel %vm1324, 0.0, %v1282
        %v1329 = vsel %vm1323, 0.0, %v1281
        %v1330 = vsel %vm1324, 0.0, %v1280
        %v1331 = vsel %vm1323, 0.0, %v1279
        %v1332 = vsel %vm1324, 0.0, %v1278
        %v1333 = vsel %vm1323, 0.0, %v1277
        %v1334 = vsel %vm1324, 0.0, %v1276
        %v1335 = vsel %vm1323, 0.0, %v1275
        %v1336 = vsel %vm1324, 0.0, %v1274
        %v1337 = vsel %vm1323, 0.0, %v1273
        %v1338 = vsel %vm1324, 0.0, %v1272
        %v1339 = vsel %vm1323, 0.0, %v1271
        %v1340 = vsel %vm1324, 0.0, %v1270
        %v1341 = vsel %vm1323, 0.0, %v1269
        %v1342 = vsel %vm1324, 0.0, %v1268
        %v1343 = vsel %vm1323, 0.0, %v1267
        %v1344 = vsel %vm1324, 0.0, %v1266
        %v1345 = vsel %vm1323, 0.0, %v1265
        %v1346 = vsel %vm1324, 0.0, %v1264
        %v1347 = vsel %vm1323, 0.0, %v1263
        %v1348 = vsel %vm1324, 0.0, %v1262
        %v1349 = vsel %vm1323, 0.0, %v1261
        %v1350 = vsel %vm1324, 0.0, %v1260
        %v1351 = vsel %vm1323, 0.0, %v1259
        %v1352 = vsel %vm1324, 0.0, %v1258
        %v1353 = vsel %vm1323, 0.0, %v1257
        %v1354 = vsel %vm1324, 0.0, %v1256
        %v1355 = vsel %vm1323, 0.0, %v1255
        %v1356 = vsel %vm1324, 0.0, %v1254
        %v1357 = vsel %vm1323, 0.0, %v1253
        %v1358 = vsel %vm1324, 0.0, %v1252
        %v1359 = vsel %vm1324, 0.0, 0.0
        %v1360 = vpack.c.bf16 %v1289, %v1288
        %v1361 = vpack.c.bf16 0.0, 0.0
        %v1362 = vpack.c.bf16 %v1326, %v1325
        %v1363 = vpack.c.bf16 %v1291, %v1290
        %v1364 = vpack.c.bf16 %v1120, %v1119
        %v1365 = vpack.c.bf16 %v1328, %v1327
        %v1366 = vpack.c.bf16 %v1293, %v1292
        %v1367 = vpack.c.bf16 %v1122, %v1121
        %v1368 = vpack.c.bf16 %v1330, %v1329
        %v1369 = vpack.c.bf16 %v1295, %v1294
        %v1370 = vpack.c.bf16 %v1124, %v1123
        %v1371 = vpack.c.bf16 %v1332, %v1331
        %v1372 = vpack.c.bf16 %v1297, %v1296
        %v1373 = vpack.c.bf16 %v1126, %v1125
        %v1374 = vpack.c.bf16 %v1334, %v1333
        %v1375 = vpack.c.bf16 %v1299, %v1298
        %v1376 = vpack.c.bf16 %v1128, %v1127
        %v1377 = vpack.c.bf16 %v1336, %v1335
        %v1378 = vpack.c.bf16 %v1301, %v1300
        %v1379 = vpack.c.bf16 %v1130, %v1129
        %v1380 = vpack.c.bf16 %v1338, %v1337
        %v1381 = vpack.c.bf16 %v1303, %v1302
        %v1382 = vpack.c.bf16 %v1132, %v1131
        %v1383 = vpack.c.bf16 %v1340, %v1339
        %v1384 = vpack.c.bf16 %v1305, %v1304
        %v1385 = vpack.c.bf16 %v1134, %v1133
        %v1386 = vpack.c.bf16 %v1342, %v1341
        %v1387 = vpack.c.bf16 %v1307, %v1306
        %v1388 = vpack.c.bf16 %v1136, %v1135
        %v1389 = vpack.c.bf16 %v1344, %v1343
        %v1390 = vpack.c.bf16 %v1309, %v1308
        %v1391 = vpack.c.bf16 %v1138, %v1137
        %v1392 = vpack.c.bf16 %v1346, %v1345
        %v1393 = vpack.c.bf16 %v1311, %v1310
        %v1394 = vpack.c.bf16 %v1140, %v1139
        %v1395 = vpack.c.bf16 %v1348, %v1347
        %v1396 = vpack.c.bf16 %v1313, %v1312
        %v1397 = vpack.c.bf16 %v1142, %v1141
        %v1398 = vpack.c.bf16 %v1350, %v1349
        %v1399 = vpack.c.bf16 %v1315, %v1314
        %v1400 = vpack.c.bf16 %v1144, %v1143
        %v1401 = vpack.c.bf16 %v1352, %v1351
        %v1402 = vpack.c.bf16 %v1317, %v1316
        %v1403 = vpack.c.bf16 %v1146, %v1145
        %v1404 = vpack.c.bf16 %v1354, %v1353
        %v1405 = vpack.c.bf16 %v1319, %v1318
        %v1406 = vpack.c.bf16 %v1148, %v1147
        %v1407 = vpack.c.bf16 %v1356, %v1355
        %v1408 = vpack.c.bf16 %v1321, %v1320
        %v1409 = vpack.c.bf16 %v1150, %v1149
        %v1410 = vpack.c.bf16 %v1358, %v1357
        %v1411 = vpack.c.bf16 %v1289, %v1322
        %v1412 = vpack.c.bf16 %v1359, %v1325
        %v1413 = vld [vmem:[#allocation7] sm:$0xf]
        %v1414 = vld [vmem:[#allocation7 + $0x4] sm:$0xf]
        %v1415 = vld [vmem:[#allocation7 + $0x8] sm:$0xf]
        %v1416 = vld [vmem:[#allocation7 + $0xc] sm:$0xf]
        %v1417 = vld [vmem:[#allocation7 + $0x10] sm:$0xf]
        %v1418 = vld [vmem:[#allocation7 + $0x14] sm:$0xf]
        %v1419 = vld [vmem:[#allocation7 + $0x18] sm:$0xf]
        %v1420 = vld [vmem:[#allocation7 + $0x1c] sm:$0xf]
        %v1421 = vld [vmem:[#allocation7 + $0x20] sm:$0xf]
        %v1422 = vld [vmem:[#allocation7 + $0x24] sm:$0xf]
        %v1423 = vld [vmem:[#allocation7 + $0x28] sm:$0xf]
        %v1424 = vld [vmem:[#allocation7 + $0x2c] sm:$0xf]
        %v1425 = vld [vmem:[#allocation7 + $0x30] sm:$0xf]
        %v1426 = vld [vmem:[#allocation7 + $0x34] sm:$0xf]
        %v1427 = vld [vmem:[#allocation7 + $0x38] sm:$0xf]
        %v1428 = vld [vmem:[#allocation7 + $0x3c] sm:$0xf]
        %v1429 = vld [vmem:[#allocation7 + $0x40] sm:$0xf]
        %v1430 = vld [vmem:[#allocation7 + $0x44] sm:$0xf]
        %v1431 = vld [vmem:[#allocation7 + $0x48] sm:$0xf]
        %v1432 = vld [vmem:[#allocation7 + $0x4c] sm:$0xf]
        %v1433 = vld [vmem:[#allocation7 + $0x50] sm:$0xf]
        %v1434 = vld [vmem:[#allocation7 + $0x54] sm:$0xf]
        %v1435 = vld [vmem:[#allocation7 + $0x58] sm:$0xf]
        %v1436 = vld [vmem:[#allocation7 + $0x5c] sm:$0xf]
        %v1437 = vld [vmem:[#allocation7 + $0x60] sm:$0xf]
        %v1438 = vld [vmem:[#allocation7 + $0x64] sm:$0xf]
        %v1439 = vld [vmem:[#allocation7 + $0x68] sm:$0xf]
        %v1440 = vld [vmem:[#allocation7 + $0x6c] sm:$0xf]
        %v1441 = vld [vmem:[#allocation7 + $0x70] sm:$0xf]
        %v1442 = vld [vmem:[#allocation7 + $0x74] sm:$0xf]
        %v1443 = vld [vmem:[#allocation7 + $0x78] sm:$0xf]
        %v1444 = vld [vmem:[#allocation7 + $0x7c] sm:$0xf]
        %v1445 = vld [vmem:[#allocation7 + $0x80] sm:$0xf]
        %v1446 = vld [vmem:[#allocation7 + $0x84] sm:$0xf]
        %v1447 = vld [vmem:[#allocation7 + $0x88] sm:$0xf]
        %v1448 = vld [vmem:[#allocation7 + $0x8c] sm:$0xf]
        %v1449 = vld [vmem:[#allocation7 + $0x90] sm:$0xf]
        %v1450 = vld [vmem:[#allocation7 + $0x94] sm:$0xf]
        %v1451 = vld [vmem:[#allocation7 + $0x98] sm:$0xf]
        %v1452 = vld [vmem:[#allocation7 + $0x9c] sm:$0xf]
        %v1453 = vld [vmem:[#allocation7 + $0xa0] sm:$0xf]
        %v1454 = vld [vmem:[#allocation7 + $0xa4] sm:$0xf]
        %v1455 = vld [vmem:[#allocation7 + $0xa8] sm:$0xf]
        %v1456 = vld [vmem:[#allocation7 + $0xac] sm:$0xf]
        %v1457 = vld [vmem:[#allocation7 + $0xb0] sm:$0xf]
        %v1458 = vld [vmem:[#allocation7 + $0xb4] sm:$0xf]
        %v1459 = vld [vmem:[#allocation7 + $0xb8] sm:$0xf]
        %v1460 = vld [vmem:[#allocation7 + $0xbc] sm:$0xf]
        %s1461 = scalar_lea.vmem [#allocation7], 192
        %v1462 = vld [vmem:[%s1461] sm:$0xf]
        %v1463 = vld [vmem:[%s1461 + $0x4] sm:$0xf]
        %v1464 = vld [vmem:[%s1461 + $0x8] sm:$0xf]
        %v1465 = vld [vmem:[%s1461 + $0xc] sm:$0xf]
        %v1466 = vld [vmem:[%s1461 + $0x10] sm:$0xf]
        %v1467 = vld [vmem:[%s1461 + $0x14] sm:$0xf]
        %v1468 = vld [vmem:[%s1461 + $0x18] sm:$0xf]
        %v1469 = vld [vmem:[%s1461 + $0x1c] sm:$0xf]
        %v1470 = vld [vmem:[%s1461 + $0x20] sm:$0xf]
        %v1471 = vld [vmem:[%s1461 + $0x24] sm:$0xf]
        %v1472 = vld [vmem:[%s1461 + $0x28] sm:$0xf]
        %v1473 = vld [vmem:[%s1461 + $0x2c] sm:$0xf]
        %v1474 = vld [vmem:[%s1461 + $0x30] sm:$0xf]
        %v1475 = vld [vmem:[%s1461 + $0x34] sm:$0xf]
        %v1476 = vld [vmem:[%s1461 + $0x38] sm:$0xf]
        %v1477 = vld [vmem:[%s1461 + $0x3c] sm:$0xf]
        %v1478 = vld [vmem:[%s1461 + $0x40] sm:$0xf]
        %v1479 = vld [vmem:[%s1461 + $0x44] sm:$0xf]
        %v1480 = vld [vmem:[%s1461 + $0x48] sm:$0xf]
        %v1481 = vld [vmem:[%s1461 + $0x4c] sm:$0xf]
        %v1482 = vld [vmem:[%s1461 + $0x50] sm:$0xf]
        %v1483 = vld [vmem:[%s1461 + $0x54] sm:$0xf]
        %v1484 = vld [vmem:[%s1461 + $0x58] sm:$0xf]
        %v1485 = vld [vmem:[%s1461 + $0x5c] sm:$0xf]
        %v1486 = vld [vmem:[%s1461 + $0x60] sm:$0xf]
        %v1487 = vld [vmem:[%s1461 + $0x64] sm:$0xf]
        %v1488 = vld [vmem:[%s1461 + $0x68] sm:$0xf]
        %v1489 = vld [vmem:[%s1461 + $0x6c] sm:$0xf]
        %v1490 = vld [vmem:[%s1461 + $0x70] sm:$0xf]
        %v1491 = vld [vmem:[%s1461 + $0x74] sm:$0xf]
        %v1492 = vld [vmem:[%s1461 + $0x78] sm:$0xf]
        %v1493 = vld [vmem:[%s1461 + $0x7c] sm:$0xf]
        %v1494 = vld [vmem:[%s1461 + $0x80] sm:$0xf]
        %v1495 = vld [vmem:[%s1461 + $0x84] sm:$0xf]
        %v1496 = vld [vmem:[%s1461 + $0x88] sm:$0xf]
        %v1497 = vld [vmem:[%s1461 + $0x8c] sm:$0xf]
        %v1498 = vld [vmem:[%s1461 + $0x90] sm:$0xf]
        %v1499 = vld [vmem:[%s1461 + $0x94] sm:$0xf]
        %v1500 = vld [vmem:[%s1461 + $0x98] sm:$0xf]
        %v1501 = vld [vmem:[%s1461 + $0x9c] sm:$0xf]
        %v1502 = vld [vmem:[%s1461 + $0xa0] sm:$0xf]
        %v1503 = vld [vmem:[%s1461 + $0xa4] sm:$0xf]
        %v1504 = vld [vmem:[%s1461 + $0xa8] sm:$0xf]
        %v1505 = vld [vmem:[%s1461 + $0xac] sm:$0xf]
        %v1506 = vld [vmem:[%s1461 + $0xb0] sm:$0xf]
        %v1507 = vld [vmem:[%s1461 + $0xb4] sm:$0xf]
        %v1508 = vld [vmem:[%s1461 + $0xb8] sm:$0xf]
        %v1509 = vld [vmem:[%s1461 + $0xbc] sm:$0xf]
        %v1558 = vunpack.c.l.b16 %v1462
        %v1559 = vunpack.c.l.b16 %v1463
        %v1560 = vunpack.c.l.b16 %v1464
        %v1561 = vunpack.c.l.b16 %v1465
        %v1562 = vunpack.c.l.b16 %v1466
        %v1563 = vunpack.c.l.b16 %v1467
        %v1564 = vunpack.c.l.b16 %v1468
        %v1565 = vunpack.c.l.b16 %v1469
        %v1566 = vunpack.c.l.b16 %v1470
        %v1567 = vunpack.c.l.b16 %v1471
        %v1568 = vunpack.c.l.b16 %v1472
        %v1569 = vunpack.c.l.b16 %v1473
        %v1570 = vunpack.c.l.b16 %v1474
        %v1571 = vunpack.c.l.b16 %v1475
        %v1572 = vunpack.c.l.b16 %v1476
        %v1573 = vunpack.c.l.b16 %v1477
        %v1574 = vunpack.c.l.b16 %v1478
        %v1575 = vunpack.c.l.b16 %v1479
        %v1576 = vunpack.c.l.b16 %v1480
        %v1577 = vunpack.c.l.b16 %v1481
        %v1578 = vunpack.c.l.b16 %v1482
        %v1579 = vunpack.c.l.b16 %v1483
        %v1580 = vunpack.c.l.b16 %v1484
        %v1581 = vunpack.c.l.b16 %v1485
        %v1582 = vunpack.c.l.b16 %v1486
        %v1583 = vunpack.c.l.b16 %v1487
        %v1584 = vunpack.c.l.b16 %v1488
        %v1585 = vunpack.c.l.b16 %v1489
        %v1586 = vunpack.c.l.b16 %v1490
        %v1587 = vunpack.c.l.b16 %v1491
        %v1588 = vunpack.c.l.b16 %v1492
        %v1589 = vunpack.c.l.b16 %v1493
        %v1590 = vunpack.c.l.b16 %v1494
        %v1591 = vunpack.c.l.b16 %v1495
        %v1592 = vunpack.c.l.b16 %v1496
        %v1593 = vunpack.c.l.b16 %v1497
        %v1594 = vunpack.c.l.b16 %v1498
        %v1595 = vunpack.c.l.b16 %v1499
        %v1596 = vunpack.c.l.b16 %v1500
        %v1597 = vunpack.c.l.b16 %v1501
        %v1598 = vunpack.c.l.b16 %v1502
        %v1599 = vunpack.c.l.b16 %v1503
        %v1600 = vunpack.c.l.b16 %v1504
        %v1601 = vunpack.c.l.b16 %v1505
        %v1602 = vunpack.c.l.b16 %v1506
        %v1603 = vunpack.c.l.b16 %v1507
        %v1604 = vunpack.c.l.b16 %v1508
        %v1605 = vunpack.c.l.b16 %v1509
        %v1606 = vpack.c.b16 %v1559, %v1558
        %v1607 = vpack.c.b16 %v1561, %v1560
        %v1608 = vpack.c.b16 %v1563, %v1562
        %v1609 = vpack.c.b16 %v1565, %v1564
        %v1610 = vpack.c.b16 %v1567, %v1566
        %v1611 = vpack.c.b16 %v1569, %v1568
        %v1612 = vpack.c.b16 %v1571, %v1570
        %v1613 = vpack.c.b16 %v1573, %v1572
        %v1614 = vpack.c.b16 %v1575, %v1574
        %v1615 = vpack.c.b16 %v1577, %v1576
        %v1616 = vpack.c.b16 %v1579, %v1578
        %v1617 = vpack.c.b16 %v1581, %v1580
        %v1618 = vpack.c.b16 %v1583, %v1582
        %v1619 = vpack.c.b16 %v1585, %v1584
        %v1620 = vpack.c.b16 %v1587, %v1586
        %v1621 = vpack.c.b16 %v1589, %v1588
        %v1622 = vpack.c.b16 %v1591, %v1590
        %v1623 = vpack.c.b16 %v1593, %v1592
        %v1624 = vpack.c.b16 %v1595, %v1594
        %v1625 = vpack.c.b16 %v1597, %v1596
        %v1626 = vpack.c.b16 %v1599, %v1598
        %v1627 = vpack.c.b16 %v1601, %v1600
        %v1628 = vpack.c.b16 %v1603, %v1602
        %v1629 = vpack.c.b16 %v1605, %v1604
        %1654 = vmatprep.subr.bf16.mxu0 0
        %1655 = vmatpush1.bf16.msra.mxu0 %v1613
        %1656 = vmatprep.subr.bf16.mxu0 0
        %1657 = vmatpush1.bf16.msra.mxu0 %v1612
        %1658 = vmatprep.subr.bf16.mxu0 0
        %1659 = vmatpush1.bf16.msra.mxu0 %v1611
        %1660 = vmatprep.subr.bf16.mxu0 0
        %1661 = vmatpush1.bf16.msra.mxu0 %v1610
        %1662 = vmatprep.subr.bf16.mxu0 0
        %1663 = vmatpush1.bf16.msra.mxu0 %v1609
        %1664 = vmatprep.subr.bf16.mxu0 0
        %1665 = vmatpush1.bf16.msra.mxu0 %v1608
        %1666 = vmatprep.subr.bf16.mxu0 0
        %1667 = vmatpush1.bf16.msra.mxu0 %v1607
        %1668 = vmatprep.subr.bf16.mxu0 0
        %1669 = vmatpush1.bf16.msra.mxu0 %v1606
        %1670 = vmatprep.subr.bf16.mxu0 0
        %1671 = vmatpush2.bf16.msra.mxu0 %v1621
        %1672 = vmatprep.subr.bf16.mxu0 0
        %1673 = vmatpush2.bf16.msra.mxu0 %v1620
        %1674 = vmatprep.subr.bf16.mxu0 0
        %1675 = vmatpush2.bf16.msra.mxu0 %v1619
        %1676 = vmatprep.subr.bf16.mxu0 0
        %1677 = vmatpush2.bf16.msra.mxu0 %v1618
        %1678 = vmatprep.subr.bf16.mxu0 0
        %1679 = vmatpush2.bf16.msra.mxu0 %v1617
        %1680 = vmatprep.subr.bf16.mxu0 0
        %1681 = vmatpush2.bf16.msra.mxu0 %v1616
        %1682 = vmatprep.subr.bf16.mxu0 0
        %1683 = vmatpush2.bf16.msra.mxu0 %v1615
        %1684 = vmatprep.subr.bf16.mxu0 0
        %1685 = vmatpush2.bf16.msra.mxu0 %v1614
        %1686 = vmatprep.mubr.bf16.mxu0 %v1364
        %1687 = vmatmul.mubr.bf16.gmra.mxu0 %v1363
        %v1688 = vpop.f32.mrf.mxu0
        %v1689 = vadd.f32 0.0, %v1688
        %v1690 = vpop.f32.mrf.mxu0
        %v1691 = vpop.f32.mrf.mxu0
        %v1692 = vadd.f32 0.0, %v1691
        %v1693 = vpop.f32.mrf.mxu0
        %1694 = vmatprep.mubr.bf16.mxu0 %v1367
        %1695 = vmatmul.mubr.bf16.gmra.mxu0 %v1366
        %v1696 = vpop.f32.mrf.mxu0
        %v1697 = vadd.f32 0.0, %v1696
        %v1698 = vpop.f32.mrf.mxu0
        %v1699 = vpop.f32.mrf.mxu0
        %v1700 = vadd.f32 0.0, %v1699
        %v1701 = vpop.f32.mrf.mxu0
        %1702 = vmatprep.mubr.bf16.mxu0 %v1370
        %1703 = vmatmul.mubr.bf16.gmra.mxu0 %v1369
        %v1704 = vpop.f32.mrf.mxu0
        %v1705 = vadd.f32 0.0, %v1704
        %v1706 = vpop.f32.mrf.mxu0
        %v1707 = vpop.f32.mrf.mxu0
        %v1708 = vadd.f32 0.0, %v1707
        %v1709 = vpop.f32.mrf.mxu0
        %1710 = vmatprep.mubr.bf16.mxu0 %v1373
        %1711 = vmatmul.mubr.bf16.gmra.mxu0 %v1372
        %v1712 = vpop.f32.mrf.mxu0
        %v1713 = vadd.f32 0.0, %v1712
        %v1714 = vpop.f32.mrf.mxu0
        %v1715 = vpop.f32.mrf.mxu0
        %v1716 = vadd.f32 0.0, %v1715
        %v1717 = vpop.f32.mrf.mxu0
        %1718 = vmatprep.mubr.bf16.mxu0 %v1376
        %1719 = vmatmul.mubr.bf16.gmra.mxu0 %v1375
        %v1720 = vpop.f32.mrf.mxu0
        %v1721 = vadd.f32 0.0, %v1720
        %v1722 = vpop.f32.mrf.mxu0
        %v1723 = vpop.f32.mrf.mxu0
        %v1724 = vadd.f32 0.0, %v1723
        %v1725 = vpop.f32.mrf.mxu0
        %1726 = vmatprep.mubr.bf16.mxu0 %v1379
        %1727 = vmatmul.mubr.bf16.gmra.mxu0 %v1378
        %v1728 = vpop.f32.mrf.mxu0
        %v1729 = vadd.f32 0.0, %v1728
        %v1730 = vpop.f32.mrf.mxu0
        %v1731 = vpop.f32.mrf.mxu0
        %v1732 = vadd.f32 0.0, %v1731
        %v1733 = vpop.f32.mrf.mxu0
        %1734 = vmatprep.mubr.bf16.mxu0 %v1382
        %1735 = vmatmul.mubr.bf16.gmra.mxu0 %v1381
        %v1736 = vpop.f32.mrf.mxu0
        %v1737 = vadd.f32 0.0, %v1736
        %v1738 = vpop.f32.mrf.mxu0
        %v1739 = vpop.f32.mrf.mxu0
        %v1740 = vadd.f32 0.0, %v1739
        %v1741 = vpop.f32.mrf.mxu0
        %1742 = vmatprep.mubr.bf16.mxu0 %v1385
        %1743 = vmatmul.mubr.bf16.gmra.mxu0 %v1384
        %v1744 = vpop.f32.mrf.mxu0
        %v1745 = vadd.f32 0.0, %v1744
        %v1746 = vpop.f32.mrf.mxu0
        %v1747 = vpop.f32.mrf.mxu0
        %v1748 = vadd.f32 0.0, %v1747
        %v1749 = vpop.f32.mrf.mxu0
        %1750 = vmatprep.mubr.bf16.mxu0 %v1388
        %1751 = vmatmul.mubr.bf16.gmra.mxu0 %v1387
        %v1752 = vpop.f32.mrf.mxu0
        %v1753 = vadd.f32 0.0, %v1752
        %v1754 = vpop.f32.mrf.mxu0
        %v1755 = vpop.f32.mrf.mxu0
        %v1756 = vadd.f32 0.0, %v1755
        %v1757 = vpop.f32.mrf.mxu0
        %1758 = vmatprep.mubr.bf16.mxu0 %v1391
        %1759 = vmatmul.mubr.bf16.gmra.mxu0 %v1390
        %v1760 = vpop.f32.mrf.mxu0
        %v1761 = vadd.f32 0.0, %v1760
        %v1762 = vpop.f32.mrf.mxu0
        %v1763 = vpop.f32.mrf.mxu0
        %v1764 = vadd.f32 0.0, %v1763
        %v1765 = vpop.f32.mrf.mxu0
        %1766 = vmatprep.mubr.bf16.mxu0 %v1394
        %1767 = vmatmul.mubr.bf16.gmra.mxu0 %v1393
        %v1768 = vpop.f32.mrf.mxu0
        %v1769 = vadd.f32 0.0, %v1768
        %v1770 = vpop.f32.mrf.mxu0
        %v1771 = vpop.f32.mrf.mxu0
        %v1772 = vadd.f32 0.0, %v1771
        %v1773 = vpop.f32.mrf.mxu0
        %1774 = vmatprep.mubr.bf16.mxu0 %v1397
        %1775 = vmatmul.mubr.bf16.gmra.mxu0 %v1396
        %v1776 = vpop.f32.mrf.mxu0
        %v1777 = vadd.f32 0.0, %v1776
        %v1778 = vpop.f32.mrf.mxu0
        %v1779 = vpop.f32.mrf.mxu0
        %v1780 = vadd.f32 0.0, %v1779
        %v1781 = vpop.f32.mrf.mxu0
        %1782 = vmatprep.mubr.bf16.mxu0 %v1400
        %1783 = vmatmul.mubr.bf16.gmra.mxu0 %v1399
        %v1784 = vpop.f32.mrf.mxu0
        %v1785 = vadd.f32 0.0, %v1784
        %v1786 = vpop.f32.mrf.mxu0
        %v1787 = vpop.f32.mrf.mxu0
        %v1788 = vadd.f32 0.0, %v1787
        %v1789 = vpop.f32.mrf.mxu0
        %1790 = vmatprep.mubr.bf16.mxu0 %v1403
        %1791 = vmatmul.mubr.bf16.gmra.mxu0 %v1402
        %v1792 = vpop.f32.mrf.mxu0
        %v1793 = vadd.f32 0.0, %v1792
        %v1794 = vpop.f32.mrf.mxu0
        %v1795 = vpop.f32.mrf.mxu0
        %v1796 = vadd.f32 0.0, %v1795
        %v1797 = vpop.f32.mrf.mxu0
        %1798 = vmatprep.mubr.bf16.mxu0 %v1406
        %1799 = vmatmul.mubr.bf16.gmra.mxu0 %v1405
        %v1800 = vpop.f32.mrf.mxu0
        %v1801 = vadd.f32 0.0, %v1800
        %v1802 = vpop.f32.mrf.mxu0
        %v1803 = vpop.f32.mrf.mxu0
        %v1804 = vadd.f32 0.0, %v1803
        %v1805 = vpop.f32.mrf.mxu0
        %1806 = vmatprep.mubr.bf16.mxu0 %v1409
        %1807 = vmatmul.mubr.bf16.gmra.mxu0 %v1408
        %v1808 = vpop.f32.mrf.mxu0
        %v1809 = vadd.f32 0.0, %v1808
        %v1810 = vpop.f32.mrf.mxu0
        %v1811 = vpop.f32.mrf.mxu0
        %v1812 = vadd.f32 0.0, %v1811
        %v1813 = vpop.f32.mrf.mxu0
        %1814 = vdwg.mxu0
        %1815 = vmatprep.subr.bf16.mxu0 0
        %1816 = vmatpush1.bf16.msra.mxu0 %v1629
        %1817 = vmatprep.subr.bf16.mxu0 0
        %1818 = vmatpush1.bf16.msra.mxu0 %v1628
        %1819 = vmatprep.subr.bf16.mxu0 0
        %1820 = vmatpush1.bf16.msra.mxu0 %v1627
        %1821 = vmatprep.subr.bf16.mxu0 0
        %1822 = vmatpush1.bf16.msra.mxu0 %v1626
        %1823 = vmatprep.subr.bf16.mxu0 0
        %1824 = vmatpush1.bf16.msra.mxu0 %v1625
        %1825 = vmatprep.subr.bf16.mxu0 0
        %1826 = vmatpush1.bf16.msra.mxu0 %v1624
        %1827 = vmatprep.subr.bf16.mxu0 0
        %1828 = vmatpush1.bf16.msra.mxu0 %v1623
        %1829 = vmatprep.subr.bf16.mxu0 0
        %1830 = vmatpush1.bf16.msra.mxu0 %v1622
        %1831 = vmatprep.subr.bf16.mxu0 0
        %1832 = vmatpush2.bf16.msra.mxu0 0
        %1833 = vmatprep.subr.bf16.mxu0 0
        %1834 = vmatpush2.bf16.msra.mxu0 0
        %1835 = vmatprep.subr.bf16.mxu0 0
        %1836 = vmatpush2.bf16.msra.mxu0 0
        %1837 = vmatprep.subr.bf16.mxu0 0
        %1838 = vmatpush2.bf16.msra.mxu0 0
        %1839 = vmatprep.subr.bf16.mxu0 0
        %1840 = vmatpush2.bf16.msra.mxu0 0
        %1841 = vmatprep.subr.bf16.mxu0 0
        %1842 = vmatpush2.bf16.msra.mxu0 0
        %1843 = vmatprep.subr.bf16.mxu0 0
        %1844 = vmatpush2.bf16.msra.mxu0 0
        %1845 = vmatprep.subr.bf16.mxu0 0
        %1846 = vmatpush2.bf16.msra.mxu0 0
        %1847 = vmatprep.mubr.bf16.mxu0 0
        %1848 = vmatmul.mubr.bf16.gmra.mxu0 %v1365
        %v1849 = vpop.f32.mrf.mxu0
        %v1850 = vadd.f32 %v1689, %v1849
        %v1851 = vpop.f32.mrf.mxu0
        %v1852 = vpop.f32.mrf.mxu0
        %v1853 = vadd.f32 %v1692, %v1852
        %v1854 = vpop.f32.mrf.mxu0
        %1855 = vmatprep.mubr.bf16.mxu0 0
        %1856 = vmatmul.mubr.bf16.gmra.mxu0 %v1368
        %v1857 = vpop.f32.mrf.mxu0
        %v1858 = vadd.f32 %v1697, %v1857
        %v1859 = vpop.f32.mrf.mxu0
        %v1860 = vpop.f32.mrf.mxu0
        %v1861 = vadd.f32 %v1700, %v1860
        %v1862 = vpop.f32.mrf.mxu0
        %1863 = vmatprep.mubr.bf16.mxu0 0
        %1864 = vmatmul.mubr.bf16.gmra.mxu0 %v1371
        %v1865 = vpop.f32.mrf.mxu0
        %v1866 = vadd.f32 %v1705, %v1865
        %v1867 = vpop.f32.mrf.mxu0
        %v1868 = vpop.f32.mrf.mxu0
        %v1869 = vadd.f32 %v1708, %v1868
        %v1870 = vpop.f32.mrf.mxu0
        %1871 = vmatprep.mubr.bf16.mxu0 0
        %1872 = vmatmul.mubr.bf16.gmra.mxu0 %v1374
        %v1873 = vpop.f32.mrf.mxu0
        %v1874 = vadd.f32 %v1713, %v1873
        %v1875 = vpop.f32.mrf.mxu0
        %v1876 = vpop.f32.mrf.mxu0
        %v1877 = vadd.f32 %v1716, %v1876
        %v1878 = vpop.f32.mrf.mxu0
        %1879 = vmatprep.mubr.bf16.mxu0 0
        %1880 = vmatmul.mubr.bf16.gmra.mxu0 %v1377
        %v1881 = vpop.f32.mrf.mxu0
        %v1882 = vadd.f32 %v1721, %v1881
        %v1883 = vpop.f32.mrf.mxu0
        %v1884 = vpop.f32.mrf.mxu0
        %v1885 = vadd.f32 %v1724, %v1884
        %v1886 = vpop.f32.mrf.mxu0
        %1887 = vmatprep.mubr.bf16.mxu0 0
        %1888 = vmatmul.mubr.bf16.gmra.mxu0 %v1380
        %v1889 = vpop.f32.mrf.mxu0
        %v1890 = vadd.f32 %v1729, %v1889
        %v1891 = vpop.f32.mrf.mxu0
        %v1892 = vpop.f32.mrf.mxu0
        %v1893 = vadd.f32 %v1732, %v1892
        %v1894 = vpop.f32.mrf.mxu0
        %1895 = vmatprep.mubr.bf16.mxu0 0
        %1896 = vmatmul.mubr.bf16.gmra.mxu0 %v1383
        %v1897 = vpop.f32.mrf.mxu0
        %v1898 = vadd.f32 %v1737, %v1897
        %v1899 = vpop.f32.mrf.mxu0
        %v1900 = vpop.f32.mrf.mxu0
        %v1901 = vadd.f32 %v1740, %v1900
        %v1902 = vpop.f32.mrf.mxu0
        %1903 = vmatprep.mubr.bf16.mxu0 0
        %1904 = vmatmul.mubr.bf16.gmra.mxu0 %v1386
        %v1905 = vpop.f32.mrf.mxu0
        %v1906 = vadd.f32 %v1745, %v1905
        %v1907 = vpop.f32.mrf.mxu0
        %v1908 = vpop.f32.mrf.mxu0
        %v1909 = vadd.f32 %v1748, %v1908
        %v1910 = vpop.f32.mrf.mxu0
        %1911 = vmatprep.mubr.bf16.mxu0 0
        %1912 = vmatmul.mubr.bf16.gmra.mxu0 %v1389
        %v1913 = vpop.f32.mrf.mxu0
        %v1914 = vadd.f32 %v1753, %v1913
        %v1915 = vpop.f32.mrf.mxu0
        %v1916 = vpop.f32.mrf.mxu0
        %v1917 = vadd.f32 %v1756, %v1916
        %v1918 = vpop.f32.mrf.mxu0
        %1919 = vmatprep.mubr.bf16.mxu0 0
        %1920 = vmatmul.mubr.bf16.gmra.mxu0 %v1392
        %v1921 = vpop.f32.mrf.mxu0
        %v1922 = vadd.f32 %v1761, %v1921
        %v1923 = vpop.f32.mrf.mxu0
        %v1924 = vpop.f32.mrf.mxu0
        %v1925 = vadd.f32 %v1764, %v1924
        %v1926 = vpop.f32.mrf.mxu0
        %1927 = vmatprep.mubr.bf16.mxu0 0
        %1928 = vmatmul.mubr.bf16.gmra.mxu0 %v1395
        %v1929 = vpop.f32.mrf.mxu0
        %v1930 = vadd.f32 %v1769, %v1929
        %v1931 = vpop.f32.mrf.mxu0
        %v1932 = vpop.f32.mrf.mxu0
        %v1933 = vadd.f32 %v1772, %v1932
        %v1934 = vpop.f32.mrf.mxu0
        %1935 = vmatprep.mubr.bf16.mxu0 0
        %1936 = vmatmul.mubr.bf16.gmra.mxu0 %v1398
        %v1937 = vpop.f32.mrf.mxu0
        %v1938 = vadd.f32 %v1777, %v1937
        %v1939 = vpop.f32.mrf.mxu0
        %v1940 = vpop.f32.mrf.mxu0
        %v1941 = vadd.f32 %v1780, %v1940
        %v1942 = vpop.f32.mrf.mxu0
        %1943 = vmatprep.mubr.bf16.mxu0 0
        %1944 = vmatmul.mubr.bf16.gmra.mxu0 %v1401
        %v1945 = vpop.f32.mrf.mxu0
        %v1946 = vadd.f32 %v1785, %v1945
        %v1947 = vpop.f32.mrf.mxu0
        %v1948 = vpop.f32.mrf.mxu0
        %v1949 = vadd.f32 %v1788, %v1948
        %v1950 = vpop.f32.mrf.mxu0
        %1951 = vmatprep.mubr.bf16.mxu0 0
        %1952 = vmatmul.mubr.bf16.gmra.mxu0 %v1404
        %v1953 = vpop.f32.mrf.mxu0
        %v1954 = vadd.f32 %v1793, %v1953
        %v1955 = vpop.f32.mrf.mxu0
        %v1956 = vpop.f32.mrf.mxu0
        %v1957 = vadd.f32 %v1796, %v1956
        %v1958 = vpop.f32.mrf.mxu0
        %1959 = vmatprep.mubr.bf16.mxu0 0
        %1960 = vmatmul.mubr.bf16.gmra.mxu0 %v1407
        %v1961 = vpop.f32.mrf.mxu0
        %v1962 = vadd.f32 %v1801, %v1961
        %v1963 = vpop.f32.mrf.mxu0
        %v1964 = vpop.f32.mrf.mxu0
        %v1965 = vadd.f32 %v1804, %v1964
        %v1966 = vpop.f32.mrf.mxu0
        %1967 = vmatprep.mubr.bf16.mxu0 0
        %1968 = vmatmul.mubr.bf16.gmra.mxu0 %v1410
        %v1969 = vpop.f32.mrf.mxu0
        %v1970 = vadd.f32 %v1809, %v1969
        %v1971 = vpop.f32.mrf.mxu0
        %v1972 = vpop.f32.mrf.mxu0
        %v1973 = vadd.f32 %v1812, %v1972
        %v1974 = vpop.f32.mrf.mxu0
        %1975 = vdwg.mxu0
        %v2024 = vunpack.c.l.b16 %v1413
        %v2025 = vunpack.c.l.b16 %v1414
        %v2026 = vunpack.c.l.b16 %v1415
        %v2027 = vunpack.c.l.b16 %v1416
        %v2028 = vunpack.c.l.b16 %v1417
        %v2029 = vunpack.c.l.b16 %v1418
        %v2030 = vunpack.c.l.b16 %v1419
        %v2031 = vunpack.c.l.b16 %v1420
        %v2032 = vunpack.c.l.b16 %v1421
        %v2033 = vunpack.c.l.b16 %v1422
        %v2034 = vunpack.c.l.b16 %v1423
        %v2035 = vunpack.c.l.b16 %v1424
        %v2036 = vunpack.c.l.b16 %v1425
        %v2037 = vunpack.c.l.b16 %v1426
        %v2038 = vunpack.c.l.b16 %v1427
        %v2039 = vunpack.c.l.b16 %v1428
        %v2040 = vunpack.c.l.b16 %v1429
        %v2041 = vunpack.c.l.b16 %v1430
        %v2042 = vunpack.c.l.b16 %v1431
        %v2043 = vunpack.c.l.b16 %v1432
        %v2044 = vunpack.c.l.b16 %v1433
        %v2045 = vunpack.c.l.b16 %v1434
        %v2046 = vunpack.c.l.b16 %v1435
        %v2047 = vunpack.c.l.b16 %v1436
        %v2048 = vunpack.c.l.b16 %v1437
        %v2049 = vunpack.c.l.b16 %v1438
        %v2050 = vunpack.c.l.b16 %v1439
        %v2051 = vunpack.c.l.b16 %v1440
        %v2052 = vunpack.c.l.b16 %v1441
        %v2053 = vunpack.c.l.b16 %v1442
        %v2054 = vunpack.c.l.b16 %v1443
        %v2055 = vunpack.c.l.b16 %v1444
        %v2056 = vunpack.c.l.b16 %v1445
        %v2057 = vunpack.c.l.b16 %v1446
        %v2058 = vunpack.c.l.b16 %v1447
        %v2059 = vunpack.c.l.b16 %v1448
        %v2060 = vunpack.c.l.b16 %v1449
        %v2061 = vunpack.c.l.b16 %v1450
        %v2062 = vunpack.c.l.b16 %v1451
        %v2063 = vunpack.c.l.b16 %v1452
        %v2064 = vunpack.c.l.b16 %v1453
        %v2065 = vunpack.c.l.b16 %v1454
        %v2066 = vunpack.c.l.b16 %v1455
        %v2067 = vunpack.c.l.b16 %v1456
        %v2068 = vunpack.c.l.b16 %v1457
        %v2069 = vunpack.c.l.b16 %v1458
        %v2070 = vunpack.c.l.b16 %v1459
        %v2071 = vunpack.c.l.b16 %v1460
        %v2072 = vpack.c.b16 %v2025, %v2024
        %v2073 = vpack.c.b16 %v2027, %v2026
        %v2074 = vpack.c.b16 %v2029, %v2028
        %v2075 = vpack.c.b16 %v2031, %v2030
        %v2076 = vpack.c.b16 %v2033, %v2032
        %v2077 = vpack.c.b16 %v2035, %v2034
        %v2078 = vpack.c.b16 %v2037, %v2036
        %v2079 = vpack.c.b16 %v2039, %v2038
        %v2080 = vpack.c.b16 %v2041, %v2040
        %v2081 = vpack.c.b16 %v2043, %v2042
        %v2082 = vpack.c.b16 %v2045, %v2044
        %v2083 = vpack.c.b16 %v2047, %v2046
        %v2084 = vpack.c.b16 %v2049, %v2048
        %v2085 = vpack.c.b16 %v2051, %v2050
        %v2086 = vpack.c.b16 %v2053, %v2052
        %v2087 = vpack.c.b16 %v2055, %v2054
        %v2088 = vpack.c.b16 %v2057, %v2056
        %v2089 = vpack.c.b16 %v2059, %v2058
        %v2090 = vpack.c.b16 %v2061, %v2060
        %v2091 = vpack.c.b16 %v2063, %v2062
        %v2092 = vpack.c.b16 %v2065, %v2064
        %v2093 = vpack.c.b16 %v2067, %v2066
        %v2094 = vpack.c.b16 %v2069, %v2068
        %v2095 = vpack.c.b16 %v2071, %v2070
        %2120 = vmatprep.subr.bf16.mxu0 0
        %2121 = vmatpush1.bf16.msra.mxu0 %v2079
        %2122 = vmatprep.subr.bf16.mxu0 0
        %2123 = vmatpush1.bf16.msra.mxu0 %v2078
        %2124 = vmatprep.subr.bf16.mxu0 0
        %2125 = vmatpush1.bf16.msra.mxu0 %v2077
        %2126 = vmatprep.subr.bf16.mxu0 0
        %2127 = vmatpush1.bf16.msra.mxu0 %v2076
        %2128 = vmatprep.subr.bf16.mxu0 0
        %2129 = vmatpush1.bf16.msra.mxu0 %v2075
        %2130 = vmatprep.subr.bf16.mxu0 0
        %2131 = vmatpush1.bf16.msra.mxu0 %v2074
        %2132 = vmatprep.subr.bf16.mxu0 0
        %2133 = vmatpush1.bf16.msra.mxu0 %v2073
        %2134 = vmatprep.subr.bf16.mxu0 0
        %2135 = vmatpush1.bf16.msra.mxu0 %v2072
        %2136 = vmatprep.subr.bf16.mxu0 0
        %2137 = vmatpush2.bf16.msra.mxu0 %v2087
        %2138 = vmatprep.subr.bf16.mxu0 0
        %2139 = vmatpush2.bf16.msra.mxu0 %v2086
        %2140 = vmatprep.subr.bf16.mxu0 0
        %2141 = vmatpush2.bf16.msra.mxu0 %v2085
        %2142 = vmatprep.subr.bf16.mxu0 0
        %2143 = vmatpush2.bf16.msra.mxu0 %v2084
        %2144 = vmatprep.subr.bf16.mxu0 0
        %2145 = vmatpush2.bf16.msra.mxu0 %v2083
        %2146 = vmatprep.subr.bf16.mxu0 0
        %2147 = vmatpush2.bf16.msra.mxu0 %v2082
        %2148 = vmatprep.subr.bf16.mxu0 0
        %2149 = vmatpush2.bf16.msra.mxu0 %v2081
        %2150 = vmatprep.subr.bf16.mxu0 0
        %2151 = vmatpush2.bf16.msra.mxu0 %v2080
        %2152 = vmatprep.mubr.bf16.mxu0 %v1361
        %2153 = vmatmul.mubr.bf16.gmra.mxu0 %v1360
        %v2154 = vpop.f32.mrf.mxu0
        %v2155 = vadd.f32 %v1850, %v2154
        %v2156 = vpop.f32.mrf.mxu0
        %v2157 = vpop.f32.mrf.mxu0
        %v2158 = vadd.f32 %v1853, %v2157
        %v2159 = vpop.f32.mrf.mxu0
        %2160 = vmatprep.mubr.bf16.mxu0 %v1364
        %2161 = vmatmul.mubr.bf16.gmra.mxu0 %v1363
        %v2162 = vpop.f32.mrf.mxu0
        %v2163 = vadd.f32 %v1858, %v2162
        %v2164 = vpop.f32.mrf.mxu0
        %v2165 = vpop.f32.mrf.mxu0
        %v2166 = vadd.f32 %v1861, %v2165
        %v2167 = vpop.f32.mrf.mxu0
        %2168 = vmatprep.mubr.bf16.mxu0 %v1367
        %2169 = vmatmul.mubr.bf16.gmra.mxu0 %v1366
        %v2170 = vpop.f32.mrf.mxu0
        %v2171 = vadd.f32 %v1866, %v2170
        %v2172 = vpop.f32.mrf.mxu0
        %v2173 = vpop.f32.mrf.mxu0
        %v2174 = vadd.f32 %v1869, %v2173
        %v2175 = vpop.f32.mrf.mxu0
        %2176 = vmatprep.mubr.bf16.mxu0 %v1370
        %2177 = vmatmul.mubr.bf16.gmra.mxu0 %v1369
        %v2178 = vpop.f32.mrf.mxu0
        %v2179 = vadd.f32 %v1874, %v2178
        %v2180 = vpop.f32.mrf.mxu0
        %v2181 = vpop.f32.mrf.mxu0
        %v2182 = vadd.f32 %v1877, %v2181
        %v2183 = vpop.f32.mrf.mxu0
        %2184 = vmatprep.mubr.bf16.mxu0 %v1373
        %2185 = vmatmul.mubr.bf16.gmra.mxu0 %v1372
        %v2186 = vpop.f32.mrf.mxu0
        %v2187 = vadd.f32 %v1882, %v2186
        %v2188 = vpop.f32.mrf.mxu0
        %v2189 = vpop.f32.mrf.mxu0
        %v2190 = vadd.f32 %v1885, %v2189
        %v2191 = vpop.f32.mrf.mxu0
        %2192 = vmatprep.mubr.bf16.mxu0 %v1376
        %2193 = vmatmul.mubr.bf16.gmra.mxu0 %v1375
        %v2194 = vpop.f32.mrf.mxu0
        %v2195 = vadd.f32 %v1890, %v2194
        %v2196 = vpop.f32.mrf.mxu0
        %v2197 = vpop.f32.mrf.mxu0
        %v2198 = vadd.f32 %v1893, %v2197
        %v2199 = vpop.f32.mrf.mxu0
        %2200 = vmatprep.mubr.bf16.mxu0 %v1379
        %2201 = vmatmul.mubr.bf16.gmra.mxu0 %v1378
        %v2202 = vpop.f32.mrf.mxu0
        %v2203 = vadd.f32 %v1898, %v2202
        %v2204 = vpop.f32.mrf.mxu0
        %v2205 = vpop.f32.mrf.mxu0
        %v2206 = vadd.f32 %v1901, %v2205
        %v2207 = vpop.f32.mrf.mxu0
        %2208 = vmatprep.mubr.bf16.mxu0 %v1382
        %2209 = vmatmul.mubr.bf16.gmra.mxu0 %v1381
        %v2210 = vpop.f32.mrf.mxu0
        %v2211 = vadd.f32 %v1906, %v2210
        %v2212 = vpop.f32.mrf.mxu0
        %v2213 = vpop.f32.mrf.mxu0
        %v2214 = vadd.f32 %v1909, %v2213
        %v2215 = vpop.f32.mrf.mxu0
        %2216 = vmatprep.mubr.bf16.mxu0 %v1385
        %2217 = vmatmul.mubr.bf16.gmra.mxu0 %v1384
        %v2218 = vpop.f32.mrf.mxu0
        %v2219 = vadd.f32 %v1914, %v2218
        %v2220 = vpop.f32.mrf.mxu0
        %v2221 = vpop.f32.mrf.mxu0
        %v2222 = vadd.f32 %v1917, %v2221
        %v2223 = vpop.f32.mrf.mxu0
        %2224 = vmatprep.mubr.bf16.mxu0 %v1388
        %2225 = vmatmul.mubr.bf16.gmra.mxu0 %v1387
        %v2226 = vpop.f32.mrf.mxu0
        %v2227 = vadd.f32 %v1922, %v2226
        %v2228 = vpop.f32.mrf.mxu0
        %v2229 = vpop.f32.mrf.mxu0
        %v2230 = vadd.f32 %v1925, %v2229
        %v2231 = vpop.f32.mrf.mxu0
        %2232 = vmatprep.mubr.bf16.mxu0 %v1391
        %2233 = vmatmul.mubr.bf16.gmra.mxu0 %v1390
        %v2234 = vpop.f32.mrf.mxu0
        %v2235 = vadd.f32 %v1930, %v2234
        %v2236 = vpop.f32.mrf.mxu0
        %v2237 = vpop.f32.mrf.mxu0
        %v2238 = vadd.f32 %v1933, %v2237
        %v2239 = vpop.f32.mrf.mxu0
        %2240 = vmatprep.mubr.bf16.mxu0 %v1394
        %2241 = vmatmul.mubr.bf16.gmra.mxu0 %v1393
        %v2242 = vpop.f32.mrf.mxu0
        %v2243 = vadd.f32 %v1938, %v2242
        %v2244 = vpop.f32.mrf.mxu0
        %v2245 = vpop.f32.mrf.mxu0
        %v2246 = vadd.f32 %v1941, %v2245
        %v2247 = vpop.f32.mrf.mxu0
        %2248 = vmatprep.mubr.bf16.mxu0 %v1397
        %2249 = vmatmul.mubr.bf16.gmra.mxu0 %v1396
        %v2250 = vpop.f32.mrf.mxu0
        %v2251 = vadd.f32 %v1946, %v2250
        %v2252 = vpop.f32.mrf.mxu0
        %v2253 = vpop.f32.mrf.mxu0
        %v2254 = vadd.f32 %v1949, %v2253
        %v2255 = vpop.f32.mrf.mxu0
        %2256 = vmatprep.mubr.bf16.mxu0 %v1400
        %2257 = vmatmul.mubr.bf16.gmra.mxu0 %v1399
        %v2258 = vpop.f32.mrf.mxu0
        %v2259 = vadd.f32 %v1954, %v2258
        %v2260 = vpop.f32.mrf.mxu0
        %v2261 = vpop.f32.mrf.mxu0
        %v2262 = vadd.f32 %v1957, %v2261
        %v2263 = vpop.f32.mrf.mxu0
        %2264 = vmatprep.mubr.bf16.mxu0 %v1403
        %2265 = vmatmul.mubr.bf16.gmra.mxu0 %v1402
        %v2266 = vpop.f32.mrf.mxu0
        %v2267 = vadd.f32 %v1962, %v2266
        %v2268 = vpop.f32.mrf.mxu0
        %v2269 = vpop.f32.mrf.mxu0
        %v2270 = vadd.f32 %v1965, %v2269
        %v2271 = vpop.f32.mrf.mxu0
        %2272 = vmatprep.mubr.bf16.mxu0 %v1406
        %2273 = vmatmul.mubr.bf16.gmra.mxu0 %v1405
        %v2274 = vpop.f32.mrf.mxu0
        %v2275 = vadd.f32 %v1970, %v2274
        %v2276 = vpop.f32.mrf.mxu0
        %v2277 = vpop.f32.mrf.mxu0
        %v2278 = vadd.f32 %v1973, %v2277
        %v2279 = vpop.f32.mrf.mxu0
        %2280 = vdwg.mxu0
        %2281 = vmatprep.subr.bf16.mxu0 0
        %2282 = vmatpush1.bf16.msra.mxu0 %v2095
        %2283 = vmatprep.subr.bf16.mxu0 0
        %2284 = vmatpush1.bf16.msra.mxu0 %v2094
        %2285 = vmatprep.subr.bf16.mxu0 0
        %2286 = vmatpush1.bf16.msra.mxu0 %v2093
        %2287 = vmatprep.subr.bf16.mxu0 0
        %2288 = vmatpush1.bf16.msra.mxu0 %v2092
        %2289 = vmatprep.subr.bf16.mxu0 0
        %2290 = vmatpush1.bf16.msra.mxu0 %v2091
        %2291 = vmatprep.subr.bf16.mxu0 0
        %2292 = vmatpush1.bf16.msra.mxu0 %v2090
        %2293 = vmatprep.subr.bf16.mxu0 0
        %2294 = vmatpush1.bf16.msra.mxu0 %v2089
        %2295 = vmatprep.subr.bf16.mxu0 0
        %2296 = vmatpush1.bf16.msra.mxu0 %v2088
        %2297 = vmatprep.subr.bf16.mxu0 0
        %2298 = vmatpush2.bf16.msra.mxu0 0
        %2299 = vmatprep.subr.bf16.mxu0 0
        %2300 = vmatpush2.bf16.msra.mxu0 0
        %2301 = vmatprep.subr.bf16.mxu0 0
        %2302 = vmatpush2.bf16.msra.mxu0 0
        %2303 = vmatprep.subr.bf16.mxu0 0
        %2304 = vmatpush2.bf16.msra.mxu0 0
        %2305 = vmatprep.subr.bf16.mxu0 0
        %2306 = vmatpush2.bf16.msra.mxu0 0
        %2307 = vmatprep.subr.bf16.mxu0 0
        %2308 = vmatpush2.bf16.msra.mxu0 0
        %2309 = vmatprep.subr.bf16.mxu0 0
        %2310 = vmatpush2.bf16.msra.mxu0 0
        %2311 = vmatprep.subr.bf16.mxu0 0
        %2312 = vmatpush2.bf16.msra.mxu0 0
        %2313 = vmatprep.mubr.bf16.mxu0 0
        %2314 = vmatmul.mubr.bf16.gmra.mxu0 %v1362
        %v2315 = vpop.f32.mrf.mxu0
        %v2316 = vadd.f32 %v2155, %v2315
        %v2317 = vpop.f32.mrf.mxu0
        %v2318 = vpop.f32.mrf.mxu0
        %v2319 = vadd.f32 %v2158, %v2318
        %v2320 = vpop.f32.mrf.mxu0
        %2321 = vmatprep.mubr.bf16.mxu0 0
        %2322 = vmatmul.mubr.bf16.gmra.mxu0 %v1365
        %v2323 = vpop.f32.mrf.mxu0
        %v2324 = vadd.f32 %v2163, %v2323
        %v2325 = vpop.f32.mrf.mxu0
        %v2326 = vpop.f32.mrf.mxu0
        %v2327 = vadd.f32 %v2166, %v2326
        %v2328 = vpop.f32.mrf.mxu0
        %2329 = vmatprep.mubr.bf16.mxu0 0
        %2330 = vmatmul.mubr.bf16.gmra.mxu0 %v1368
        %v2331 = vpop.f32.mrf.mxu0
        %v2332 = vadd.f32 %v2171, %v2331
        %v2333 = vpop.f32.mrf.mxu0
        %v2334 = vpop.f32.mrf.mxu0
        %v2335 = vadd.f32 %v2174, %v2334
        %v2336 = vpop.f32.mrf.mxu0
        %2337 = vmatprep.mubr.bf16.mxu0 0
        %2338 = vmatmul.mubr.bf16.gmra.mxu0 %v1371
        %v2339 = vpop.f32.mrf.mxu0
        %v2340 = vadd.f32 %v2179, %v2339
        %v2341 = vpop.f32.mrf.mxu0
        %v2342 = vpop.f32.mrf.mxu0
        %v2343 = vadd.f32 %v2182, %v2342
        %v2344 = vpop.f32.mrf.mxu0
        %2345 = vmatprep.mubr.bf16.mxu0 0
        %2346 = vmatmul.mubr.bf16.gmra.mxu0 %v1374
        %v2347 = vpop.f32.mrf.mxu0
        %v2348 = vadd.f32 %v2187, %v2347
        %v2349 = vpop.f32.mrf.mxu0
        %v2350 = vpop.f32.mrf.mxu0
        %v2351 = vadd.f32 %v2190, %v2350
        %v2352 = vpop.f32.mrf.mxu0
        %2353 = vmatprep.mubr.bf16.mxu0 0
        %2354 = vmatmul.mubr.bf16.gmra.mxu0 %v1377
        %v2355 = vpop.f32.mrf.mxu0
        %v2356 = vadd.f32 %v2195, %v2355
        %v2357 = vpop.f32.mrf.mxu0
        %v2358 = vpop.f32.mrf.mxu0
        %v2359 = vadd.f32 %v2198, %v2358
        %v2360 = vpop.f32.mrf.mxu0
        %2361 = vmatprep.mubr.bf16.mxu0 0
        %2362 = vmatmul.mubr.bf16.gmra.mxu0 %v1380
        %v2363 = vpop.f32.mrf.mxu0
        %v2364 = vadd.f32 %v2203, %v2363
        %v2365 = vpop.f32.mrf.mxu0
        %v2366 = vpop.f32.mrf.mxu0
        %v2367 = vadd.f32 %v2206, %v2366
        %v2368 = vpop.f32.mrf.mxu0
        %2369 = vmatprep.mubr.bf16.mxu0 0
        %2370 = vmatmul.mubr.bf16.gmra.mxu0 %v1383
        %v2371 = vpop.f32.mrf.mxu0
        %v2372 = vadd.f32 %v2211, %v2371
        %v2373 = vpop.f32.mrf.mxu0
        %v2374 = vpop.f32.mrf.mxu0
        %v2375 = vadd.f32 %v2214, %v2374
        %v2376 = vpop.f32.mrf.mxu0
        %2377 = vmatprep.mubr.bf16.mxu0 0
        %2378 = vmatmul.mubr.bf16.gmra.mxu0 %v1386
        %v2379 = vpop.f32.mrf.mxu0
        %v2380 = vadd.f32 %v2219, %v2379
        %v2381 = vpop.f32.mrf.mxu0
        %v2382 = vpop.f32.mrf.mxu0
        %v2383 = vadd.f32 %v2222, %v2382
        %v2384 = vpop.f32.mrf.mxu0
        %2385 = vmatprep.mubr.bf16.mxu0 0
        %2386 = vmatmul.mubr.bf16.gmra.mxu0 %v1389
        %v2387 = vpop.f32.mrf.mxu0
        %v2388 = vadd.f32 %v2227, %v2387
        %v2389 = vpop.f32.mrf.mxu0
        %v2390 = vpop.f32.mrf.mxu0
        %v2391 = vadd.f32 %v2230, %v2390
        %v2392 = vpop.f32.mrf.mxu0
        %2393 = vmatprep.mubr.bf16.mxu0 0
        %2394 = vmatmul.mubr.bf16.gmra.mxu0 %v1392
        %v2395 = vpop.f32.mrf.mxu0
        %v2396 = vadd.f32 %v2235, %v2395
        %v2397 = vpop.f32.mrf.mxu0
        %v2398 = vpop.f32.mrf.mxu0
        %v2399 = vadd.f32 %v2238, %v2398
        %v2400 = vpop.f32.mrf.mxu0
        %2401 = vmatprep.mubr.bf16.mxu0 0
        %2402 = vmatmul.mubr.bf16.gmra.mxu0 %v1395
        %v2403 = vpop.f32.mrf.mxu0
        %v2404 = vadd.f32 %v2243, %v2403
        %v2405 = vpop.f32.mrf.mxu0
        %v2406 = vpop.f32.mrf.mxu0
        %v2407 = vadd.f32 %v2246, %v2406
        %v2408 = vpop.f32.mrf.mxu0
        %2409 = vmatprep.mubr.bf16.mxu0 0
        %2410 = vmatmul.mubr.bf16.gmra.mxu0 %v1398
        %v2411 = vpop.f32.mrf.mxu0
        %v2412 = vadd.f32 %v2251, %v2411
        %v2413 = vpop.f32.mrf.mxu0
        %v2414 = vpop.f32.mrf.mxu0
        %v2415 = vadd.f32 %v2254, %v2414
        %v2416 = vpop.f32.mrf.mxu0
        %2417 = vmatprep.mubr.bf16.mxu0 0
        %2418 = vmatmul.mubr.bf16.gmra.mxu0 %v1401
        %v2419 = vpop.f32.mrf.mxu0
        %v2420 = vadd.f32 %v2259, %v2419
        %v2421 = vpop.f32.mrf.mxu0
        %v2422 = vpop.f32.mrf.mxu0
        %v2423 = vadd.f32 %v2262, %v2422
        %v2424 = vpop.f32.mrf.mxu0
        %2425 = vmatprep.mubr.bf16.mxu0 0
        %2426 = vmatmul.mubr.bf16.gmra.mxu0 %v1404
        %v2427 = vpop.f32.mrf.mxu0
        %v2428 = vadd.f32 %v2267, %v2427
        %v2429 = vpop.f32.mrf.mxu0
        %v2430 = vpop.f32.mrf.mxu0
        %v2431 = vadd.f32 %v2270, %v2430
        %v2432 = vpop.f32.mrf.mxu0
        %2433 = vmatprep.mubr.bf16.mxu0 0
        %2434 = vmatmul.mubr.bf16.gmra.mxu0 %v1407
        %v2435 = vpop.f32.mrf.mxu0
        %v2436 = vadd.f32 %v2275, %v2435
        %v2437 = vpop.f32.mrf.mxu0
        %v2438 = vpop.f32.mrf.mxu0
        %v2439 = vadd.f32 %v2278, %v2438
        %v2440 = vpop.f32.mrf.mxu0
        %2441 = vdwg.mxu0
        %s2442 = scalar_lea.vmem [#allocation7], 384
        %v2443 = vld [vmem:[%s2442] sm:$0xf]
        %v2444 = vld [vmem:[%s2442 + $0x4] sm:$0xf]
        %v2445 = vld [vmem:[%s2442 + $0x8] sm:$0xf]
        %v2446 = vld [vmem:[%s2442 + $0xc] sm:$0xf]
        %v2447 = vld [vmem:[%s2442 + $0x10] sm:$0xf]
        %v2448 = vld [vmem:[%s2442 + $0x14] sm:$0xf]
        %v2449 = vld [vmem:[%s2442 + $0x18] sm:$0xf]
        %v2450 = vld [vmem:[%s2442 + $0x1c] sm:$0xf]
        %v2451 = vld [vmem:[%s2442 + $0x20] sm:$0xf]
        %v2452 = vld [vmem:[%s2442 + $0x24] sm:$0xf]
        %v2453 = vld [vmem:[%s2442 + $0x28] sm:$0xf]
        %v2454 = vld [vmem:[%s2442 + $0x2c] sm:$0xf]
        %v2455 = vld [vmem:[%s2442 + $0x30] sm:$0xf]
        %v2456 = vld [vmem:[%s2442 + $0x34] sm:$0xf]
        %v2457 = vld [vmem:[%s2442 + $0x38] sm:$0xf]
        %v2458 = vld [vmem:[%s2442 + $0x3c] sm:$0xf]
        %v2459 = vld [vmem:[%s2442 + $0x40] sm:$0xf]
        %v2460 = vld [vmem:[%s2442 + $0x44] sm:$0xf]
        %v2461 = vld [vmem:[%s2442 + $0x48] sm:$0xf]
        %v2462 = vld [vmem:[%s2442 + $0x4c] sm:$0xf]
        %v2463 = vld [vmem:[%s2442 + $0x50] sm:$0xf]
        %v2464 = vld [vmem:[%s2442 + $0x54] sm:$0xf]
        %v2465 = vld [vmem:[%s2442 + $0x58] sm:$0xf]
        %v2466 = vld [vmem:[%s2442 + $0x5c] sm:$0xf]
        %v2467 = vld [vmem:[%s2442 + $0x60] sm:$0xf]
        %v2468 = vld [vmem:[%s2442 + $0x64] sm:$0xf]
        %v2469 = vld [vmem:[%s2442 + $0x68] sm:$0xf]
        %v2470 = vld [vmem:[%s2442 + $0x6c] sm:$0xf]
        %v2471 = vld [vmem:[%s2442 + $0x70] sm:$0xf]
        %v2472 = vld [vmem:[%s2442 + $0x74] sm:$0xf]
        %v2473 = vld [vmem:[%s2442 + $0x78] sm:$0xf]
        %v2474 = vld [vmem:[%s2442 + $0x7c] sm:$0xf]
        %v2475 = vld [vmem:[%s2442 + $0x80] sm:$0xf]
        %v2476 = vld [vmem:[%s2442 + $0x84] sm:$0xf]
        %v2477 = vld [vmem:[%s2442 + $0x88] sm:$0xf]
        %v2478 = vld [vmem:[%s2442 + $0x8c] sm:$0xf]
        %v2479 = vld [vmem:[%s2442 + $0x90] sm:$0xf]
        %v2480 = vld [vmem:[%s2442 + $0x94] sm:$0xf]
        %v2481 = vld [vmem:[%s2442 + $0x98] sm:$0xf]
        %v2482 = vld [vmem:[%s2442 + $0x9c] sm:$0xf]
        %v2483 = vld [vmem:[%s2442 + $0xa0] sm:$0xf]
        %v2484 = vld [vmem:[%s2442 + $0xa4] sm:$0xf]
        %v2485 = vld [vmem:[%s2442 + $0xa8] sm:$0xf]
        %v2486 = vld [vmem:[%s2442 + $0xac] sm:$0xf]
        %v2487 = vld [vmem:[%s2442 + $0xb0] sm:$0xf]
        %v2488 = vld [vmem:[%s2442 + $0xb4] sm:$0xf]
        %v2489 = vld [vmem:[%s2442 + $0xb8] sm:$0xf]
        %v2490 = vld [vmem:[%s2442 + $0xbc] sm:$0xf]
        %v2539 = vunpack.c.l.b16 %v2443
        %v2540 = vunpack.c.l.b16 %v2444
        %v2541 = vunpack.c.l.b16 %v2445
        %v2542 = vunpack.c.l.b16 %v2446
        %v2543 = vunpack.c.l.b16 %v2447
        %v2544 = vunpack.c.l.b16 %v2448
        %v2545 = vunpack.c.l.b16 %v2449
        %v2546 = vunpack.c.l.b16 %v2450
        %v2547 = vunpack.c.l.b16 %v2451
        %v2548 = vunpack.c.l.b16 %v2452
        %v2549 = vunpack.c.l.b16 %v2453
        %v2550 = vunpack.c.l.b16 %v2454
        %v2551 = vunpack.c.l.b16 %v2455
        %v2552 = vunpack.c.l.b16 %v2456
        %v2553 = vunpack.c.l.b16 %v2457
        %v2554 = vunpack.c.l.b16 %v2458
        %v2555 = vunpack.c.l.b16 %v2459
        %v2556 = vunpack.c.l.b16 %v2460
        %v2557 = vunpack.c.l.b16 %v2461
        %v2558 = vunpack.c.l.b16 %v2462
        %v2559 = vunpack.c.l.b16 %v2463
        %v2560 = vunpack.c.l.b16 %v2464
        %v2561 = vunpack.c.l.b16 %v2465
        %v2562 = vunpack.c.l.b16 %v2466
        %v2563 = vunpack.c.l.b16 %v2467
        %v2564 = vunpack.c.l.b16 %v2468
        %v2565 = vunpack.c.l.b16 %v2469
        %v2566 = vunpack.c.l.b16 %v2470
        %v2567 = vunpack.c.l.b16 %v2471
        %v2568 = vunpack.c.l.b16 %v2472
        %v2569 = vunpack.c.l.b16 %v2473
        %v2570 = vunpack.c.l.b16 %v2474
        %v2571 = vunpack.c.l.b16 %v2475
        %v2572 = vunpack.c.l.b16 %v2476
        %v2573 = vunpack.c.l.b16 %v2477
        %v2574 = vunpack.c.l.b16 %v2478
        %v2575 = vunpack.c.l.b16 %v2479
        %v2576 = vunpack.c.l.b16 %v2480
        %v2577 = vunpack.c.l.b16 %v2481
        %v2578 = vunpack.c.l.b16 %v2482
        %v2579 = vunpack.c.l.b16 %v2483
        %v2580 = vunpack.c.l.b16 %v2484
        %v2581 = vunpack.c.l.b16 %v2485
        %v2582 = vunpack.c.l.b16 %v2486
        %v2583 = vunpack.c.l.b16 %v2487
        %v2584 = vunpack.c.l.b16 %v2488
        %v2585 = vunpack.c.l.b16 %v2489
        %v2586 = vunpack.c.l.b16 %v2490
        %v2587 = vpack.c.b16 %v2540, %v2539
        %v2588 = vpack.c.b16 %v2542, %v2541
        %v2589 = vpack.c.b16 %v2544, %v2543
        %v2590 = vpack.c.b16 %v2546, %v2545
        %v2591 = vpack.c.b16 %v2548, %v2547
        %v2592 = vpack.c.b16 %v2550, %v2549
        %v2593 = vpack.c.b16 %v2552, %v2551
        %v2594 = vpack.c.b16 %v2554, %v2553
        %v2595 = vpack.c.b16 %v2556, %v2555
        %v2596 = vpack.c.b16 %v2558, %v2557
        %v2597 = vpack.c.b16 %v2560, %v2559
        %v2598 = vpack.c.b16 %v2562, %v2561
        %v2599 = vpack.c.b16 %v2564, %v2563
        %v2600 = vpack.c.b16 %v2566, %v2565
        %v2601 = vpack.c.b16 %v2568, %v2567
        %v2602 = vpack.c.b16 %v2570, %v2569
        %v2603 = vpack.c.b16 %v2572, %v2571
        %v2604 = vpack.c.b16 %v2574, %v2573
        %v2605 = vpack.c.b16 %v2576, %v2575
        %v2606 = vpack.c.b16 %v2578, %v2577
        %v2607 = vpack.c.b16 %v2580, %v2579
        %v2608 = vpack.c.b16 %v2582, %v2581
        %v2609 = vpack.c.b16 %v2584, %v2583
        %v2610 = vpack.c.b16 %v2586, %v2585
        %2635 = vmatprep.subr.bf16.mxu0 0
        %2636 = vmatpush1.bf16.msra.mxu0 %v2594
        %2637 = vmatprep.subr.bf16.mxu0 0
        %2638 = vmatpush1.bf16.msra.mxu0 %v2593
        %2639 = vmatprep.subr.bf16.mxu0 0
        %2640 = vmatpush1.bf16.msra.mxu0 %v2592
        %2641 = vmatprep.subr.bf16.mxu0 0
        %2642 = vmatpush1.bf16.msra.mxu0 %v2591
        %2643 = vmatprep.subr.bf16.mxu0 0
        %2644 = vmatpush1.bf16.msra.mxu0 %v2590
        %2645 = vmatprep.subr.bf16.mxu0 0
        %2646 = vmatpush1.bf16.msra.mxu0 %v2589
        %2647 = vmatprep.subr.bf16.mxu0 0
        %2648 = vmatpush1.bf16.msra.mxu0 %v2588
        %2649 = vmatprep.subr.bf16.mxu0 0
        %2650 = vmatpush1.bf16.msra.mxu0 %v2587
        %2651 = vmatprep.subr.bf16.mxu0 0
        %2652 = vmatpush2.bf16.msra.mxu0 %v2602
        %2653 = vmatprep.subr.bf16.mxu0 0
        %2654 = vmatpush2.bf16.msra.mxu0 %v2601
        %2655 = vmatprep.subr.bf16.mxu0 0
        %2656 = vmatpush2.bf16.msra.mxu0 %v2600
        %2657 = vmatprep.subr.bf16.mxu0 0
        %2658 = vmatpush2.bf16.msra.mxu0 %v2599
        %2659 = vmatprep.subr.bf16.mxu0 0
        %2660 = vmatpush2.bf16.msra.mxu0 %v2598
        %2661 = vmatprep.subr.bf16.mxu0 0
        %2662 = vmatpush2.bf16.msra.mxu0 %v2597
        %2663 = vmatprep.subr.bf16.mxu0 0
        %2664 = vmatpush2.bf16.msra.mxu0 %v2596
        %2665 = vmatprep.subr.bf16.mxu0 0
        %2666 = vmatpush2.bf16.msra.mxu0 %v2595
        %2667 = vmatprep.mubr.bf16.mxu0 %v1367
        %2668 = vmatmul.mubr.bf16.gmra.mxu0 %v1366
        %v2669 = vpop.f32.mrf.mxu0
        %v2670 = vadd.f32 0.0, %v2669
        %v2671 = vpop.f32.mrf.mxu0
        %v2672 = vpop.f32.mrf.mxu0
        %v2673 = vadd.f32 0.0, %v2672
        %v2674 = vpop.f32.mrf.mxu0
        %2675 = vmatprep.mubr.bf16.mxu0 %v1370
        %2676 = vmatmul.mubr.bf16.gmra.mxu0 %v1369
        %v2677 = vpop.f32.mrf.mxu0
        %v2678 = vadd.f32 0.0, %v2677
        %v2679 = vpop.f32.mrf.mxu0
        %v2680 = vpop.f32.mrf.mxu0
        %v2681 = vadd.f32 0.0, %v2680
        %v2682 = vpop.f32.mrf.mxu0
        %2683 = vmatprep.mubr.bf16.mxu0 %v1373
        %2684 = vmatmul.mubr.bf16.gmra.mxu0 %v1372
        %v2685 = vpop.f32.mrf.mxu0
        %v2686 = vadd.f32 0.0, %v2685
        %v2687 = vpop.f32.mrf.mxu0
        %v2688 = vpop.f32.mrf.mxu0
        %v2689 = vadd.f32 0.0, %v2688
        %v2690 = vpop.f32.mrf.mxu0
        %2691 = vmatprep.mubr.bf16.mxu0 %v1376
        %2692 = vmatmul.mubr.bf16.gmra.mxu0 %v1375
        %v2693 = vpop.f32.mrf.mxu0
        %v2694 = vadd.f32 0.0, %v2693
        %v2695 = vpop.f32.mrf.mxu0
        %v2696 = vpop.f32.mrf.mxu0
        %v2697 = vadd.f32 0.0, %v2696
        %v2698 = vpop.f32.mrf.mxu0
        %2699 = vmatprep.mubr.bf16.mxu0 %v1379
        %2700 = vmatmul.mubr.bf16.gmra.mxu0 %v1378
        %v2701 = vpop.f32.mrf.mxu0
        %v2702 = vadd.f32 0.0, %v2701
        %v2703 = vpop.f32.mrf.mxu0
        %v2704 = vpop.f32.mrf.mxu0
        %v2705 = vadd.f32 0.0, %v2704
        %v2706 = vpop.f32.mrf.mxu0
        %2707 = vmatprep.mubr.bf16.mxu0 %v1382
        %2708 = vmatmul.mubr.bf16.gmra.mxu0 %v1381
        %v2709 = vpop.f32.mrf.mxu0
        %v2710 = vadd.f32 0.0, %v2709
        %v2711 = vpop.f32.mrf.mxu0
        %v2712 = vpop.f32.mrf.mxu0
        %v2713 = vadd.f32 0.0, %v2712
        %v2714 = vpop.f32.mrf.mxu0
        %2715 = vmatprep.mubr.bf16.mxu0 %v1385
        %2716 = vmatmul.mubr.bf16.gmra.mxu0 %v1384
        %v2717 = vpop.f32.mrf.mxu0
        %v2718 = vadd.f32 0.0, %v2717
        %v2719 = vpop.f32.mrf.mxu0
        %v2720 = vpop.f32.mrf.mxu0
        %v2721 = vadd.f32 0.0, %v2720
        %v2722 = vpop.f32.mrf.mxu0
        %2723 = vmatprep.mubr.bf16.mxu0 %v1388
        %2724 = vmatmul.mubr.bf16.gmra.mxu0 %v1387
        %v2725 = vpop.f32.mrf.mxu0
        %v2726 = vadd.f32 0.0, %v2725
        %v2727 = vpop.f32.mrf.mxu0
        %v2728 = vpop.f32.mrf.mxu0
        %v2729 = vadd.f32 0.0, %v2728
        %v2730 = vpop.f32.mrf.mxu0
        %2731 = vmatprep.mubr.bf16.mxu0 %v1391
        %2732 = vmatmul.mubr.bf16.gmra.mxu0 %v1390
        %v2733 = vpop.f32.mrf.mxu0
        %v2734 = vadd.f32 0.0, %v2733
        %v2735 = vpop.f32.mrf.mxu0
        %v2736 = vpop.f32.mrf.mxu0
        %v2737 = vadd.f32 0.0, %v2736
        %v2738 = vpop.f32.mrf.mxu0
        %2739 = vmatprep.mubr.bf16.mxu0 %v1394
        %2740 = vmatmul.mubr.bf16.gmra.mxu0 %v1393
        %v2741 = vpop.f32.mrf.mxu0
        %v2742 = vadd.f32 0.0, %v2741
        %v2743 = vpop.f32.mrf.mxu0
        %v2744 = vpop.f32.mrf.mxu0
        %v2745 = vadd.f32 0.0, %v2744
        %v2746 = vpop.f32.mrf.mxu0
        %2747 = vmatprep.mubr.bf16.mxu0 %v1397
        %2748 = vmatmul.mubr.bf16.gmra.mxu0 %v1396
        %v2749 = vpop.f32.mrf.mxu0
        %v2750 = vadd.f32 0.0, %v2749
        %v2751 = vpop.f32.mrf.mxu0
        %v2752 = vpop.f32.mrf.mxu0
        %v2753 = vadd.f32 0.0, %v2752
        %v2754 = vpop.f32.mrf.mxu0
        %2755 = vmatprep.mubr.bf16.mxu0 %v1400
        %2756 = vmatmul.mubr.bf16.gmra.mxu0 %v1399
        %v2757 = vpop.f32.mrf.mxu0
        %v2758 = vadd.f32 0.0, %v2757
        %v2759 = vpop.f32.mrf.mxu0
        %v2760 = vpop.f32.mrf.mxu0
        %v2761 = vadd.f32 0.0, %v2760
        %v2762 = vpop.f32.mrf.mxu0
        %2763 = vmatprep.mubr.bf16.mxu0 %v1403
        %2764 = vmatmul.mubr.bf16.gmra.mxu0 %v1402
        %v2765 = vpop.f32.mrf.mxu0
        %v2766 = vadd.f32 0.0, %v2765
        %v2767 = vpop.f32.mrf.mxu0
        %v2768 = vpop.f32.mrf.mxu0
        %v2769 = vadd.f32 0.0, %v2768
        %v2770 = vpop.f32.mrf.mxu0
        %2771 = vmatprep.mubr.bf16.mxu0 %v1406
        %2772 = vmatmul.mubr.bf16.gmra.mxu0 %v1405
        %v2773 = vpop.f32.mrf.mxu0
        %v2774 = vadd.f32 0.0, %v2773
        %v2775 = vpop.f32.mrf.mxu0
        %v2776 = vpop.f32.mrf.mxu0
        %v2777 = vadd.f32 0.0, %v2776
        %v2778 = vpop.f32.mrf.mxu0
        %2779 = vmatprep.mubr.bf16.mxu0 %v1409
        %2780 = vmatmul.mubr.bf16.gmra.mxu0 %v1408
        %v2781 = vpop.f32.mrf.mxu0
        %v2782 = vadd.f32 0.0, %v2781
        %v2783 = vpop.f32.mrf.mxu0
        %v2784 = vpop.f32.mrf.mxu0
        %v2785 = vadd.f32 0.0, %v2784
        %v2786 = vpop.f32.mrf.mxu0
        %2787 = vmatprep.mubr.bf16.mxu0 %v1361
        %2788 = vmatmul.mubr.bf16.gmra.mxu0 %v1411
        %v2789 = vpop.f32.mrf.mxu0
        %v2790 = vadd.f32 0.0, %v2789
        %v2791 = vpop.f32.mrf.mxu0
        %v2792 = vpop.f32.mrf.mxu0
        %v2793 = vadd.f32 0.0, %v2792
        %v2794 = vpop.f32.mrf.mxu0
        %2795 = vdwg.mxu0
        %2796 = vmatprep.subr.bf16.mxu0 0
        %2797 = vmatpush1.bf16.msra.mxu0 %v2610
        %2798 = vmatprep.subr.bf16.mxu0 0
        %2799 = vmatpush1.bf16.msra.mxu0 %v2609
        %2800 = vmatprep.subr.bf16.mxu0 0
        %2801 = vmatpush1.bf16.msra.mxu0 %v2608
        %2802 = vmatprep.subr.bf16.mxu0 0
        %2803 = vmatpush1.bf16.msra.mxu0 %v2607
        %2804 = vmatprep.subr.bf16.mxu0 0
        %2805 = vmatpush1.bf16.msra.mxu0 %v2606
        %2806 = vmatprep.subr.bf16.mxu0 0
        %2807 = vmatpush1.bf16.msra.mxu0 %v2605
        %2808 = vmatprep.subr.bf16.mxu0 0
        %2809 = vmatpush1.bf16.msra.mxu0 %v2604
        %2810 = vmatprep.subr.bf16.mxu0 0
        %2811 = vmatpush1.bf16.msra.mxu0 %v2603
        %2812 = vmatprep.subr.bf16.mxu0 0
        %2813 = vmatpush2.bf16.msra.mxu0 0
        %2814 = vmatprep.subr.bf16.mxu0 0
        %2815 = vmatpush2.bf16.msra.mxu0 0
        %2816 = vmatprep.subr.bf16.mxu0 0
        %2817 = vmatpush2.bf16.msra.mxu0 0
        %2818 = vmatprep.subr.bf16.mxu0 0
        %2819 = vmatpush2.bf16.msra.mxu0 0
        %2820 = vmatprep.subr.bf16.mxu0 0
        %2821 = vmatpush2.bf16.msra.mxu0 0
        %2822 = vmatprep.subr.bf16.mxu0 0
        %2823 = vmatpush2.bf16.msra.mxu0 0
        %2824 = vmatprep.subr.bf16.mxu0 0
        %2825 = vmatpush2.bf16.msra.mxu0 0
        %2826 = vmatprep.subr.bf16.mxu0 0
        %2827 = vmatpush2.bf16.msra.mxu0 0
        %2828 = vmatprep.mubr.bf16.mxu0 0
        %2829 = vmatmul.mubr.bf16.gmra.mxu0 %v1368
        %v2830 = vpop.f32.mrf.mxu0
        %v2831 = vadd.f32 %v2670, %v2830
        %v2832 = vpop.f32.mrf.mxu0
        %v2833 = vpop.f32.mrf.mxu0
        %v2834 = vadd.f32 %v2673, %v2833
        %v2835 = vpop.f32.mrf.mxu0
        %2836 = vmatprep.mubr.bf16.mxu0 0
        %2837 = vmatmul.mubr.bf16.gmra.mxu0 %v1371
        %v2838 = vpop.f32.mrf.mxu0
        %v2839 = vadd.f32 %v2678, %v2838
        %v2840 = vpop.f32.mrf.mxu0
        %v2841 = vpop.f32.mrf.mxu0
        %v2842 = vadd.f32 %v2681, %v2841
        %v2843 = vpop.f32.mrf.mxu0
        %2844 = vmatprep.mubr.bf16.mxu0 0
        %2845 = vmatmul.mubr.bf16.gmra.mxu0 %v1374
        %v2846 = vpop.f32.mrf.mxu0
        %v2847 = vadd.f32 %v2686, %v2846
        %v2848 = vpop.f32.mrf.mxu0
        %v2849 = vpop.f32.mrf.mxu0
        %v2850 = vadd.f32 %v2689, %v2849
        %v2851 = vpop.f32.mrf.mxu0
        %2852 = vmatprep.mubr.bf16.mxu0 0
        %2853 = vmatmul.mubr.bf16.gmra.mxu0 %v1377
        %v2854 = vpop.f32.mrf.mxu0
        %v2855 = vadd.f32 %v2694, %v2854
        %v2856 = vpop.f32.mrf.mxu0
        %v2857 = vpop.f32.mrf.mxu0
        %v2858 = vadd.f32 %v2697, %v2857
        %v2859 = vpop.f32.mrf.mxu0
        %2860 = vmatprep.mubr.bf16.mxu0 0
        %2861 = vmatmul.mubr.bf16.gmra.mxu0 %v1380
        %v2862 = vpop.f32.mrf.mxu0
        %v2863 = vadd.f32 %v2702, %v2862
        %v2864 = vpop.f32.mrf.mxu0
        %v2865 = vpop.f32.mrf.mxu0
        %v2866 = vadd.f32 %v2705, %v2865
        %v2867 = vpop.f32.mrf.mxu0
        %2868 = vmatprep.mubr.bf16.mxu0 0
        %2869 = vmatmul.mubr.bf16.gmra.mxu0 %v1383
        %v2870 = vpop.f32.mrf.mxu0
        %v2871 = vadd.f32 %v2710, %v2870
        %v2872 = vpop.f32.mrf.mxu0
        %v2873 = vpop.f32.mrf.mxu0
        %v2874 = vadd.f32 %v2713, %v2873
        %v2875 = vpop.f32.mrf.mxu0
        %2876 = vmatprep.mubr.bf16.mxu0 0
        %2877 = vmatmul.mubr.bf16.gmra.mxu0 %v1386
        %v2878 = vpop.f32.mrf.mxu0
        %v2879 = vadd.f32 %v2718, %v2878
        %v2880 = vpop.f32.mrf.mxu0
        %v2881 = vpop.f32.mrf.mxu0
        %v2882 = vadd.f32 %v2721, %v2881
        %v2883 = vpop.f32.mrf.mxu0
        %2884 = vmatprep.mubr.bf16.mxu0 0
        %2885 = vmatmul.mubr.bf16.gmra.mxu0 %v1389
        %v2886 = vpop.f32.mrf.mxu0
        %v2887 = vadd.f32 %v2726, %v2886
        %v2888 = vpop.f32.mrf.mxu0
        %v2889 = vpop.f32.mrf.mxu0
        %v2890 = vadd.f32 %v2729, %v2889
        %v2891 = vpop.f32.mrf.mxu0
        %2892 = vmatprep.mubr.bf16.mxu0 0
        %2893 = vmatmul.mubr.bf16.gmra.mxu0 %v1392
        %v2894 = vpop.f32.mrf.mxu0
        %v2895 = vadd.f32 %v2734, %v2894
        %v2896 = vpop.f32.mrf.mxu0
        %v2897 = vpop.f32.mrf.mxu0
        %v2898 = vadd.f32 %v2737, %v2897
        %v2899 = vpop.f32.mrf.mxu0
        %2900 = vmatprep.mubr.bf16.mxu0 0
        %2901 = vmatmul.mubr.bf16.gmra.mxu0 %v1395
        %v2902 = vpop.f32.mrf.mxu0
        %v2903 = vadd.f32 %v2742, %v2902
        %v2904 = vpop.f32.mrf.mxu0
        %v2905 = vpop.f32.mrf.mxu0
        %v2906 = vadd.f32 %v2745, %v2905
        %v2907 = vpop.f32.mrf.mxu0
        %2908 = vmatprep.mubr.bf16.mxu0 0
        %2909 = vmatmul.mubr.bf16.gmra.mxu0 %v1398
        %v2910 = vpop.f32.mrf.mxu0
        %v2911 = vadd.f32 %v2750, %v2910
        %v2912 = vpop.f32.mrf.mxu0
        %v2913 = vpop.f32.mrf.mxu0
        %v2914 = vadd.f32 %v2753, %v2913
        %v2915 = vpop.f32.mrf.mxu0
        %2916 = vmatprep.mubr.bf16.mxu0 0
        %2917 = vmatmul.mubr.bf16.gmra.mxu0 %v1401
        %v2918 = vpop.f32.mrf.mxu0
        %v2919 = vadd.f32 %v2758, %v2918
        %v2920 = vpop.f32.mrf.mxu0
        %v2921 = vpop.f32.mrf.mxu0
        %v2922 = vadd.f32 %v2761, %v2921
        %v2923 = vpop.f32.mrf.mxu0
        %2924 = vmatprep.mubr.bf16.mxu0 0
        %2925 = vmatmul.mubr.bf16.gmra.mxu0 %v1404
        %v2926 = vpop.f32.mrf.mxu0
        %v2927 = vadd.f32 %v2766, %v2926
        %v2928 = vpop.f32.mrf.mxu0
        %v2929 = vpop.f32.mrf.mxu0
        %v2930 = vadd.f32 %v2769, %v2929
        %v2931 = vpop.f32.mrf.mxu0
        %2932 = vmatprep.mubr.bf16.mxu0 0
        %2933 = vmatmul.mubr.bf16.gmra.mxu0 %v1407
        %v2934 = vpop.f32.mrf.mxu0
        %v2935 = vadd.f32 %v2774, %v2934
        %v2936 = vpop.f32.mrf.mxu0
        %v2937 = vpop.f32.mrf.mxu0
        %v2938 = vadd.f32 %v2777, %v2937
        %v2939 = vpop.f32.mrf.mxu0
        %2940 = vmatprep.mubr.bf16.mxu0 0
        %2941 = vmatmul.mubr.bf16.gmra.mxu0 %v1410
        %v2942 = vpop.f32.mrf.mxu0
        %v2943 = vadd.f32 %v2782, %v2942
        %v2944 = vpop.f32.mrf.mxu0
        %v2945 = vpop.f32.mrf.mxu0
        %v2946 = vadd.f32 %v2785, %v2945
        %v2947 = vpop.f32.mrf.mxu0
        %2948 = vmatprep.mubr.bf16.mxu0 0
        %2949 = vmatmul.mubr.bf16.gmra.mxu0 %v1412
        %v2950 = vpop.f32.mrf.mxu0
        %v2951 = vadd.f32 %v2790, %v2950
        %v2952 = vpop.f32.mrf.mxu0
        %v2953 = vpop.f32.mrf.mxu0
        %v2954 = vadd.f32 %v2793, %v2953
        %v2955 = vpop.f32.mrf.mxu0
        %2956 = vdwg.mxu0
        %v2957 = vadd.f32 %v2316, %v2831
        %v2958 = vadd.f32 %v2319, %v2834
        %v2959 = vadd.f32 %v2324, %v2839
        %v2960 = vadd.f32 %v2327, %v2842
        %v2961 = vadd.f32 %v2332, %v2847
        %v2962 = vadd.f32 %v2335, %v2850
        %v2963 = vadd.f32 %v2340, %v2855
        %v2964 = vadd.f32 %v2343, %v2858
        %v2965 = vadd.f32 %v2348, %v2863
        %v2966 = vadd.f32 %v2351, %v2866
        %v2967 = vadd.f32 %v2356, %v2871
        %v2968 = vadd.f32 %v2359, %v2874
        %v2969 = vadd.f32 %v2364, %v2879
        %v2970 = vadd.f32 %v2367, %v2882
        %v2971 = vadd.f32 %v2372, %v2887
        %v2972 = vadd.f32 %v2375, %v2890
        %v2973 = vadd.f32 %v2380, %v2895
        %v2974 = vadd.f32 %v2383, %v2898
        %v2975 = vadd.f32 %v2388, %v2903
        %v2976 = vadd.f32 %v2391, %v2906
        %v2977 = vadd.f32 %v2396, %v2911
        %v2978 = vadd.f32 %v2399, %v2914
        %v2979 = vadd.f32 %v2404, %v2919
        %v2980 = vadd.f32 %v2407, %v2922
        %v2981 = vadd.f32 %v2412, %v2927
        %v2982 = vadd.f32 %v2415, %v2930
        %v2983 = vadd.f32 %v2420, %v2935
        %v2984 = vadd.f32 %v2423, %v2938
        %v2985 = vadd.f32 %v2428, %v2943
        %v2986 = vadd.f32 %v2431, %v2946
        %v2987 = vadd.f32 %v2436, %v2951
        %v2988 = vadd.f32 %v2439, %v2954
        %v2989 = vld [vmem:[%s4] sm:$0x1]
        %v2991 = vlaneseq
        %v2992 = vshrl.u32 %v2991, 7
        %v2993 = vsub.s32 0, %v2992
        %v2994 = vrot.slane %v2989, %v2993
        %v2996 = vadd.f32 %v2957, %v2994
        %v2997 = vadd.f32 %v2958, %v2994
        %v2998 = vadd.f32 %v2959, %v2994
        %v2999 = vadd.f32 %v2960, %v2994
        %v3000 = vadd.f32 %v2961, %v2994
        %v3001 = vadd.f32 %v2962, %v2994
        %v3002 = vadd.f32 %v2963, %v2994
        %v3003 = vadd.f32 %v2964, %v2994
        %v3004 = vadd.f32 %v2965, %v2994
        %v3005 = vadd.f32 %v2966, %v2994
        %v3006 = vadd.f32 %v2967, %v2994
        %v3007 = vadd.f32 %v2968, %v2994
        %v3008 = vadd.f32 %v2969, %v2994
        %v3009 = vadd.f32 %v2970, %v2994
        %v3010 = vadd.f32 %v2971, %v2994
        %v3011 = vadd.f32 %v2972, %v2994
        %v3012 = vadd.f32 %v2973, %v2994
        %v3013 = vadd.f32 %v2974, %v2994
        %v3014 = vadd.f32 %v2975, %v2994
        %v3015 = vadd.f32 %v2976, %v2994
        %v3016 = vadd.f32 %v2977, %v2994
        %v3017 = vadd.f32 %v2978, %v2994
        %v3018 = vadd.f32 %v2979, %v2994
        %v3019 = vadd.f32 %v2980, %v2994
        %v3020 = vadd.f32 %v2981, %v2994
        %v3021 = vadd.f32 %v2982, %v2994
        %v3022 = vadd.f32 %v2983, %v2994
        %v3023 = vadd.f32 %v2984, %v2994
        %v3024 = vadd.f32 %v2985, %v2994
        %v3025 = vadd.f32 %v2986, %v2994
        %v3026 = vadd.f32 %v2987, %v2994
        %v3027 = vadd.f32 %v2988, %v2994
        %v3028 = vmax.f32 %v2996, 0.0
        %v3029 = vmax.f32 %v2997, 0.0
        %v3030 = vmax.f32 %v2998, 0.0
        %v3031 = vmax.f32 %v2999, 0.0
        %v3032 = vmax.f32 %v3000, 0.0
        %v3033 = vmax.f32 %v3001, 0.0
        %v3034 = vmax.f32 %v3002, 0.0
        %v3035 = vmax.f32 %v3003, 0.0
        %v3036 = vmax.f32 %v3004, 0.0
        %v3037 = vmax.f32 %v3005, 0.0
        %v3038 = vmax.f32 %v3006, 0.0
        %v3039 = vmax.f32 %v3007, 0.0
        %v3040 = vmax.f32 %v3008, 0.0
        %v3041 = vmax.f32 %v3009, 0.0
        %v3042 = vmax.f32 %v3010, 0.0
        %v3043 = vmax.f32 %v3011, 0.0
        %v3044 = vmax.f32 %v3012, 0.0
        %v3045 = vmax.f32 %v3013, 0.0
        %v3046 = vmax.f32 %v3014, 0.0
        %v3047 = vmax.f32 %v3015, 0.0
        %v3048 = vmax.f32 %v3016, 0.0
        %v3049 = vmax.f32 %v3017, 0.0
        %v3050 = vmax.f32 %v3018, 0.0
        %v3051 = vmax.f32 %v3019, 0.0
        %v3052 = vmax.f32 %v3020, 0.0
        %v3053 = vmax.f32 %v3021, 0.0
        %v3054 = vmax.f32 %v3022, 0.0
        %v3055 = vmax.f32 %v3023, 0.0
        %v3056 = vmax.f32 %v3024, 0.0
        %v3057 = vmax.f32 %v3025, 0.0
        %v3058 = vmax.f32 %v3026, 0.0
        %v3059 = vmax.f32 %v3027, 0.0
        %v3060 = vpack.c.bf16 %v3029, %v3028
        %v3061 = vpack.c.bf16 %v3031, %v3030
        %v3062 = vpack.c.bf16 %v3033, %v3032
        %v3063 = vpack.c.bf16 %v3035, %v3034
        %v3064 = vpack.c.bf16 %v3037, %v3036
        %v3065 = vpack.c.bf16 %v3039, %v3038
        %v3066 = vpack.c.bf16 %v3041, %v3040
        %v3067 = vpack.c.bf16 %v3043, %v3042
        %v3068 = vpack.c.bf16 %v3045, %v3044
        %v3069 = vpack.c.bf16 %v3047, %v3046
        %v3070 = vpack.c.bf16 %v3049, %v3048
        %v3071 = vpack.c.bf16 %v3051, %v3050
        %v3072 = vpack.c.bf16 %v3053, %v3052
        %v3073 = vpack.c.bf16 %v3055, %v3054
        %v3074 = vpack.c.bf16 %v3057, %v3056
        %v3075 = vpack.c.bf16 %v3059, %v3058
        %v3076 = vld [vmem:[#allocation8] sm:$0xff]
        %v3077 = vld [vmem:[#allocation8 + $0x8] sm:$0xff]
        %v3078 = vld [vmem:[#allocation8 + $0x10] sm:$0xff]
        %v3079 = vld [vmem:[#allocation8 + $0x18] sm:$0xff]
        %v3080 = vld [vmem:[#allocation8 + $0x20] sm:$0xff]
        %v3081 = vld [vmem:[#allocation8 + $0x28] sm:$0xff]
        %v3082 = vld [vmem:[#allocation8 + $0x30] sm:$0xff]
        %v3083 = vld [vmem:[#allocation8 + $0x38] sm:$0xff]
        %v3084 = vld [vmem:[#allocation8 + $0x40] sm:$0xff]
        %v3085 = vld [vmem:[#allocation8 + $0x48] sm:$0xff]
        %v3086 = vld [vmem:[#allocation8 + $0x50] sm:$0xff]
        %v3087 = vld [vmem:[#allocation8 + $0x58] sm:$0xff]
        %v3088 = vld [vmem:[#allocation8 + $0x60] sm:$0xff]
        %v3089 = vld [vmem:[#allocation8 + $0x68] sm:$0xff]
        %v3090 = vld [vmem:[#allocation8 + $0x70] sm:$0xff]
        %v3091 = vld [vmem:[#allocation8 + $0x78] sm:$0xff]
        %v3092 = vld [vmem:[#allocation8 + $0x80] sm:$0xff]
        %v3093 = vld [vmem:[#allocation8 + $0x88] sm:$0xff]
        %v3094 = vld [vmem:[#allocation8 + $0x90] sm:$0xff]
        %v3095 = vld [vmem:[#allocation8 + $0x98] sm:$0xff]
        %v3096 = vld [vmem:[#allocation8 + $0xa0] sm:$0xff]
        %v3097 = vld [vmem:[#allocation8 + $0xa8] sm:$0xff]
        %v3098 = vld [vmem:[#allocation8 + $0xb0] sm:$0xff]
        %v3099 = vld [vmem:[#allocation8 + $0xb8] sm:$0xff]
        %v3100 = vld [vmem:[#allocation8 + $0xc0] sm:$0xff]
        %v3101 = vld [vmem:[#allocation8 + $0xc8] sm:$0xff]
        %v3102 = vld [vmem:[#allocation8 + $0xd0] sm:$0xff]
        %v3103 = vld [vmem:[#allocation8 + $0xd8] sm:$0xff]
        %v3104 = vld [vmem:[#allocation8 + $0xe0] sm:$0xff]
        %v3105 = vld [vmem:[#allocation8 + $0xe8] sm:$0xff]
        %v3106 = vld [vmem:[#allocation8 + $0xf0] sm:$0xff]
        %v3107 = vld [vmem:[#allocation8 + $0xf8] sm:$0xff]
        %v3108 = vld [vmem:[%s6] sm:$0xf]
        %v3110 = vlaneseq
        %v3111 = vshrl.u32 %v3110, 7
        %v3112 = vsub.s32 0, %v3111
        %v3113 = vrot.slane %v3108, %v3112
        %v3114 = vlaneseq
        %v3115 = vshrl.u32 %v3114, 7
        %v3116 = vsub.s32 1, %v3115
        %v3117 = vrot.slane %v3108, %v3116
        %v3118 = vlaneseq
        %v3119 = vshrl.u32 %v3118, 7
        %v3120 = vsub.s32 2, %v3119
        %v3121 = vrot.slane %v3108, %v3120
        %v3122 = vlaneseq
        %v3123 = vshrl.u32 %v3122, 7
        %v3124 = vsub.s32 3, %v3123
        %v3125 = vrot.slane %v3108, %v3124
        %v3162 = vunpack.c.l.b16 %v3076
        %v3163 = vunpack.c.h.b16 %v3076
        %v3164 = vunpack.c.l.b16 %v3077
        %v3165 = vunpack.c.h.b16 %v3077
        %v3166 = vunpack.c.l.b16 %v3078
        %v3167 = vunpack.c.h.b16 %v3078
        %v3168 = vunpack.c.l.b16 %v3079
        %v3169 = vunpack.c.h.b16 %v3079
        %v3170 = vunpack.c.l.b16 %v3080
        %v3171 = vunpack.c.h.b16 %v3080
        %v3172 = vunpack.c.l.b16 %v3081
        %v3173 = vunpack.c.h.b16 %v3081
        %v3174 = vunpack.c.l.b16 %v3082
        %v3175 = vunpack.c.h.b16 %v3082
        %v3176 = vunpack.c.l.b16 %v3083
        %v3177 = vunpack.c.h.b16 %v3083
        %v3178 = vunpack.c.l.b16 %v3084
        %v3179 = vunpack.c.h.b16 %v3084
        %v3180 = vunpack.c.l.b16 %v3085
        %v3181 = vunpack.c.h.b16 %v3085
        %v3182 = vunpack.c.l.b16 %v3086
        %v3183 = vunpack.c.h.b16 %v3086
        %v3184 = vunpack.c.l.b16 %v3087
        %v3185 = vunpack.c.h.b16 %v3087
        %v3186 = vunpack.c.l.b16 %v3088
        %v3187 = vunpack.c.h.b16 %v3088
        %v3188 = vunpack.c.l.b16 %v3089
        %v3189 = vunpack.c.h.b16 %v3089
        %v3190 = vunpack.c.l.b16 %v3090
        %v3191 = vunpack.c.h.b16 %v3090
        %v3192 = vunpack.c.l.b16 %v3091
        %v3193 = vunpack.c.h.b16 %v3091
        %v3194 = vunpack.c.l.b16 %v3092
        %v3195 = vunpack.c.h.b16 %v3092
        %v3196 = vunpack.c.l.b16 %v3093
        %v3197 = vunpack.c.h.b16 %v3093
        %v3198 = vunpack.c.l.b16 %v3094
        %v3199 = vunpack.c.h.b16 %v3094
        %v3200 = vunpack.c.l.b16 %v3095
        %v3201 = vunpack.c.h.b16 %v3095
        %v3202 = vunpack.c.l.b16 %v3096
        %v3203 = vunpack.c.h.b16 %v3096
        %v3204 = vunpack.c.l.b16 %v3097
        %v3205 = vunpack.c.h.b16 %v3097
        %v3206 = vunpack.c.l.b16 %v3098
        %v3207 = vunpack.c.h.b16 %v3098
        %v3208 = vunpack.c.l.b16 %v3099
        %v3209 = vunpack.c.h.b16 %v3099
        %v3210 = vunpack.c.l.b16 %v3100
        %v3211 = vunpack.c.h.b16 %v3100
        %v3212 = vunpack.c.l.b16 %v3101
        %v3213 = vunpack.c.h.b16 %v3101
        %v3214 = vunpack.c.l.b16 %v3102
        %v3215 = vunpack.c.h.b16 %v3102
        %v3216 = vunpack.c.l.b16 %v3103
        %v3217 = vunpack.c.h.b16 %v3103
        %v3218 = vunpack.c.l.b16 %v3104
        %v3219 = vunpack.c.h.b16 %v3104
        %v3220 = vunpack.c.l.b16 %v3105
        %v3221 = vunpack.c.h.b16 %v3105
        %v3222 = vunpack.c.l.b16 %v3106
        %v3223 = vunpack.c.h.b16 %v3106
        %v3224 = vunpack.c.l.b16 %v3107
        %v3225 = vunpack.c.h.b16 %v3107
        %v3226 = vpack.c.b16 %v3166, %v3162
        %v3227 = vpack.c.b16 %v3167, %v3163
        %v3228 = vpack.c.b16 %v3168, %v3164
        %v3229 = vpack.c.b16 %v3169, %v3165
        %v3230 = vpack.c.b16 %v3174, %v3170
        %v3231 = vpack.c.b16 %v3175, %v3171
        %v3232 = vpack.c.b16 %v3176, %v3172
        %v3233 = vpack.c.b16 %v3177, %v3173
        %v3234 = vpack.c.b16 %v3182, %v3178
        %v3235 = vpack.c.b16 %v3183, %v3179
        %v3236 = vpack.c.b16 %v3184, %v3180
        %v3237 = vpack.c.b16 %v3185, %v3181
        %v3238 = vpack.c.b16 %v3190, %v3186
        %v3239 = vpack.c.b16 %v3191, %v3187
        %v3240 = vpack.c.b16 %v3192, %v3188
        %v3241 = vpack.c.b16 %v3193, %v3189
        %v3242 = vpack.c.b16 %v3198, %v3194
        %v3243 = vpack.c.b16 %v3199, %v3195
        %v3244 = vpack.c.b16 %v3200, %v3196
        %v3245 = vpack.c.b16 %v3201, %v3197
        %v3246 = vpack.c.b16 %v3206, %v3202
        %v3247 = vpack.c.b16 %v3207, %v3203
        %v3248 = vpack.c.b16 %v3208, %v3204
        %v3249 = vpack.c.b16 %v3209, %v3205
        %v3250 = vpack.c.b16 %v3214, %v3210
        %v3251 = vpack.c.b16 %v3215, %v3211
        %v3252 = vpack.c.b16 %v3216, %v3212
        %v3253 = vpack.c.b16 %v3217, %v3213
        %v3254 = vpack.c.b16 %v3222, %v3218
        %v3255 = vpack.c.b16 %v3223, %v3219
        %v3256 = vpack.c.b16 %v3224, %v3220
        %v3257 = vpack.c.b16 %v3225, %v3221
        %3290 = vmatprep.subr.bf16.mxu0 %v3255
        %3291 = vmatpush1.bf16.msra.mxu0 %v3254
        %3292 = vmatprep.subr.bf16.mxu0 %v3251
        %3293 = vmatpush1.bf16.msra.mxu0 %v3250
        %3294 = vmatprep.subr.bf16.mxu0 %v3247
        %3295 = vmatpush1.bf16.msra.mxu0 %v3246
        %3296 = vmatprep.subr.bf16.mxu0 %v3243
        %3297 = vmatpush1.bf16.msra.mxu0 %v3242
        %3298 = vmatprep.subr.bf16.mxu0 %v3239
        %3299 = vmatpush1.bf16.msra.mxu0 %v3238
        %3300 = vmatprep.subr.bf16.mxu0 %v3235
        %3301 = vmatpush1.bf16.msra.mxu0 %v3234
        %3302 = vmatprep.subr.bf16.mxu0 %v3231
        %3303 = vmatpush1.bf16.msra.mxu0 %v3230
        %3304 = vmatprep.subr.bf16.mxu0 %v3227
        %3305 = vmatpush1.bf16.msra.mxu0 %v3226
        %3306 = vmatprep.subr.bf16.mxu0 0
        %3307 = vmatpush2.bf16.msra.mxu0 0
        %3308 = vmatprep.subr.bf16.mxu0 0
        %3309 = vmatpush2.bf16.msra.mxu0 0
        %3310 = vmatprep.subr.bf16.mxu0 0
        %3311 = vmatpush2.bf16.msra.mxu0 0
        %3312 = vmatprep.subr.bf16.mxu0 0
        %3313 = vmatpush2.bf16.msra.mxu0 0
        %3314 = vmatprep.subr.bf16.mxu0 0
        %3315 = vmatpush2.bf16.msra.mxu0 0
        %3316 = vmatprep.subr.bf16.mxu0 0
        %3317 = vmatpush2.bf16.msra.mxu0 0
        %3318 = vmatprep.subr.bf16.mxu0 0
        %3319 = vmatpush2.bf16.msra.mxu0 0
        %3320 = vmatprep.subr.bf16.mxu0 0
        %3321 = vmatpush2.bf16.msra.mxu0 0
        %3322 = vmatprep.mubr.bf16.mxu0 0
        %3323 = vmatmul.mubr.bf16.gmra.mxu0 %v3060
        %v3324 = vpop.f32.mrf.mxu0
        %v3325 = vadd.f32 %v3113, %v3324
        %v3326 = vpop.f32.mrf.mxu0
        %v3327 = vadd.f32 %v3117, %v3326
        %v3328 = vpop.f32.mrf.mxu0
        %v3329 = vadd.f32 %v3113, %v3328
        %v3330 = vpop.f32.mrf.mxu0
        %v3331 = vadd.f32 %v3117, %v3330
        %3332 = vmatprep.mubr.bf16.mxu0 0
        %3333 = vmatmul.mubr.bf16.gmra.mxu0 %v3061
        %v3334 = vpop.f32.mrf.mxu0
        %v3335 = vadd.f32 %v3113, %v3334
        %v3336 = vpop.f32.mrf.mxu0
        %v3337 = vadd.f32 %v3117, %v3336
        %v3338 = vpop.f32.mrf.mxu0
        %v3339 = vadd.f32 %v3113, %v3338
        %v3340 = vpop.f32.mrf.mxu0
        %v3341 = vadd.f32 %v3117, %v3340
        %3342 = vmatprep.mubr.bf16.mxu0 0
        %3343 = vmatmul.mubr.bf16.gmra.mxu0 %v3062
        %v3344 = vpop.f32.mrf.mxu0
        %v3345 = vadd.f32 %v3113, %v3344
        %v3346 = vpop.f32.mrf.mxu0
        %v3347 = vadd.f32 %v3117, %v3346
        %v3348 = vpop.f32.mrf.mxu0
        %v3349 = vadd.f32 %v3113, %v3348
        %v3350 = vpop.f32.mrf.mxu0
        %v3351 = vadd.f32 %v3117, %v3350
        %3352 = vmatprep.mubr.bf16.mxu0 0
        %3353 = vmatmul.mubr.bf16.gmra.mxu0 %v3063
        %v3354 = vpop.f32.mrf.mxu0
        %v3355 = vadd.f32 %v3113, %v3354
        %v3356 = vpop.f32.mrf.mxu0
        %v3357 = vadd.f32 %v3117, %v3356
        %v3358 = vpop.f32.mrf.mxu0
        %v3359 = vadd.f32 %v3113, %v3358
        %v3360 = vpop.f32.mrf.mxu0
        %v3361 = vadd.f32 %v3117, %v3360
        %3362 = vmatprep.mubr.bf16.mxu0 0
        %3363 = vmatmul.mubr.bf16.gmra.mxu0 %v3064
        %v3364 = vpop.f32.mrf.mxu0
        %v3365 = vadd.f32 %v3113, %v3364
        %v3366 = vpop.f32.mrf.mxu0
        %v3367 = vadd.f32 %v3117, %v3366
        %v3368 = vpop.f32.mrf.mxu0
        %v3369 = vadd.f32 %v3113, %v3368
        %v3370 = vpop.f32.mrf.mxu0
        %v3371 = vadd.f32 %v3117, %v3370
        %3372 = vmatprep.mubr.bf16.mxu0 0
        %3373 = vmatmul.mubr.bf16.gmra.mxu0 %v3065
        %v3374 = vpop.f32.mrf.mxu0
        %v3375 = vadd.f32 %v3113, %v3374
        %v3376 = vpop.f32.mrf.mxu0
        %v3377 = vadd.f32 %v3117, %v3376
        %v3378 = vpop.f32.mrf.mxu0
        %v3379 = vadd.f32 %v3113, %v3378
        %v3380 = vpop.f32.mrf.mxu0
        %v3381 = vadd.f32 %v3117, %v3380
        %3382 = vmatprep.mubr.bf16.mxu0 0
        %3383 = vmatmul.mubr.bf16.gmra.mxu0 %v3066
        %v3384 = vpop.f32.mrf.mxu0
        %v3385 = vadd.f32 %v3113, %v3384
        %v3386 = vpop.f32.mrf.mxu0
        %v3387 = vadd.f32 %v3117, %v3386
        %v3388 = vpop.f32.mrf.mxu0
        %v3389 = vadd.f32 %v3113, %v3388
        %v3390 = vpop.f32.mrf.mxu0
        %v3391 = vadd.f32 %v3117, %v3390
        %3392 = vmatprep.mubr.bf16.mxu0 0
        %3393 = vmatmul.mubr.bf16.gmra.mxu0 %v3067
        %v3394 = vpop.f32.mrf.mxu0
        %v3395 = vadd.f32 %v3113, %v3394
        %v3396 = vpop.f32.mrf.mxu0
        %v3397 = vadd.f32 %v3117, %v3396
        %v3398 = vpop.f32.mrf.mxu0
        %v3399 = vadd.f32 %v3113, %v3398
        %v3400 = vpop.f32.mrf.mxu0
        %v3401 = vadd.f32 %v3117, %v3400
        %3402 = vmatprep.mubr.bf16.mxu0 0
        %3403 = vmatmul.mubr.bf16.gmra.mxu0 %v3068
        %v3404 = vpop.f32.mrf.mxu0
        %v3405 = vadd.f32 %v3113, %v3404
        %v3406 = vpop.f32.mrf.mxu0
        %v3407 = vadd.f32 %v3117, %v3406
        %v3408 = vpop.f32.mrf.mxu0
        %v3409 = vadd.f32 %v3113, %v3408
        %v3410 = vpop.f32.mrf.mxu0
        %v3411 = vadd.f32 %v3117, %v3410
        %3412 = vmatprep.mubr.bf16.mxu0 0
        %3413 = vmatmul.mubr.bf16.gmra.mxu0 %v3069
        %v3414 = vpop.f32.mrf.mxu0
        %v3415 = vadd.f32 %v3113, %v3414
        %v3416 = vpop.f32.mrf.mxu0
        %v3417 = vadd.f32 %v3117, %v3416
        %v3418 = vpop.f32.mrf.mxu0
        %v3419 = vadd.f32 %v3113, %v3418
        %v3420 = vpop.f32.mrf.mxu0
        %v3421 = vadd.f32 %v3117, %v3420
        %3422 = vmatprep.mubr.bf16.mxu0 0
        %3423 = vmatmul.mubr.bf16.gmra.mxu0 %v3070
        %v3424 = vpop.f32.mrf.mxu0
        %v3425 = vadd.f32 %v3113, %v3424
        %v3426 = vpop.f32.mrf.mxu0
        %v3427 = vadd.f32 %v3117, %v3426
        %v3428 = vpop.f32.mrf.mxu0
        %v3429 = vadd.f32 %v3113, %v3428
        %v3430 = vpop.f32.mrf.mxu0
        %v3431 = vadd.f32 %v3117, %v3430
        %3432 = vmatprep.mubr.bf16.mxu0 0
        %3433 = vmatmul.mubr.bf16.gmra.mxu0 %v3071
        %v3434 = vpop.f32.mrf.mxu0
        %v3435 = vadd.f32 %v3113, %v3434
        %v3436 = vpop.f32.mrf.mxu0
        %v3437 = vadd.f32 %v3117, %v3436
        %v3438 = vpop.f32.mrf.mxu0
        %v3439 = vadd.f32 %v3113, %v3438
        %v3440 = vpop.f32.mrf.mxu0
        %v3441 = vadd.f32 %v3117, %v3440
        %3442 = vmatprep.mubr.bf16.mxu0 0
        %3443 = vmatmul.mubr.bf16.gmra.mxu0 %v3072
        %v3444 = vpop.f32.mrf.mxu0
        %v3445 = vadd.f32 %v3113, %v3444
        %v3446 = vpop.f32.mrf.mxu0
        %v3447 = vadd.f32 %v3117, %v3446
        %v3448 = vpop.f32.mrf.mxu0
        %v3449 = vadd.f32 %v3113, %v3448
        %v3450 = vpop.f32.mrf.mxu0
        %v3451 = vadd.f32 %v3117, %v3450
        %3452 = vmatprep.mubr.bf16.mxu0 0
        %3453 = vmatmul.mubr.bf16.gmra.mxu0 %v3073
        %v3454 = vpop.f32.mrf.mxu0
        %v3455 = vadd.f32 %v3113, %v3454
        %v3456 = vpop.f32.mrf.mxu0
        %v3457 = vadd.f32 %v3117, %v3456
        %v3458 = vpop.f32.mrf.mxu0
        %v3459 = vadd.f32 %v3113, %v3458
        %v3460 = vpop.f32.mrf.mxu0
        %v3461 = vadd.f32 %v3117, %v3460
        %3462 = vmatprep.mubr.bf16.mxu0 0
        %3463 = vmatmul.mubr.bf16.gmra.mxu0 %v3074
        %v3464 = vpop.f32.mrf.mxu0
        %v3465 = vadd.f32 %v3113, %v3464
        %v3466 = vpop.f32.mrf.mxu0
        %v3467 = vadd.f32 %v3117, %v3466
        %v3468 = vpop.f32.mrf.mxu0
        %v3469 = vadd.f32 %v3113, %v3468
        %v3470 = vpop.f32.mrf.mxu0
        %v3471 = vadd.f32 %v3117, %v3470
        %3472 = vmatprep.mubr.bf16.mxu0 0
        %3473 = vmatmul.mubr.bf16.gmra.mxu0 %v3075
        %v3474 = vpop.f32.mrf.mxu0
        %v3475 = vadd.f32 %v3113, %v3474
        %v3476 = vpop.f32.mrf.mxu0
        %v3477 = vadd.f32 %v3117, %v3476
        %v3478 = vpop.f32.mrf.mxu0
        %v3479 = vadd.f32 %v3113, %v3478
        %v3480 = vpop.f32.mrf.mxu0
        %v3481 = vadd.f32 %v3117, %v3480
        %3482 = vdwg.mxu0
        %3483 = vmatprep.subr.bf16.mxu0 %v3257
        %3484 = vmatpush1.bf16.msra.mxu0 %v3256
        %3485 = vmatprep.subr.bf16.mxu0 %v3253
        %3486 = vmatpush1.bf16.msra.mxu0 %v3252
        %3487 = vmatprep.subr.bf16.mxu0 %v3249
        %3488 = vmatpush1.bf16.msra.mxu0 %v3248
        %3489 = vmatprep.subr.bf16.mxu0 %v3245
        %3490 = vmatpush1.bf16.msra.mxu0 %v3244
        %3491 = vmatprep.subr.bf16.mxu0 %v3241
        %3492 = vmatpush1.bf16.msra.mxu0 %v3240
        %3493 = vmatprep.subr.bf16.mxu0 %v3237
        %3494 = vmatpush1.bf16.msra.mxu0 %v3236
        %3495 = vmatprep.subr.bf16.mxu0 %v3233
        %3496 = vmatpush1.bf16.msra.mxu0 %v3232
        %3497 = vmatprep.subr.bf16.mxu0 %v3229
        %3498 = vmatpush1.bf16.msra.mxu0 %v3228
        %3499 = vmatprep.subr.bf16.mxu0 0
        %3500 = vmatpush2.bf16.msra.mxu0 0
        %3501 = vmatprep.subr.bf16.mxu0 0
        %3502 = vmatpush2.bf16.msra.mxu0 0
        %3503 = vmatprep.subr.bf16.mxu0 0
        %3504 = vmatpush2.bf16.msra.mxu0 0
        %3505 = vmatprep.subr.bf16.mxu0 0
        %3506 = vmatpush2.bf16.msra.mxu0 0
        %3507 = vmatprep.subr.bf16.mxu0 0
        %3508 = vmatpush2.bf16.msra.mxu0 0
        %3509 = vmatprep.subr.bf16.mxu0 0
        %3510 = vmatpush2.bf16.msra.mxu0 0
        %3511 = vmatprep.subr.bf16.mxu0 0
        %3512 = vmatpush2.bf16.msra.mxu0 0
        %3513 = vmatprep.subr.bf16.mxu0 0
        %3514 = vmatpush2.bf16.msra.mxu0 0
        %3515 = vmatprep.mubr.bf16.mxu0 0
        %3516 = vmatmul.mubr.bf16.gmra.mxu0 %v3060
        %v3517 = vpop.f32.mrf.mxu0
        %v3518 = vadd.f32 %v3121, %v3517
        %v3519 = vpop.f32.mrf.mxu0
        %v3520 = vadd.f32 %v3125, %v3519
        %v3521 = vpop.f32.mrf.mxu0
        %v3522 = vadd.f32 %v3121, %v3521
        %v3523 = vpop.f32.mrf.mxu0
        %v3524 = vadd.f32 %v3125, %v3523
        %3525 = vmatprep.mubr.bf16.mxu0 0
        %3526 = vmatmul.mubr.bf16.gmra.mxu0 %v3061
        %v3527 = vpop.f32.mrf.mxu0
        %v3528 = vadd.f32 %v3121, %v3527
        %v3529 = vpop.f32.mrf.mxu0
        %v3530 = vadd.f32 %v3125, %v3529
        %v3531 = vpop.f32.mrf.mxu0
        %v3532 = vadd.f32 %v3121, %v3531
        %v3533 = vpop.f32.mrf.mxu0
        %v3534 = vadd.f32 %v3125, %v3533
        %3535 = vmatprep.mubr.bf16.mxu0 0
        %3536 = vmatmul.mubr.bf16.gmra.mxu0 %v3062
        %v3537 = vpop.f32.mrf.mxu0
        %v3538 = vadd.f32 %v3121, %v3537
        %v3539 = vpop.f32.mrf.mxu0
        %v3540 = vadd.f32 %v3125, %v3539
        %v3541 = vpop.f32.mrf.mxu0
        %v3542 = vadd.f32 %v3121, %v3541
        %v3543 = vpop.f32.mrf.mxu0
        %v3544 = vadd.f32 %v3125, %v3543
        %3545 = vmatprep.mubr.bf16.mxu0 0
        %3546 = vmatmul.mubr.bf16.gmra.mxu0 %v3063
        %v3547 = vpop.f32.mrf.mxu0
        %v3548 = vadd.f32 %v3121, %v3547
        %v3549 = vpop.f32.mrf.mxu0
        %v3550 = vadd.f32 %v3125, %v3549
        %v3551 = vpop.f32.mrf.mxu0
        %v3552 = vadd.f32 %v3121, %v3551
        %v3553 = vpop.f32.mrf.mxu0
        %v3554 = vadd.f32 %v3125, %v3553
        %3555 = vmatprep.mubr.bf16.mxu0 0
        %3556 = vmatmul.mubr.bf16.gmra.mxu0 %v3064
        %v3557 = vpop.f32.mrf.mxu0
        %v3558 = vadd.f32 %v3121, %v3557
        %v3559 = vpop.f32.mrf.mxu0
        %v3560 = vadd.f32 %v3125, %v3559
        %v3561 = vpop.f32.mrf.mxu0
        %v3562 = vadd.f32 %v3121, %v3561
        %v3563 = vpop.f32.mrf.mxu0
        %v3564 = vadd.f32 %v3125, %v3563
        %3565 = vmatprep.mubr.bf16.mxu0 0
        %3566 = vmatmul.mubr.bf16.gmra.mxu0 %v3065
        %v3567 = vpop.f32.mrf.mxu0
        %v3568 = vadd.f32 %v3121, %v3567
        %v3569 = vpop.f32.mrf.mxu0
        %v3570 = vadd.f32 %v3125, %v3569
        %v3571 = vpop.f32.mrf.mxu0
        %v3572 = vadd.f32 %v3121, %v3571
        %v3573 = vpop.f32.mrf.mxu0
        %v3574 = vadd.f32 %v3125, %v3573
        %3575 = vmatprep.mubr.bf16.mxu0 0
        %3576 = vmatmul.mubr.bf16.gmra.mxu0 %v3066
        %v3577 = vpop.f32.mrf.mxu0
        %v3578 = vadd.f32 %v3121, %v3577
        %v3579 = vpop.f32.mrf.mxu0
        %v3580 = vadd.f32 %v3125, %v3579
        %v3581 = vpop.f32.mrf.mxu0
        %v3582 = vadd.f32 %v3121, %v3581
        %v3583 = vpop.f32.mrf.mxu0
        %v3584 = vadd.f32 %v3125, %v3583
        %3585 = vmatprep.mubr.bf16.mxu0 0
        %3586 = vmatmul.mubr.bf16.gmra.mxu0 %v3067
        %v3587 = vpop.f32.mrf.mxu0
        %v3588 = vadd.f32 %v3121, %v3587
        %v3589 = vpop.f32.mrf.mxu0
        %v3590 = vadd.f32 %v3125, %v3589
        %v3591 = vpop.f32.mrf.mxu0
        %v3592 = vadd.f32 %v3121, %v3591
        %v3593 = vpop.f32.mrf.mxu0
        %v3594 = vadd.f32 %v3125, %v3593
        %3595 = vmatprep.mubr.bf16.mxu0 0
        %3596 = vmatmul.mubr.bf16.gmra.mxu0 %v3068
        %v3597 = vpop.f32.mrf.mxu0
        %v3598 = vadd.f32 %v3121, %v3597
        %v3599 = vpop.f32.mrf.mxu0
        %v3600 = vadd.f32 %v3125, %v3599
        %v3601 = vpop.f32.mrf.mxu0
        %v3602 = vadd.f32 %v3121, %v3601
        %v3603 = vpop.f32.mrf.mxu0
        %v3604 = vadd.f32 %v3125, %v3603
        %3605 = vmatprep.mubr.bf16.mxu0 0
        %3606 = vmatmul.mubr.bf16.gmra.mxu0 %v3069
        %v3607 = vpop.f32.mrf.mxu0
        %v3608 = vadd.f32 %v3121, %v3607
        %v3609 = vpop.f32.mrf.mxu0
        %v3610 = vadd.f32 %v3125, %v3609
        %v3611 = vpop.f32.mrf.mxu0
        %v3612 = vadd.f32 %v3121, %v3611
        %v3613 = vpop.f32.mrf.mxu0
        %v3614 = vadd.f32 %v3125, %v3613
        %3615 = vmatprep.mubr.bf16.mxu0 0
        %3616 = vmatmul.mubr.bf16.gmra.mxu0 %v3070
        %v3617 = vpop.f32.mrf.mxu0
        %v3618 = vadd.f32 %v3121, %v3617
        %v3619 = vpop.f32.mrf.mxu0
        %v3620 = vadd.f32 %v3125, %v3619
        %v3621 = vpop.f32.mrf.mxu0
        %v3622 = vadd.f32 %v3121, %v3621
        %v3623 = vpop.f32.mrf.mxu0
        %v3624 = vadd.f32 %v3125, %v3623
        %3625 = vmatprep.mubr.bf16.mxu0 0
        %3626 = vmatmul.mubr.bf16.gmra.mxu0 %v3071
        %v3627 = vpop.f32.mrf.mxu0
        %v3628 = vadd.f32 %v3121, %v3627
        %v3629 = vpop.f32.mrf.mxu0
        %v3630 = vadd.f32 %v3125, %v3629
        %v3631 = vpop.f32.mrf.mxu0
        %v3632 = vadd.f32 %v3121, %v3631
        %v3633 = vpop.f32.mrf.mxu0
        %v3634 = vadd.f32 %v3125, %v3633
        %3635 = vmatprep.mubr.bf16.mxu0 0
        %3636 = vmatmul.mubr.bf16.gmra.mxu0 %v3072
        %v3637 = vpop.f32.mrf.mxu0
        %v3638 = vadd.f32 %v3121, %v3637
        %v3639 = vpop.f32.mrf.mxu0
        %v3640 = vadd.f32 %v3125, %v3639
        %v3641 = vpop.f32.mrf.mxu0
        %v3642 = vadd.f32 %v3121, %v3641
        %v3643 = vpop.f32.mrf.mxu0
        %v3644 = vadd.f32 %v3125, %v3643
        %3645 = vmatprep.mubr.bf16.mxu0 0
        %3646 = vmatmul.mubr.bf16.gmra.mxu0 %v3073
        %v3647 = vpop.f32.mrf.mxu0
        %v3648 = vadd.f32 %v3121, %v3647
        %v3649 = vpop.f32.mrf.mxu0
        %v3650 = vadd.f32 %v3125, %v3649
        %v3651 = vpop.f32.mrf.mxu0
        %v3652 = vadd.f32 %v3121, %v3651
        %v3653 = vpop.f32.mrf.mxu0
        %v3654 = vadd.f32 %v3125, %v3653
        %3655 = vmatprep.mubr.bf16.mxu0 0
        %3656 = vmatmul.mubr.bf16.gmra.mxu0 %v3074
        %v3657 = vpop.f32.mrf.mxu0
        %v3658 = vadd.f32 %v3121, %v3657
        %v3659 = vpop.f32.mrf.mxu0
        %v3660 = vadd.f32 %v3125, %v3659
        %v3661 = vpop.f32.mrf.mxu0
        %v3662 = vadd.f32 %v3121, %v3661
        %v3663 = vpop.f32.mrf.mxu0
        %v3664 = vadd.f32 %v3125, %v3663
        %3665 = vmatprep.mubr.bf16.mxu0 0
        %3666 = vmatmul.mubr.bf16.gmra.mxu0 %v3075
        %v3667 = vpop.f32.mrf.mxu0
        %v3668 = vadd.f32 %v3121, %v3667
        %v3669 = vpop.f32.mrf.mxu0
        %v3670 = vadd.f32 %v3125, %v3669
        %v3671 = vpop.f32.mrf.mxu0
        %v3672 = vadd.f32 %v3121, %v3671
        %v3673 = vpop.f32.mrf.mxu0
        %v3674 = vadd.f32 %v3125, %v3673
        %3675 = vdwg.mxu0
        %v3676 = vadd.f32 %v3325, %v342
        %v3677 = vadd.f32 %v3327, %v343
        %v3678 = vadd.f32 %v3518, %v344
        %v3679 = vadd.f32 %v3520, %v345
        %v3680 = vadd.f32 %v3329, %v346
        %v3681 = vadd.f32 %v3331, %v347
        %v3682 = vadd.f32 %v3522, %v348
        %v3683 = vadd.f32 %v3524, %v349
        %v3684 = vadd.f32 %v3335, %v350
        %v3685 = vadd.f32 %v3337, %v351
        %v3686 = vadd.f32 %v3528, %v352
        %v3687 = vadd.f32 %v3530, %v353
        %v3688 = vadd.f32 %v3339, %v354
        %v3689 = vadd.f32 %v3341, %v355
        %v3690 = vadd.f32 %v3532, %v356
        %v3691 = vadd.f32 %v3534, %v357
        %v3692 = vadd.f32 %v3345, %v358
        %v3693 = vadd.f32 %v3347, %v359
        %v3694 = vadd.f32 %v3538, %v360
        %v3695 = vadd.f32 %v3540, %v361
        %v3696 = vadd.f32 %v3349, %v362
        %v3697 = vadd.f32 %v3351, %v363
        %v3698 = vadd.f32 %v3542, %v364
        %v3699 = vadd.f32 %v3544, %v365
        %v3700 = vadd.f32 %v3355, %v366
        %v3701 = vadd.f32 %v3357, %v367
        %v3702 = vadd.f32 %v3548, %v368
        %v3703 = vadd.f32 %v3550, %v369
        %v3704 = vadd.f32 %v3359, %v370
        %v3705 = vadd.f32 %v3361, %v371
        %v3706 = vadd.f32 %v3552, %v372
        %v3707 = vadd.f32 %v3554, %v373
        %v3708 = vadd.f32 %v3365, %v374
        %v3709 = vadd.f32 %v3367, %v375
        %v3710 = vadd.f32 %v3558, %v376
        %v3711 = vadd.f32 %v3560, %v377
        %v3712 = vadd.f32 %v3369, %v378
        %v3713 = vadd.f32 %v3371, %v379
        %v3714 = vadd.f32 %v3562, %v380
        %v3715 = vadd.f32 %v3564, %v381
        %v3716 = vadd.f32 %v3375, %v382
        %v3717 = vadd.f32 %v3377, %v383
        %v3718 = vadd.f32 %v3568, %v384
        %v3719 = vadd.f32 %v3570, %v385
        %v3720 = vadd.f32 %v3379, %v386
        %v3721 = vadd.f32 %v3381, %v387
        %v3722 = vadd.f32 %v3572, %v388
        %v3723 = vadd.f32 %v3574, %v389
        %v3724 = vadd.f32 %v3385, %v390
        %v3725 = vadd.f32 %v3387, %v391
        %v3726 = vadd.f32 %v3578, %v392
        %v3727 = vadd.f32 %v3580, %v393
        %v3728 = vadd.f32 %v3389, %v394
        %v3729 = vadd.f32 %v3391, %v395
        %v3730 = vadd.f32 %v3582, %v396
        %v3731 = vadd.f32 %v3584, %v397
        %v3732 = vadd.f32 %v3395, %v398
        %v3733 = vadd.f32 %v3397, %v399
        %v3734 = vadd.f32 %v3588, %v400
        %v3735 = vadd.f32 %v3590, %v401
        %v3736 = vadd.f32 %v3399, %v402
        %v3737 = vadd.f32 %v3401, %v403
        %v3738 = vadd.f32 %v3592, %v404
        %v3739 = vadd.f32 %v3594, %v405
        %v3740 = vadd.f32 %v3405, %v406
        %v3741 = vadd.f32 %v3407, %v407
        %v3742 = vadd.f32 %v3598, %v408
        %v3743 = vadd.f32 %v3600, %v409
        %v3744 = vadd.f32 %v3409, %v410
        %v3745 = vadd.f32 %v3411, %v411
        %v3746 = vadd.f32 %v3602, %v412
        %v3747 = vadd.f32 %v3604, %v413
        %v3748 = vadd.f32 %v3415, %v414
        %v3749 = vadd.f32 %v3417, %v415
        %v3750 = vadd.f32 %v3608, %v416
        %v3751 = vadd.f32 %v3610, %v417
        %v3752 = vadd.f32 %v3419, %v418
        %v3753 = vadd.f32 %v3421, %v419
        %v3754 = vadd.f32 %v3612, %v420
        %v3755 = vadd.f32 %v3614, %v421
        %v3756 = vadd.f32 %v3425, %v422
        %v3757 = vadd.f32 %v3427, %v423
        %v3758 = vadd.f32 %v3618, %v424
        %v3759 = vadd.f32 %v3620, %v425
        %v3760 = vadd.f32 %v3429, %v426
        %v3761 = vadd.f32 %v3431, %v427
        %v3762 = vadd.f32 %v3622, %v428
        %v3763 = vadd.f32 %v3624, %v429
        %v3764 = vadd.f32 %v3435, %v430
        %v3765 = vadd.f32 %v3437, %v431
        %v3766 = vadd.f32 %v3628, %v432
        %v3767 = vadd.f32 %v3630, %v433
        %v3768 = vadd.f32 %v3439, %v434
        %v3769 = vadd.f32 %v3441, %v435
        %v3770 = vadd.f32 %v3632, %v436
        %v3771 = vadd.f32 %v3634, %v437
        %v3772 = vadd.f32 %v3445, %v438
        %v3773 = vadd.f32 %v3447, %v439
        %v3774 = vadd.f32 %v3638, %v440
        %v3775 = vadd.f32 %v3640, %v441
        %v3776 = vadd.f32 %v3449, %v442
        %v3777 = vadd.f32 %v3451, %v443
        %v3778 = vadd.f32 %v3642, %v444
        %v3779 = vadd.f32 %v3644, %v445
        %v3780 = vadd.f32 %v3455, %v446
        %v3781 = vadd.f32 %v3457, %v447
        %v3782 = vadd.f32 %v3648, %v448
        %v3783 = vadd.f32 %v3650, %v449
        %v3784 = vadd.f32 %v3459, %v450
        %v3785 = vadd.f32 %v3461, %v451
        %v3786 = vadd.f32 %v3652, %v452
        %v3787 = vadd.f32 %v3654, %v453
        %v3788 = vadd.f32 %v3465, %v454
        %v3789 = vadd.f32 %v3467, %v455
        %v3790 = vadd.f32 %v3658, %v456
        %v3791 = vadd.f32 %v3660, %v457
        %v3792 = vadd.f32 %v3469, %v458
        %v3793 = vadd.f32 %v3471, %v459
        %v3794 = vadd.f32 %v3662, %v460
        %v3795 = vadd.f32 %v3664, %v461
        %v3796 = vadd.f32 %v3475, %v462
        %v3797 = vadd.f32 %v3477, %v463
        %v3798 = vadd.f32 %v3668, %v464
        %v3799 = vadd.f32 %v3670, %v465
        %v3800 = vadd.f32 %v3479, %v466
        %v3801 = vadd.f32 %v3481, %v467
        %v3802 = vadd.f32 %v3672, %v468
        %v3803 = vadd.f32 %v3674, %v469
        %v3804 = vmax.f32 %v3676, 0.0
        %v3805 = vmax.f32 %v3677, 0.0
        %v3806 = vmax.f32 %v3678, 0.0
        %v3807 = vmax.f32 %v3679, 0.0
        %v3808 = vmax.f32 %v3680, 0.0
        %v3809 = vmax.f32 %v3681, 0.0
        %v3810 = vmax.f32 %v3682, 0.0
        %v3811 = vmax.f32 %v3683, 0.0
        %v3812 = vmax.f32 %v3684, 0.0
        %v3813 = vmax.f32 %v3685, 0.0
        %v3814 = vmax.f32 %v3686, 0.0
        %v3815 = vmax.f32 %v3687, 0.0
        %v3816 = vmax.f32 %v3688, 0.0
        %v3817 = vmax.f32 %v3689, 0.0
        %v3818 = vmax.f32 %v3690, 0.0
        %v3819 = vmax.f32 %v3691, 0.0
        %v3820 = vmax.f32 %v3692, 0.0
        %v3821 = vmax.f32 %v3693, 0.0
        %v3822 = vmax.f32 %v3694, 0.0
        %v3823 = vmax.f32 %v3695, 0.0
        %v3824 = vmax.f32 %v3696, 0.0
        %v3825 = vmax.f32 %v3697, 0.0
        %v3826 = vmax.f32 %v3698, 0.0
        %v3827 = vmax.f32 %v3699, 0.0
        %v3828 = vmax.f32 %v3700, 0.0
        %v3829 = vmax.f32 %v3701, 0.0
        %v3830 = vmax.f32 %v3702, 0.0
        %v3831 = vmax.f32 %v3703, 0.0
        %v3832 = vmax.f32 %v3704, 0.0
        %v3833 = vmax.f32 %v3705, 0.0
        %v3834 = vmax.f32 %v3706, 0.0
        %v3835 = vmax.f32 %v3707, 0.0
        %v3836 = vmax.f32 %v3708, 0.0
        %v3837 = vmax.f32 %v3709, 0.0
        %v3838 = vmax.f32 %v3710, 0.0
        %v3839 = vmax.f32 %v3711, 0.0
        %v3840 = vmax.f32 %v3712, 0.0
        %v3841 = vmax.f32 %v3713, 0.0
        %v3842 = vmax.f32 %v3714, 0.0
        %v3843 = vmax.f32 %v3715, 0.0
        %v3844 = vmax.f32 %v3716, 0.0
        %v3845 = vmax.f32 %v3717, 0.0
        %v3846 = vmax.f32 %v3718, 0.0
        %v3847 = vmax.f32 %v3719, 0.0
        %v3848 = vmax.f32 %v3720, 0.0
        %v3849 = vmax.f32 %v3721, 0.0
        %v3850 = vmax.f32 %v3722, 0.0
        %v3851 = vmax.f32 %v3723, 0.0
        %v3852 = vmax.f32 %v3724, 0.0
        %v3853 = vmax.f32 %v3725, 0.0
        %v3854 = vmax.f32 %v3726, 0.0
        %v3855 = vmax.f32 %v3727, 0.0
        %v3856 = vmax.f32 %v3728, 0.0
        %v3857 = vmax.f32 %v3729, 0.0
        %v3858 = vmax.f32 %v3730, 0.0
        %v3859 = vmax.f32 %v3731, 0.0
        %v3860 = vmax.f32 %v3732, 0.0
        %v3861 = vmax.f32 %v3733, 0.0
        %v3862 = vmax.f32 %v3734, 0.0
        %v3863 = vmax.f32 %v3735, 0.0
        %v3864 = vmax.f32 %v3736, 0.0
        %v3865 = vmax.f32 %v3737, 0.0
        %v3866 = vmax.f32 %v3738, 0.0
        %v3867 = vmax.f32 %v3739, 0.0
        %v3868 = vmax.f32 %v3740, 0.0
        %v3869 = vmax.f32 %v3741, 0.0
        %v3870 = vmax.f32 %v3742, 0.0
        %v3871 = vmax.f32 %v3743, 0.0
        %v3872 = vmax.f32 %v3744, 0.0
        %v3873 = vmax.f32 %v3745, 0.0
        %v3874 = vmax.f32 %v3746, 0.0
        %v3875 = vmax.f32 %v3747, 0.0
        %v3876 = vmax.f32 %v3748, 0.0
        %v3877 = vmax.f32 %v3749, 0.0
        %v3878 = vmax.f32 %v3750, 0.0
        %v3879 = vmax.f32 %v3751, 0.0
        %v3880 = vmax.f32 %v3752, 0.0
        %v3881 = vmax.f32 %v3753, 0.0
        %v3882 = vmax.f32 %v3754, 0.0
        %v3883 = vmax.f32 %v3755, 0.0
        %v3884 = vmax.f32 %v3756, 0.0
        %v3885 = vmax.f32 %v3757, 0.0
        %v3886 = vmax.f32 %v3758, 0.0
        %v3887 = vmax.f32 %v3759, 0.0
        %v3888 = vmax.f32 %v3760, 0.0
        %v3889 = vmax.f32 %v3761, 0.0
        %v3890 = vmax.f32 %v3762, 0.0
        %v3891 = vmax.f32 %v3763, 0.0
        %v3892 = vmax.f32 %v3764, 0.0
        %v3893 = vmax.f32 %v3765, 0.0
        %v3894 = vmax.f32 %v3766, 0.0
        %v3895 = vmax.f32 %v3767, 0.0
        %v3896 = vmax.f32 %v3768, 0.0
        %v3897 = vmax.f32 %v3769, 0.0
        %v3898 = vmax.f32 %v3770, 0.0
        %v3899 = vmax.f32 %v3771, 0.0
        %v3900 = vmax.f32 %v3772, 0.0
        %v3901 = vmax.f32 %v3773, 0.0
        %v3902 = vmax.f32 %v3774, 0.0
        %v3903 = vmax.f32 %v3775, 0.0
        %v3904 = vmax.f32 %v3776, 0.0
        %v3905 = vmax.f32 %v3777, 0.0
        %v3906 = vmax.f32 %v3778, 0.0
        %v3907 = vmax.f32 %v3779, 0.0
        %v3908 = vmax.f32 %v3780, 0.0
        %v3909 = vmax.f32 %v3781, 0.0
        %v3910 = vmax.f32 %v3782, 0.0
        %v3911 = vmax.f32 %v3783, 0.0
        %v3912 = vmax.f32 %v3784, 0.0
        %v3913 = vmax.f32 %v3785, 0.0
        %v3914 = vmax.f32 %v3786, 0.0
        %v3915 = vmax.f32 %v3787, 0.0
        %v3916 = vmax.f32 %v3788, 0.0
        %v3917 = vmax.f32 %v3789, 0.0
        %v3918 = vmax.f32 %v3790, 0.0
        %v3919 = vmax.f32 %v3791, 0.0
        %v3920 = vmax.f32 %v3792, 0.0
        %v3921 = vmax.f32 %v3793, 0.0
        %v3922 = vmax.f32 %v3794, 0.0
        %v3923 = vmax.f32 %v3795, 0.0
        %v3924 = vmax.f32 %v3796, 0.0
        %v3925 = vmax.f32 %v3797, 0.0
        %v3926 = vmax.f32 %v3798, 0.0
        %v3927 = vmax.f32 %v3799, 0.0
        %v3928 = vmax.f32 %v3800, 0.0
        %v3929 = vmax.f32 %v3801, 0.0
        %v3930 = vmax.f32 %v3802, 0.0
        %v3931 = vmax.f32 %v3803, 0.0
        %3932 = vst [vmem:[%s340] sm:$0xff] %v3804
        %3933 = vst [vmem:[%s340 + $0x8] sm:$0xff] %v3805
        %3934 = vst [vmem:[%s340 + $0x10] sm:$0xff] %v3806
        %3935 = vst [vmem:[%s340 + $0x18] sm:$0xff] %v3807
        %3936 = vst [vmem:[%s340 + $0x20] sm:$0xff] %v3808
        %3937 = vst [vmem:[%s340 + $0x28] sm:$0xff] %v3809
        %3938 = vst [vmem:[%s340 + $0x30] sm:$0xff] %v3810
        %3939 = vst [vmem:[%s340 + $0x38] sm:$0xff] %v3811
        %3940 = vst [vmem:[%s340 + $0x40] sm:$0xff] %v3812
        %3941 = vst [vmem:[%s340 + $0x48] sm:$0xff] %v3813
        %3942 = vst [vmem:[%s340 + $0x50] sm:$0xff] %v3814
        %3943 = vst [vmem:[%s340 + $0x58] sm:$0xff] %v3815
        %3944 = vst [vmem:[%s340 + $0x60] sm:$0xff] %v3816
        %3945 = vst [vmem:[%s340 + $0x68] sm:$0xff] %v3817
        %3946 = vst [vmem:[%s340 + $0x70] sm:$0xff] %v3818
        %3947 = vst [vmem:[%s340 + $0x78] sm:$0xff] %v3819
        %3948 = vst [vmem:[%s340 + $0x80] sm:$0xff] %v3820
        %3949 = vst [vmem:[%s340 + $0x88] sm:$0xff] %v3821
        %3950 = vst [vmem:[%s340 + $0x90] sm:$0xff] %v3822
        %3951 = vst [vmem:[%s340 + $0x98] sm:$0xff] %v3823
        %3952 = vst [vmem:[%s340 + $0xa0] sm:$0xff] %v3824
        %3953 = vst [vmem:[%s340 + $0xa8] sm:$0xff] %v3825
        %3954 = vst [vmem:[%s340 + $0xb0] sm:$0xff] %v3826
        %3955 = vst [vmem:[%s340 + $0xb8] sm:$0xff] %v3827
        %3956 = vst [vmem:[%s340 + $0xc0] sm:$0xff] %v3828
        %3957 = vst [vmem:[%s340 + $0xc8] sm:$0xff] %v3829
        %3958 = vst [vmem:[%s340 + $0xd0] sm:$0xff] %v3830
        %3959 = vst [vmem:[%s340 + $0xd8] sm:$0xff] %v3831
        %3960 = vst [vmem:[%s340 + $0xe0] sm:$0xff] %v3832
        %3961 = vst [vmem:[%s340 + $0xe8] sm:$0xff] %v3833
        %3962 = vst [vmem:[%s340 + $0xf0] sm:$0xff] %v3834
        %3963 = vst [vmem:[%s340 + $0xf8] sm:$0xff] %v3835
        %3964 = vst [vmem:[%s340 + $0x100] sm:$0xff] %v3836
        %3965 = vst [vmem:[%s340 + $0x108] sm:$0xff] %v3837
        %3966 = vst [vmem:[%s340 + $0x110] sm:$0xff] %v3838
        %3967 = vst [vmem:[%s340 + $0x118] sm:$0xff] %v3839
        %3968 = vst [vmem:[%s340 + $0x120] sm:$0xff] %v3840
        %3969 = vst [vmem:[%s340 + $0x128] sm:$0xff] %v3841
        %3970 = vst [vmem:[%s340 + $0x130] sm:$0xff] %v3842
        %3971 = vst [vmem:[%s340 + $0x138] sm:$0xff] %v3843
        %3972 = vst [vmem:[%s340 + $0x140] sm:$0xff] %v3844
        %3973 = vst [vmem:[%s340 + $0x148] sm:$0xff] %v3845
        %3974 = vst [vmem:[%s340 + $0x150] sm:$0xff] %v3846
        %3975 = vst [vmem:[%s340 + $0x158] sm:$0xff] %v3847
        %3976 = vst [vmem:[%s340 + $0x160] sm:$0xff] %v3848
        %3977 = vst [vmem:[%s340 + $0x168] sm:$0xff] %v3849
        %3978 = vst [vmem:[%s340 + $0x170] sm:$0xff] %v3850
        %3979 = vst [vmem:[%s340 + $0x178] sm:$0xff] %v3851
        %3980 = vst [vmem:[%s340 + $0x180] sm:$0xff] %v3852
        %3981 = vst [vmem:[%s340 + $0x188] sm:$0xff] %v3853
        %3982 = vst [vmem:[%s340 + $0x190] sm:$0xff] %v3854
        %3983 = vst [vmem:[%s340 + $0x198] sm:$0xff] %v3855
        %3984 = vst [vmem:[%s340 + $0x1a0] sm:$0xff] %v3856
        %3985 = vst [vmem:[%s340 + $0x1a8] sm:$0xff] %v3857
        %3986 = vst [vmem:[%s340 + $0x1b0] sm:$0xff] %v3858
        %3987 = vst [vmem:[%s340 + $0x1b8] sm:$0xff] %v3859
        %3988 = vst [vmem:[%s340 + $0x1c0] sm:$0xff] %v3860
        %3989 = vst [vmem:[%s340 + $0x1c8] sm:$0xff] %v3861
        %3990 = vst [vmem:[%s340 + $0x1d0] sm:$0xff] %v3862
        %3991 = vst [vmem:[%s340 + $0x1d8] sm:$0xff] %v3863
        %3992 = vst [vmem:[%s340 + $0x1e0] sm:$0xff] %v3864
        %3993 = vst [vmem:[%s340 + $0x1e8] sm:$0xff] %v3865
        %3994 = vst [vmem:[%s340 + $0x1f0] sm:$0xff] %v3866
        %3995 = vst [vmem:[%s340 + $0x1f8] sm:$0xff] %v3867
        %3996 = vst [vmem:[%s340 + $0x200] sm:$0xff] %v3868
        %3997 = vst [vmem:[%s340 + $0x208] sm:$0xff] %v3869
        %3998 = vst [vmem:[%s340 + $0x210] sm:$0xff] %v3870
        %3999 = vst [vmem:[%s340 + $0x218] sm:$0xff] %v3871
        %4000 = vst [vmem:[%s340 + $0x220] sm:$0xff] %v3872
        %4001 = vst [vmem:[%s340 + $0x228] sm:$0xff] %v3873
        %4002 = vst [vmem:[%s340 + $0x230] sm:$0xff] %v3874
        %4003 = vst [vmem:[%s340 + $0x238] sm:$0xff] %v3875
        %4004 = vst [vmem:[%s340 + $0x240] sm:$0xff] %v3876
        %4005 = vst [vmem:[%s340 + $0x248] sm:$0xff] %v3877
        %4006 = vst [vmem:[%s340 + $0x250] sm:$0xff] %v3878
        %4007 = vst [vmem:[%s340 + $0x258] sm:$0xff] %v3879
        %4008 = vst [vmem:[%s340 + $0x260] sm:$0xff] %v3880
        %4009 = vst [vmem:[%s340 + $0x268] sm:$0xff] %v3881
        %4010 = vst [vmem:[%s340 + $0x270] sm:$0xff] %v3882
        %4011 = vst [vmem:[%s340 + $0x278] sm:$0xff] %v3883
        %4012 = vst [vmem:[%s340 + $0x280] sm:$0xff] %v3884
        %4013 = vst [vmem:[%s340 + $0x288] sm:$0xff] %v3885
        %4014 = vst [vmem:[%s340 + $0x290] sm:$0xff] %v3886
        %4015 = vst [vmem:[%s340 + $0x298] sm:$0xff] %v3887
        %4016 = vst [vmem:[%s340 + $0x2a0] sm:$0xff] %v3888
        %4017 = vst [vmem:[%s340 + $0x2a8] sm:$0xff] %v3889
        %4018 = vst [vmem:[%s340 + $0x2b0] sm:$0xff] %v3890
        %4019 = vst [vmem:[%s340 + $0x2b8] sm:$0xff] %v3891
        %4020 = vst [vmem:[%s340 + $0x2c0] sm:$0xff] %v3892
        %4021 = vst [vmem:[%s340 + $0x2c8] sm:$0xff] %v3893
        %4022 = vst [vmem:[%s340 + $0x2d0] sm:$0xff] %v3894
        %4023 = vst [vmem:[%s340 + $0x2d8] sm:$0xff] %v3895
        %4024 = vst [vmem:[%s340 + $0x2e0] sm:$0xff] %v3896
        %4025 = vst [vmem:[%s340 + $0x2e8] sm:$0xff] %v3897
        %4026 = vst [vmem:[%s340 + $0x2f0] sm:$0xff] %v3898
        %4027 = vst [vmem:[%s340 + $0x2f8] sm:$0xff] %v3899
        %4028 = vst [vmem:[%s340 + $0x300] sm:$0xff] %v3900
        %4029 = vst [vmem:[%s340 + $0x308] sm:$0xff] %v3901
        %4030 = vst [vmem:[%s340 + $0x310] sm:$0xff] %v3902
        %4031 = vst [vmem:[%s340 + $0x318] sm:$0xff] %v3903
        %4032 = vst [vmem:[%s340 + $0x320] sm:$0xff] %v3904
        %4033 = vst [vmem:[%s340 + $0x328] sm:$0xff] %v3905
        %4034 = vst [vmem:[%s340 + $0x330] sm:$0xff] %v3906
        %4035 = vst [vmem:[%s340 + $0x338] sm:$0xff] %v3907
        %4036 = vst [vmem:[%s340 + $0x340] sm:$0xff] %v3908
        %4037 = vst [vmem:[%s340 + $0x348] sm:$0xff] %v3909
        %4038 = vst [vmem:[%s340 + $0x350] sm:$0xff] %v3910
        %4039 = vst [vmem:[%s340 + $0x358] sm:$0xff] %v3911
        %4040 = vst [vmem:[%s340 + $0x360] sm:$0xff] %v3912
        %4041 = vst [vmem:[%s340 + $0x368] sm:$0xff] %v3913
        %4042 = vst [vmem:[%s340 + $0x370] sm:$0xff] %v3914
        %4043 = vst [vmem:[%s340 + $0x378] sm:$0xff] %v3915
        %4044 = vst [vmem:[%s340 + $0x380] sm:$0xff] %v3916
        %4045 = vst [vmem:[%s340 + $0x388] sm:$0xff] %v3917
        %4046 = vst [vmem:[%s340 + $0x390] sm:$0xff] %v3918
        %4047 = vst [vmem:[%s340 + $0x398] sm:$0xff] %v3919
        %4048 = vst [vmem:[%s340 + $0x3a0] sm:$0xff] %v3920
        %4049 = vst [vmem:[%s340 + $0x3a8] sm:$0xff] %v3921
        %4050 = vst [vmem:[%s340 + $0x3b0] sm:$0xff] %v3922
        %4051 = vst [vmem:[%s340 + $0x3b8] sm:$0xff] %v3923
        %4052 = vst [vmem:[%s340 + $0x3c0] sm:$0xff] %v3924
        %4053 = vst [vmem:[%s340 + $0x3c8] sm:$0xff] %v3925
        %4054 = vst [vmem:[%s340 + $0x3d0] sm:$0xff] %v3926
        %4055 = vst [vmem:[%s340 + $0x3d8] sm:$0xff] %v3927
        %4056 = vst [vmem:[%s340 + $0x3e0] sm:$0xff] %v3928
        %4057 = vst [vmem:[%s340 + $0x3e8] sm:$0xff] %v3929
        %4058 = vst [vmem:[%s340 + $0x3f0] sm:$0xff] %v3930
        %4059 = vst [vmem:[%s340 + $0x3f8] sm:$0xff] %v3931
        %s4060 = sand.u32 %s186, 1
        %s4061 = scalar_lea.sflag [#allocation4], %s4060
        %s4062 = sand.u32 %s186, 1
        %s4063 = smul.addr %s4062, 1024
        %s4064 = scalar_lea.vmem [#allocation10], %s4063
        // Predicated region
        $region65: #{tpu_custom_call.1} parent=47 // pred_check
          %p4065 = pneg %p196
        $region66: #{tpu_custom_call.1} parent=47 // pred_check_branch
          %4067 = sbr.rel (%p4065) target = $region68
        $region67: #{tpu_custom_call.1} parent=47 // pred_region
          %s4069 = ssub.s32 16384, 16384
          %4070 = vsyncadd %s4061, %s4069
          %s4071 = smul.addr %s26, 128
          %s4072 = smul.addr %s4071, 128
          %s4073 = scalar_lea.hbm %s7, %s4072
          %s4074 = sshll.u32 %s4064, 4
          %s4075 = int_to_ptr.vmem [resolvable:$true] %s4074
          %4080 = dma.vmem_to_hbm [thread:$0]  %s4075, 16384, %s4073, %s4061, 512, 512, 32
        $region68: #{tpu_custom_call.1} parent=47 // pred_fallthru
          _
      $region48: #{tpu_custom_call.1} parent=5 // pred_fallthru
        _
      %p4081 = scmp.le.s32.totalorder 2, %s21
      // Predicated region
      $region69: #{tpu_custom_call.1} parent=5 // pred_check
        %p4082 = pneg %p4081
      $region70: #{tpu_custom_call.1} parent=5 // pred_check_branch
        %4084 = sbr.rel (%p4082) target = $region72
      $region71: #{tpu_custom_call.1} parent=5 // pred_region
        %s4085 = ssub.s32 %s21, 2
        // Predicated region
        $region73: #{tpu_custom_call.1} parent=71 // pred_check
          %p4086 = pneg %p202
        $region74: #{tpu_custom_call.1} parent=71 // pred_check_branch
          %4088 = sbr.rel (%p4086) target = $region76
        $region75: #{tpu_custom_call.1} parent=71 // pred_region
          %s4089 = sand.u32 %s187, 1
          %s4090 = scalar_lea.sflag [#allocation4], %s4089
          %s4091 = sand.u32 %s187, 1
          %s4092 = smul.addr %s4091, 1024
          %s4093 = scalar_lea.vmem [#allocation10], %s4092
          %4094 = dma.done %s4090, 16384
        $region76: #{tpu_custom_call.1} parent=71 // pred_fallthru
          _
      $region72: #{tpu_custom_call.1} parent=5 // pred_fallthru
        _
    $region6: #{tpu_custom_call.1} parent=1 // loop_footer
      %s25 = sadd.s32 1, %s21
    $region7: #{tpu_custom_call.1} parent=1 // loop_footer_branch
      %20 = sbr.rel target = $region3
    $region8: #{tpu_custom_call.1} parent=1 // loop_exit
      _
    %4095 = vsyncpa [#allocation3], 1
    %s4096 = scalar_lea.sflag [#allocation3], 1
    %4097 = vsyncpa %s4096, 1
    %4098 = vsyncpa [#allocation6], 1
    %4099 = vsyncpa [#allocation9], 1
    %4100 = vsyncpa [#allocation4], 1
    %s4101 = scalar_lea.sflag [#allocation4], 1
    %4102 = vsyncpa %s4101, 1

</llo_original>
